<compile_context>
chip_gen: v7x
topology: tpu7x:2x2x1
jax: 0.10.0
libtpu: 0.0.40
codegen_flags: <defaults>
</compile_context>

<pallas_src>
import functools

import jax
import jax.numpy as jnp
from jax.experimental import pallas as pl
from jax.experimental.pallas import tpu as pltpu

_LANES = 128
_SUBLANES = 8
_GX_STREAM_BUDGET_BYTES = 16 * 1024 * 1024   # double-buffered gx0 stream budget


def _round_up(v, m):
    return ((v + m - 1) // m) * m


def _tensorcores_per_chip():
    """Best effort: 2 on v7x (Mosaic shards 'parallel' grid axes), else 1."""
    try:
        kind = jax.devices()[0].device_kind.lower()
    except Exception:
        return 1
    return 2 if "v7" in kind else 1


def _sigmoid(x):
    # Exactly one EUP transcendental per element (mathematically identical to
    # the logistic sigmoid); keeps the serial gate chain short on v5e's EUP.
    return 0.5 * jnp.tanh(0.5 * x) + 0.5


def _pad_gate_cols(w, H, H_pad):
    """(..., 4*H) -> (..., 4*H_pad): zero-pad each gate block to H_pad lanes."""
    lead = w.shape[:-1]
    w4 = w.reshape(lead + (4, H))
    w4 = jnp.pad(w4, [(0, 0)] * (len(lead) + 1) + [(0, H_pad - H)])
    return w4.reshape(lead + (4 * H_pad,))


def _lstm_regressor_kernel(gx_ref,     # (T_tile, B_block, 4*H_pad) f32: x@Wih0+b0
                           whh0_ref,   # (H_pad, 4*H_pad) bf16
                           w1_ref,     # (2*H_pad, 4*H_pad) bf16: [Wih1 ; Whh1]
                           b1_ref,     # (1, 4*H_pad) f32
                           wfc_ref,    # (H_pad, 128) f32 (col 0 = real fc weight)
                           bfc_ref,    # (1, 128) f32
                           out_ref,    # (B_block, 128) f32
                           h0_s, c0_s, h1_s, c1_s,   # VMEM scratch (B_block, H_pad) f32
                           *, steps_full, steps_last):
    B = out_ref.shape[0]
    H_pad = h0_s.shape[1]
    t_idx = pl.program_id(1)
    n_t = pl.num_programs(1)

    # zero initial state (PyTorch default) at the first time-tile of each
    # batch block (the time axis is the innermost grid axis).
    @pl.when(t_idx == 0)
    def _():
        h0_s[...] = jnp.zeros_like(h0_s)
        c0_s[...] = jnp.zeros_like(c0_s)
        h1_s[...] = jnp.zeros_like(h1_s)
        c1_s[...] = jnp.zeros_like(c1_s)

    # hoist the (1,4H)->(B,4H) bias broadcast out of the recurrence (only a
    # few vregs).  The large bf16 weights are read at the dot sites so they
    # never occupy vregs across the loop.
    b1b = jnp.broadcast_to(b1_ref[...], (B, 4 * H_pad))

    def cell(g, c):
        # PyTorch nn.LSTM gate order (i, f, g, o); every slice is a whole
        # number of 128-lane tiles because H_pad % 128 == 0.
        i = _sigmoid(g[:, 0 * H_pad:1 * H_pad])
        f = _sigmoid(g[:, 1 * H_pad:2 * H_pad])
        gg = jnp.tanh(g[:, 2 * H_pad:3 * H_pad])
        o = _sigmoid(g[:, 3 * H_pad:4 * H_pad])
        c_new = f * c + i * gg
        h_new = o * jnp.tanh(c_new)
        return h_new, c_new

    def run_tile(n_steps):
        def step(t, carry):
            h0, c0, h1, c1 = carry
            gx = gx_ref[t]                                   # (B, 4*H_pad) f32
            # ---- layer 0: only the recurrent matmul is on the serial path ----
            g0 = gx + jnp.dot(h0.astype(jnp.bfloat16), whh0_ref[...],
                              preferred_element_type=jnp.float32)
            h0, c0 = cell(g0, c0)
            # ---- layer 1: single fused matmul [h0 | h1] @ [Wih1 ; Whh1] ----
            # (inter-layer dropout = identity in eval mode)
            hcat = jnp.concatenate([h0, h1], axis=-1).astype(jnp.bfloat16)
            g1 = jnp.dot(hcat, w1_ref[...],
                         preferred_element_type=jnp.float32) + b1b
            h1, c1 = cell(g1, c1)
            return (h0, c0, h1, c1)

        carry0 = (h0_s[...], c0_s[...], h1_s[...], c1_s[...])
        unroll = max(1, min(n_steps, 16))
        h0, c0, h1, c1 = jax.lax.fori_loop(0, n_steps, step, carry0,
                                           unroll=unroll)
        h0_s[...] = h0
        c0_s[...] = c0
        h1_s[...] = h1
        c1_s[...] = c1

        # fc on the (true) last timestep's top-layer hidden; lane-dense store
        @pl.when(t_idx == n_t - 1)
        def _():
            out_ref[...] = (jnp.dot(h1, wfc_ref[...],
                                    preferred_element_type=jnp.float32)
                            + bfc_ref[...])

    if steps_full == steps_last:
        # T % T_tile == 0: every tile runs an unguarded, unrolled loop.
        run_tile(steps_full)
    else:
        # Only the last tile is ragged; both trip counts are static Python
        # ints, so no per-timestep predicate is ever executed.
        @pl.when(t_idx < n_t - 1)
        def _():
            run_tile(steps_full)

        @pl.when(t_idx == n_t - 1)
        def _():
            run_tile(steps_last)


@functools.partial(jax.jit, static_argnames=("hidden_size",))
def lstm_regressor_forward(x, params, hidden_size):
    """x: (B, T, D_in) batch_first, like the PyTorch module.  Returns out.squeeze()."""
    B, T, _ = x.shape
    H = hidden_size
    H_pad = _round_up(H, _LANES)                 # lane-aligned gate blocks

    B_pad = _round_up(B, _SUBLANES)
    n_bb = 1
    if _tensorcores_per_chip() >= 2 and B_pad >= 2 * _SUBLANES:
        B_pad = _round_up(B_pad, 2 * _SUBLANES)
        n_bb = 2                                  # one batch half per TC (v7x)
    B_block = B_pad // n_bb

    # ---- weight prep: per-gate column padding, layer-1 fusion, bf16 operands
    wih0_p = _pad_gate_cols(params["wih0"], H, H_pad)                   # (D_in, 4H_pad)
    b0_p = _pad_gate_cols(params["b0"], H, H_pad)                       # (1, 4H_pad)
    whh0_p = jnp.pad(_pad_gate_cols(params["whh0"], H, H_pad),
                     ((0, H_pad - H), (0, 0)))                          # (H_pad, 4H_pad)
    wih1_p = jnp.pad(_pad_gate_cols(params["wih1"], H, H_pad),
                     ((0, H_pad - H), (0, 0)))
    whh1_p = jnp.pad(_pad_gate_cols(params["whh1"], H, H_pad),
                     ((0, H_pad - H), (0, 0)))
    w1_p = jnp.concatenate([wih1_p, whh1_p], axis=0)                    # (2H_pad, 4H_pad)
    b1_p = _pad_gate_cols(params["b1"], H, H_pad)                       # (1, 4H_pad)

    whh0_bf = whh0_p.astype(jnp.bfloat16)
    w1_bf = w1_p.astype(jnp.bfloat16)

    wfc_p = jnp.pad(params["wfc"],
                    ((0, H_pad - H), (0, _LANES - params["wfc"].shape[1])))
    bfc_p = jnp.pad(params["bfc"], ((0, 0), (0, _LANES - params["bfc"].shape[1])))

    # ---- layer-0 input projection hoisted out of the kernel (parallel over
    #      time, full-throughput XLA matmul); the kernel streams lane-dense
    #      pre-projected gate activations instead of lane-sparse x.
    gx = jnp.einsum("btd,dg->btg", x, wih0_p) + b0_p[0]                 # (B, T, 4H_pad)
    gx = jnp.transpose(gx, (1, 0, 2))                                   # (T, B, 4H_pad)

    # ---- time-tile size from a VMEM budget (v7x: 64 MiB physical / 32 MiB
    #      scoped default; don't hardcode a v6e-sized tile)
    step_bytes = B_block * 4 * H_pad * 4
    T_tile = int(max(1, min(T, _GX_STREAM_BUDGET_BYTES // (2 * step_bytes))))
    n_tiles = pl.cdiv(T, T_tile)
    T_pad = n_tiles * T_tile
    steps_last = int(T - (n_tiles - 1) * T_tile)

    gx = jnp.pad(gx, ((0, T_pad - T), (0, B_pad - B), (0, 0)))

    vmem_est = (
        2 * T_tile * B_block * 4 * H_pad * 4        # gx stream (double-buffered)
        + 2 * (whh0_bf.size * 2 + w1_bf.size * 2
               + b1_p.size * 4 + wfc_p.size * 4 + bfc_p.size * 4)
        + 4 * B_block * H_pad * 4                   # h/c scratch
        + 2 * B_block * _LANES * 4                  # out
    )
    vmem_limit = int(min(64 * 2**20, max(32 * 2**20, int(1.5 * vmem_est))))

    kernel = functools.partial(_lstm_regressor_kernel,
                               steps_full=T_tile, steps_last=steps_last)

    grid_spec = pltpu.PrefetchScalarGridSpec(
        num_scalar_prefetch=0,
        grid=(n_bb, n_tiles),
        in_specs=[
            # gx streamed one (time-tile, batch-block) at a time; the auto DMA
            # double-buffers the next chunk behind the recurrence.
            pl.BlockSpec((T_tile, B_block, 4 * H_pad), lambda bb, t: (t, bb, 0)),
            # weights/biases: grid-invariant (constant index_map -> one fetch)
            pl.BlockSpec((H_pad, 4 * H_pad), lambda bb, t: (0, 0)),
            pl.BlockSpec((2 * H_pad, 4 * H_pad), lambda bb, t: (0, 0)),
            pl.BlockSpec((1, 4 * H_pad), lambda bb, t: (0, 0)),
            pl.BlockSpec((H_pad, _LANES), lambda bb, t: (0, 0)),
            pl.BlockSpec((1, _LANES), lambda bb, t: (0, 0)),
        ],
        out_specs=pl.BlockSpec((B_block, _LANES), lambda bb, t: (bb, 0)),
        scratch_shapes=[
            pltpu.VMEM((B_block, H_pad), jnp.float32),    # h0
            pltpu.VMEM((B_block, H_pad), jnp.float32),    # c0
            pltpu.VMEM((B_block, H_pad), jnp.float32),    # h1
            pltpu.VMEM((B_block, H_pad), jnp.float32),    # c1
        ],
    )

    out = pl.pallas_call(
        kernel,
        out_shape=jax.ShapeDtypeStruct((B_pad, _LANES), jnp.float32),
        grid_spec=grid_spec,
        compiler_params=pltpu.CompilerParams(
            # batch blocks are independent ("parallel", usable by v7x's 2 TCs);
            # the recurrence over time is sequential ("arbitrary").
            dimension_semantics=("parallel", "arbitrary"),
            vmem_limit_bytes=vmem_limit),
    )(gx, whh0_bf, w1_bf, b1_p, wfc_p, bfc_p)

    return jnp.squeeze(out[:B, 0])   # matches out.squeeze() in the PyTorch module


def init_params(key, input_size, hidden_size):
    """Uniform(-k, k) init, k = 1/sqrt(H), like PyTorch nn.LSTM.

    Gate-column order is PyTorch's native (i, f, g, o): a real checkpoint can
    be imported by transposing weight_ih_l*/weight_hh_l* (no gate permutation)
    and summing the two bias vectors per layer.
    """
    H = hidden_size
    k = 1.0 / jnp.sqrt(jnp.float32(H))
    keys = jax.random.split(key, 10)

    def u(kk, shape):
        return jax.random.uniform(kk, shape, jnp.float32, -k, k)

    wih0 = u(keys[0], (4 * H, input_size)).T
    whh0 = u(keys[1], (4 * H, H)).T
    b0 = (u(keys[2], (4 * H,)) + u(keys[3], (4 * H,))).reshape(1, 4 * H)
    wih1 = u(keys[4], (4 * H, H)).T
    whh1 = u(keys[5], (4 * H, H)).T
    b1 = (u(keys[6], (4 * H,)) + u(keys[7], (4 * H,))).reshape(1, 4 * H)
    wfc = u(keys[8], (1, H)).T                      # (H, 1)
    bfc = u(keys[9], (1,)).reshape(1, 1)            # (1, 1)

    return dict(wih0=wih0, whh0=whh0, b0=b0,
                wih1=wih1, whh1=whh1, b1=b1,
                wfc=wfc, bfc=bfc)


def _reference_forward(x, params, hidden_size, matmul_dtype=jnp.float32):
    """Pure-JAX reference (eval mode), PyTorch gate order (i, f, g, o).

    matmul_dtype=jnp.bfloat16 mirrors the kernel's MXU numerics (bf16
    operands on the recurrent matmuls, f32 accumulation / state).
    """
    H = hidden_size
    B, T, _ = x.shape

    def dot(a, b):
        return jnp.dot(a.astype(matmul_dtype), b.astype(matmul_dtype),
                       preferred_element_type=jnp.float32)

    def cell(g, c):
        i = jax.nn.sigmoid(g[:, 0 * H:1 * H])
        f = jax.nn.sigmoid(g[:, 1 * H:2 * H])
        gg = jnp.tanh(g[:, 2 * H:3 * H])
        o = jax.nn.sigmoid(g[:, 3 * H:4 * H])
        c = f * c + i * gg
        return o * jnp.tanh(c), c

    gx = jnp.einsum("btd,dg->btg", x, params["wih0"]) + params["b0"][0]
    h0 = c0 = h1 = c1 = jnp.zeros((B, H), jnp.float32)
    for t in range(T):
        h0, c0 = cell(gx[:, t, :] + dot(h0, params["whh0"]), c0)
        h1, c1 = cell(dot(h0, params["wih1"]) + dot(h1, params["whh1"])
                      + params["b1"], c1)
    return jnp.squeeze(h1 @ params["wfc"] + params["bfc"])


if __name__ == "__main__":
    B, T, D_in, H = 2, 8, 8, 32

    key = jax.random.PRNGKey(0)
    k_x, k_p = jax.random.split(key)
    x = jax.random.normal(k_x, (B, T, D_in), jnp.float32)
    params = init_params(k_p, D_in, H)

    out = lstm_regressor_forward(x, params, hidden_size=H)
    out = jax.block_until_ready(out)
    assert out.shape == (B,), out.shape

    # Tight check vs a reference that mirrors the kernel's numerics (bf16
    # MXU operands on the recurrence, f32 everywhere else) ...
    ref_bf16 = _reference_forward(x, params, H, matmul_dtype=jnp.bfloat16)
    assert jnp.allclose(out, ref_bf16, atol=2e-3, rtol=2e-3), (out, ref_bf16)
    # ... and a looser sanity check vs the all-f32 forward (bounds the bf16
    # operand error accumulated through the 8-step recurrence).
    ref_f32 = _reference_forward(x, params, H, matmul_dtype=jnp.float32)
    assert jnp.allclose(out, ref_f32, atol=1e-1, rtol=1e-1), (out, ref_f32)

    print("KERNEL_OK")
</pallas_src>

<mosaic_0001>
module attributes {stable_mosaic.version = 11 : i64} {
  func.func @_lstm_regressor_kernel(%arg0: i32, %arg1: i32, %arg2: memref<8x8x512xf32, #tpu.memory_space<vmem>>, %arg3: memref<128x512xbf16, #tpu.memory_space<vmem>>, %arg4: memref<256x512xbf16, #tpu.memory_space<vmem>>, %arg5: memref<1x512xf32, #tpu.memory_space<vmem>>, %arg6: memref<128x128xf32, #tpu.memory_space<vmem>>, %arg7: memref<1x128xf32, #tpu.memory_space<vmem>>, %arg8: memref<8x128xf32, #tpu.memory_space<vmem>>, %arg9: memref<8x128xf32, #tpu.memory_space<vmem>>, %arg10: memref<8x128xf32, #tpu.memory_space<vmem>>, %arg11: memref<8x128xf32, #tpu.memory_space<vmem>>, %arg12: memref<8x128xf32, #tpu.memory_space<vmem>>) attributes {dimension_semantics = [#tpu.dimension_semantics<parallel>, #tpu.dimension_semantics<arbitrary>], iteration_bounds = array<i64: 1, 1>, scalar_prefetch = 0 : i64, scratch_operands = 4 : i64, tpu.core_type = #tpu.core_type<tc>, window_params = [{transform_indices = @transform_0, window_bounds = array<i64: 8, 8, 512>}, {pipeline_mode = #tpu.pipeline_mode<synchronous>, transform_indices = @transform_1, window_bounds = array<i64: 128, 512>}, {pipeline_mode = #tpu.pipeline_mode<synchronous>, transform_indices = @transform_2, window_bounds = array<i64: 256, 512>}, {pipeline_mode = #tpu.pipeline_mode<synchronous>, transform_indices = @transform_3, window_bounds = array<i64: 1, 512>}, {pipeline_mode = #tpu.pipeline_mode<synchronous>, transform_indices = @transform_4, window_bounds = array<i64: 128, 128>}, {pipeline_mode = #tpu.pipeline_mode<synchronous>, transform_indices = @transform_5, window_bounds = array<i64: 1, 128>}, {transform_indices = @transform_6, window_bounds = array<i64: 8, 128>}]} {
    %c0_i32 = arith.constant 0 : i32
    %0 = arith.cmpi eq, %arg1, %c0_i32 : i32
    %1 = arith.extui %0 : i1 to i32
    %c0_i32_0 = arith.constant 0 : i32
    %2 = arith.cmpi ne, %1, %c0_i32_0 : i32
    scf.if %2 {
      %cst_228 = arith.constant 0.000000e+00 : f32
      %609 = vector.broadcast %cst_228 : f32 to vector<8x128xf32>
      %c0_229 = arith.constant 0 : index
      %c0_230 = arith.constant 0 : index
      %610 = vector.load %arg9[%c0_229, %c0_230] : memref<8x128xf32, #tpu.memory_space<vmem>>, vector<8x128xf32>
      tpu.vector_store %arg9[%c0_229, %c0_230], %609 {strides = array<i32>} : memref<8x128xf32, #tpu.memory_space<vmem>>, vector<8x128xf32>,
      %cst_231 = arith.constant 0.000000e+00 : f32
      %611 = vector.broadcast %cst_231 : f32 to vector<8x128xf32>
      %c0_232 = arith.constant 0 : index
      %c0_233 = arith.constant 0 : index
      %612 = vector.load %arg10[%c0_232, %c0_233] : memref<8x128xf32, #tpu.memory_space<vmem>>, vector<8x128xf32>
      tpu.vector_store %arg10[%c0_232, %c0_233], %611 {strides = array<i32>} : memref<8x128xf32, #tpu.memory_space<vmem>>, vector<8x128xf32>,
      %cst_234 = arith.constant 0.000000e+00 : f32
      %613 = vector.broadcast %cst_234 : f32 to vector<8x128xf32>
      %c0_235 = arith.constant 0 : index
      %c0_236 = arith.constant 0 : index
      %614 = vector.load %arg11[%c0_235, %c0_236] : memref<8x128xf32, #tpu.memory_space<vmem>>, vector<8x128xf32>
      tpu.vector_store %arg11[%c0_235, %c0_236], %613 {strides = array<i32>} : memref<8x128xf32, #tpu.memory_space<vmem>>, vector<8x128xf32>,
      %cst_237 = arith.constant 0.000000e+00 : f32
      %615 = vector.broadcast %cst_237 : f32 to vector<8x128xf32>
      %c0_238 = arith.constant 0 : index
      %c0_239 = arith.constant 0 : index
      %616 = vector.load %arg12[%c0_238, %c0_239] : memref<8x128xf32, #tpu.memory_space<vmem>>, vector<8x128xf32>
      tpu.vector_store %arg12[%c0_238, %c0_239], %615 {strides = array<i32>} : memref<8x128xf32, #tpu.memory_space<vmem>>, vector<8x128xf32>,
    } else {
    }
    %c0 = arith.constant 0 : index
    %c0_1 = arith.constant 0 : index
    %3 = vector.load %arg5[%c0, %c0_1] : memref<1x512xf32, #tpu.memory_space<vmem>>, vector<1x512xf32>
    %4 = vector.shape_cast %3 : vector<1x512xf32> to vector<1x512xf32>
    %5 = vector.broadcast %4 : vector<1x512xf32> to vector<8x512xf32>
    %c0_2 = arith.constant 0 : index
    %c0_3 = arith.constant 0 : index
    %6 = vector.load %arg9[%c0_2, %c0_3] : memref<8x128xf32, #tpu.memory_space<vmem>>, vector<8x128xf32>
    %c0_4 = arith.constant 0 : index
    %c0_5 = arith.constant 0 : index
    %7 = vector.load %arg10[%c0_4, %c0_5] : memref<8x128xf32, #tpu.memory_space<vmem>>, vector<8x128xf32>
    %c0_6 = arith.constant 0 : index
    %c0_7 = arith.constant 0 : index
    %8 = vector.load %arg11[%c0_6, %c0_7] : memref<8x128xf32, #tpu.memory_space<vmem>>, vector<8x128xf32>
    %c0_8 = arith.constant 0 : index
    %c0_9 = arith.constant 0 : index
    %9 = vector.load %arg12[%c0_8, %c0_9] : memref<8x128xf32, #tpu.memory_space<vmem>>, vector<8x128xf32>
    %c0_i32_10 = arith.constant 0 : i32
    %10 = arith.index_cast %c0_i32_10 : i32 to index
    %c0_11 = arith.constant 0 : index
    %c0_12 = arith.constant 0 : index
    %11 = vector.load %arg2[%10, %c0_11, %c0_12] : memref<8x8x512xf32, #tpu.memory_space<vmem>>, vector<1x8x512xf32>
    %12 = vector.shape_cast %11 : vector<1x8x512xf32> to vector<8x512xf32>
    %13 = arith.truncf %6 : vector<8x128xf32> to vector<8x128xbf16>
    %c0_13 = arith.constant 0 : index
    %c0_14 = arith.constant 0 : index
    %14 = vector.load %arg3[%c0_13, %c0_14] : memref<128x512xbf16, #tpu.memory_space<vmem>>, vector<128x512xbf16>
    %cst = arith.constant dense<0.000000e+00> : vector<8x512xf32>
    %15 = tpu.matmul %13, %14, %cst {dimension_numbers = #tpu.dot_dimension_numbers<[1], [0], [0], [1], [0, 0, 1, 1], [], []>} : vector<8x128xbf16>, vector<128x512xbf16>, vector<8x512xf32> -> vector<8x512xf32>
    %16 = arith.addf %12, %15 : vector<8x512xf32>
    %17 = vector.extract_strided_slice %16 {offsets = [0, 0], sizes = [8, 128], strides = [1, 1]} : vector<8x512xf32> to vector<8x128xf32>
    %cst_15 = arith.constant 5.000000e-01 : f32
    %18 = vector.broadcast %cst_15 : f32 to vector<8x128xf32>
    %19 = arith.mulf %18, %17 : vector<8x128xf32>
    %20 = math.tanh %19 : vector<8x128xf32>
    %cst_16 = arith.constant 5.000000e-01 : f32
    %21 = vector.broadcast %cst_16 : f32 to vector<8x128xf32>
    %22 = arith.mulf %21, %20 : vector<8x128xf32>
    %cst_17 = arith.constant 5.000000e-01 : f32
    %23 = vector.broadcast %cst_17 : f32 to vector<8x128xf32>
    %24 = arith.addf %22, %23 : vector<8x128xf32>
    %25 = vector.extract_strided_slice %16 {offsets = [0, 128], sizes = [8, 128], strides = [1, 1]} : vector<8x512xf32> to vector<8x128xf32>
    %cst_18 = arith.constant 5.000000e-01 : f32
    %26 = vector.broadcast %cst_18 : f32 to vector<8x128xf32>
    %27 = arith.mulf %26, %25 : vector<8x128xf32>
    %28 = math.tanh %27 : vector<8x128xf32>
    %cst_19 = arith.constant 5.000000e-01 : f32
    %29 = vector.broadcast %cst_19 : f32 to vector<8x128xf32>
    %30 = arith.mulf %29, %28 : vector<8x128xf32>
    %cst_20 = arith.constant 5.000000e-01 : f32
    %31 = vector.broadcast %cst_20 : f32 to vector<8x128xf32>
    %32 = arith.addf %30, %31 : vector<8x128xf32>
    %33 = vector.extract_strided_slice %16 {offsets = [0, 256], sizes = [8, 128], strides = [1, 1]} : vector<8x512xf32> to vector<8x128xf32>
    %34 = math.tanh %33 : vector<8x128xf32>
    %35 = vector.extract_strided_slice %16 {offsets = [0, 384], sizes = [8, 128], strides = [1, 1]} : vector<8x512xf32> to vector<8x128xf32>
    %cst_21 = arith.constant 5.000000e-01 : f32
    %36 = vector.broadcast %cst_21 : f32 to vector<8x128xf32>
    %37 = arith.mulf %36, %35 : vector<8x128xf32>
    %38 = math.tanh %37 : vector<8x128xf32>
    %cst_22 = arith.constant 5.000000e-01 : f32
    %39 = vector.broadcast %cst_22 : f32 to vector<8x128xf32>
    %40 = arith.mulf %39, %38 : vector<8x128xf32>
    %cst_23 = arith.constant 5.000000e-01 : f32
    %41 = vector.broadcast %cst_23 : f32 to vector<8x128xf32>
    %42 = arith.addf %40, %41 : vector<8x128xf32>
    %43 = arith.mulf %32, %7 : vector<8x128xf32>
    %44 = arith.mulf %24, %34 : vector<8x128xf32>
    %45 = arith.addf %43, %44 : vector<8x128xf32>
    %46 = math.tanh %45 : vector<8x128xf32>
    %47 = arith.mulf %42, %46 : vector<8x128xf32>
    %48 = tpu.concatenate %47, %8 in 1 : vector<8x128xf32>, vector<8x128xf32> -> vector<8x256xf32>
    %49 = arith.truncf %48 : vector<8x256xf32> to vector<8x256xbf16>
    %c0_24 = arith.constant 0 : index
    %c0_25 = arith.constant 0 : index
    %50 = vector.load %arg4[%c0_24, %c0_25] : memref<256x512xbf16, #tpu.memory_space<vmem>>, vector<256x512xbf16>
    %cst_26 = arith.constant dense<0.000000e+00> : vector<8x512xf32>
    %51 = tpu.matmul %49, %50, %cst_26 {dimension_numbers = #tpu.dot_dimension_numbers<[1], [0], [0], [1], [0, 0, 1, 1], [], []>} : vector<8x256xbf16>, vector<256x512xbf16>, vector<8x512xf32> -> vector<8x512xf32>
    %52 = arith.addf %51, %5 : vector<8x512xf32>
    %53 = vector.extract_strided_slice %52 {offsets = [0, 0], sizes = [8, 128], strides = [1, 1]} : vector<8x512xf32> to vector<8x128xf32>
    %cst_27 = arith.constant 5.000000e-01 : f32
    %54 = vector.broadcast %cst_27 : f32 to vector<8x128xf32>
    %55 = arith.mulf %54, %53 : vector<8x128xf32>
    %56 = math.tanh %55 : vector<8x128xf32>
    %cst_28 = arith.constant 5.000000e-01 : f32
    %57 = vector.broadcast %cst_28 : f32 to vector<8x128xf32>
    %58 = arith.mulf %57, %56 : vector<8x128xf32>
    %cst_29 = arith.constant 5.000000e-01 : f32
    %59 = vector.broadcast %cst_29 : f32 to vector<8x128xf32>
    %60 = arith.addf %58, %59 : vector<8x128xf32>
    %61 = vector.extract_strided_slice %52 {offsets = [0, 128], sizes = [8, 128], strides = [1, 1]} : vector<8x512xf32> to vector<8x128xf32>
    %cst_30 = arith.constant 5.000000e-01 : f32
    %62 = vector.broadcast %cst_30 : f32 to vector<8x128xf32>
    %63 = arith.mulf %62, %61 : vector<8x128xf32>
    %64 = math.tanh %63 : vector<8x128xf32>
    %cst_31 = arith.constant 5.000000e-01 : f32
    %65 = vector.broadcast %cst_31 : f32 to vector<8x128xf32>
    %66 = arith.mulf %65, %64 : vector<8x128xf32>
    %cst_32 = arith.constant 5.000000e-01 : f32
    %67 = vector.broadcast %cst_32 : f32 to vector<8x128xf32>
    %68 = arith.addf %66, %67 : vector<8x128xf32>
    %69 = vector.extract_strided_slice %52 {offsets = [0, 256], sizes = [8, 128], strides = [1, 1]} : vector<8x512xf32> to vector<8x128xf32>
    %70 = math.tanh %69 : vector<8x128xf32>
    %71 = vector.extract_strided_slice %52 {offsets = [0, 384], sizes = [8, 128], strides = [1, 1]} : vector<8x512xf32> to vector<8x128xf32>
    %cst_33 = arith.constant 5.000000e-01 : f32
    %72 = vector.broadcast %cst_33 : f32 to vector<8x128xf32>
    %73 = arith.mulf %72, %71 : vector<8x128xf32>
    %74 = math.tanh %73 : vector<8x128xf32>
    %cst_34 = arith.constant 5.000000e-01 : f32
    %75 = vector.broadcast %cst_34 : f32 to vector<8x128xf32>
    %76 = arith.mulf %75, %74 : vector<8x128xf32>
    %cst_35 = arith.constant 5.000000e-01 : f32
    %77 = vector.broadcast %cst_35 : f32 to vector<8x128xf32>
    %78 = arith.addf %76, %77 : vector<8x128xf32>
    %79 = arith.mulf %68, %9 : vector<8x128xf32>
    %80 = arith.mulf %60, %70 : vector<8x128xf32>
    %81 = arith.addf %79, %80 : vector<8x128xf32>
    %82 = math.tanh %81 : vector<8x128xf32>
    %83 = arith.mulf %78, %82 : vector<8x128xf32>
    %c1_i32 = arith.constant 1 : i32
    %84 = arith.index_cast %c1_i32 : i32 to index
    %c0_36 = arith.constant 0 : index
    %c0_37 = arith.constant 0 : index
    %85 = vector.load %arg2[%84, %c0_36, %c0_37] : memref<8x8x512xf32, #tpu.memory_space<vmem>>, vector<1x8x512xf32>
    %86 = vector.shape_cast %85 : vector<1x8x512xf32> to vector<8x512xf32>
    %87 = arith.truncf %47 : vector<8x128xf32> to vector<8x128xbf16>
    %c0_38 = arith.constant 0 : index
    %c0_39 = arith.constant 0 : index
    %88 = vector.load %arg3[%c0_38, %c0_39] : memref<128x512xbf16, #tpu.memory_space<vmem>>, vector<128x512xbf16>
    %cst_40 = arith.constant dense<0.000000e+00> : vector<8x512xf32>
    %89 = tpu.matmul %87, %88, %cst_40 {dimension_numbers = #tpu.dot_dimension_numbers<[1], [0], [0], [1], [0, 0, 1, 1], [], []>} : vector<8x128xbf16>, vector<128x512xbf16>, vector<8x512xf32> -> vector<8x512xf32>
    %90 = arith.addf %86, %89 : vector<8x512xf32>
    %91 = vector.extract_strided_slice %90 {offsets = [0, 0], sizes = [8, 128], strides = [1, 1]} : vector<8x512xf32> to vector<8x128xf32>
    %cst_41 = arith.constant 5.000000e-01 : f32
    %92 = vector.broadcast %cst_41 : f32 to vector<8x128xf32>
    %93 = arith.mulf %92, %91 : vector<8x128xf32>
    %94 = math.tanh %93 : vector<8x128xf32>
    %cst_42 = arith.constant 5.000000e-01 : f32
    %95 = vector.broadcast %cst_42 : f32 to vector<8x128xf32>
    %96 = arith.mulf %95, %94 : vector<8x128xf32>
    %cst_43 = arith.constant 5.000000e-01 : f32
    %97 = vector.broadcast %cst_43 : f32 to vector<8x128xf32>
    %98 = arith.addf %96, %97 : vector<8x128xf32>
    %99 = vector.extract_strided_slice %90 {offsets = [0, 128], sizes = [8, 128], strides = [1, 1]} : vector<8x512xf32> to vector<8x128xf32>
    %cst_44 = arith.constant 5.000000e-01 : f32
    %100 = vector.broadcast %cst_44 : f32 to vector<8x128xf32>
    %101 = arith.mulf %100, %99 : vector<8x128xf32>
    %102 = math.tanh %101 : vector<8x128xf32>
    %cst_45 = arith.constant 5.000000e-01 : f32
    %103 = vector.broadcast %cst_45 : f32 to vector<8x128xf32>
    %104 = arith.mulf %103, %102 : vector<8x128xf32>
    %cst_46 = arith.constant 5.000000e-01 : f32
    %105 = vector.broadcast %cst_46 : f32 to vector<8x128xf32>
    %106 = arith.addf %104, %105 : vector<8x128xf32>
    %107 = vector.extract_strided_slice %90 {offsets = [0, 256], sizes = [8, 128], strides = [1, 1]} : vector<8x512xf32> to vector<8x128xf32>
    %108 = math.tanh %107 : vector<8x128xf32>
    %109 = vector.extract_strided_slice %90 {offsets = [0, 384], sizes = [8, 128], strides = [1, 1]} : vector<8x512xf32> to vector<8x128xf32>
    %cst_47 = arith.constant 5.000000e-01 : f32
    %110 = vector.broadcast %cst_47 : f32 to vector<8x128xf32>
    %111 = arith.mulf %110, %109 : vector<8x128xf32>
    %112 = math.tanh %111 : vector<8x128xf32>
    %cst_48 = arith.constant 5.000000e-01 : f32
    %113 = vector.broadcast %cst_48 : f32 to vector<8x128xf32>
    %114 = arith.mulf %113, %112 : vector<8x128xf32>
    %cst_49 = arith.constant 5.000000e-01 : f32
    %115 = vector.broadcast %cst_49 : f32 to vector<8x128xf32>
    %116 = arith.addf %114, %115 : vector<8x128xf32>
    %117 = arith.mulf %106, %45 : vector<8x128xf32>
    %118 = arith.mulf %98, %108 : vector<8x128xf32>
    %119 = arith.addf %117, %118 : vector<8x128xf32>
    %120 = math.tanh %119 : vector<8x128xf32>
    %121 = arith.mulf %116, %120 : vector<8x128xf32>
    %122 = tpu.concatenate %121, %83 in 1 : vector<8x128xf32>, vector<8x128xf32> -> vector<8x256xf32>
    %123 = arith.truncf %122 : vector<8x256xf32> to vector<8x256xbf16>
    %c0_50 = arith.constant 0 : index
    %c0_51 = arith.constant 0 : index
    %124 = vector.load %arg4[%c0_50, %c0_51] : memref<256x512xbf16, #tpu.memory_space<vmem>>, vector<256x512xbf16>
    %cst_52 = arith.constant dense<0.000000e+00> : vector<8x512xf32>
    %125 = tpu.matmul %123, %124, %cst_52 {dimension_numbers = #tpu.dot_dimension_numbers<[1], [0], [0], [1], [0, 0, 1, 1], [], []>} : vector<8x256xbf16>, vector<256x512xbf16>, vector<8x512xf32> -> vector<8x512xf32>
    %126 = arith.addf %125, %5 : vector<8x512xf32>
    %127 = vector.extract_strided_slice %126 {offsets = [0, 0], sizes = [8, 128], strides = [1, 1]} : vector<8x512xf32> to vector<8x128xf32>
    %cst_53 = arith.constant 5.000000e-01 : f32
    %128 = vector.broadcast %cst_53 : f32 to vector<8x128xf32>
    %129 = arith.mulf %128, %127 : vector<8x128xf32>
    %130 = math.tanh %129 : vector<8x128xf32>
    %cst_54 = arith.constant 5.000000e-01 : f32
    %131 = vector.broadcast %cst_54 : f32 to vector<8x128xf32>
    %132 = arith.mulf %131, %130 : vector<8x128xf32>
    %cst_55 = arith.constant 5.000000e-01 : f32
    %133 = vector.broadcast %cst_55 : f32 to vector<8x128xf32>
    %134 = arith.addf %132, %133 : vector<8x128xf32>
    %135 = vector.extract_strided_slice %126 {offsets = [0, 128], sizes = [8, 128], strides = [1, 1]} : vector<8x512xf32> to vector<8x128xf32>
    %cst_56 = arith.constant 5.000000e-01 : f32
    %136 = vector.broadcast %cst_56 : f32 to vector<8x128xf32>
    %137 = arith.mulf %136, %135 : vector<8x128xf32>
    %138 = math.tanh %137 : vector<8x128xf32>
    %cst_57 = arith.constant 5.000000e-01 : f32
    %139 = vector.broadcast %cst_57 : f32 to vector<8x128xf32>
    %140 = arith.mulf %139, %138 : vector<8x128xf32>
    %cst_58 = arith.constant 5.000000e-01 : f32
    %141 = vector.broadcast %cst_58 : f32 to vector<8x128xf32>
    %142 = arith.addf %140, %141 : vector<8x128xf32>
    %143 = vector.extract_strided_slice %126 {offsets = [0, 256], sizes = [8, 128], strides = [1, 1]} : vector<8x512xf32> to vector<8x128xf32>
    %144 = math.tanh %143 : vector<8x128xf32>
    %145 = vector.extract_strided_slice %126 {offsets = [0, 384], sizes = [8, 128], strides = [1, 1]} : vector<8x512xf32> to vector<8x128xf32>
    %cst_59 = arith.constant 5.000000e-01 : f32
    %146 = vector.broadcast %cst_59 : f32 to vector<8x128xf32>
    %147 = arith.mulf %146, %145 : vector<8x128xf32>
    %148 = math.tanh %147 : vector<8x128xf32>
    %cst_60 = arith.constant 5.000000e-01 : f32
    %149 = vector.broadcast %cst_60 : f32 to vector<8x128xf32>
    %150 = arith.mulf %149, %148 : vector<8x128xf32>
    %cst_61 = arith.constant 5.000000e-01 : f32
    %151 = vector.broadcast %cst_61 : f32 to vector<8x128xf32>
    %152 = arith.addf %150, %151 : vector<8x128xf32>
    %153 = arith.mulf %142, %81 : vector<8x128xf32>
    %154 = arith.mulf %134, %144 : vector<8x128xf32>
    %155 = arith.addf %153, %154 : vector<8x128xf32>
    %156 = math.tanh %155 : vector<8x128xf32>
    %157 = arith.mulf %152, %156 : vector<8x128xf32>
    %c2_i32 = arith.constant 2 : i32
    %158 = arith.index_cast %c2_i32 : i32 to index
    %c0_62 = arith.constant 0 : index
    %c0_63 = arith.constant 0 : index
    %159 = vector.load %arg2[%158, %c0_62, %c0_63] : memref<8x8x512xf32, #tpu.memory_space<vmem>>, vector<1x8x512xf32>
    %160 = vector.shape_cast %159 : vector<1x8x512xf32> to vector<8x512xf32>
    %161 = arith.truncf %121 : vector<8x128xf32> to vector<8x128xbf16>
    %c0_64 = arith.constant 0 : index
    %c0_65 = arith.constant 0 : index
    %162 = vector.load %arg3[%c0_64, %c0_65] : memref<128x512xbf16, #tpu.memory_space<vmem>>, vector<128x512xbf16>
    %cst_66 = arith.constant dense<0.000000e+00> : vector<8x512xf32>
    %163 = tpu.matmul %161, %162, %cst_66 {dimension_numbers = #tpu.dot_dimension_numbers<[1], [0], [0], [1], [0, 0, 1, 1], [], []>} : vector<8x128xbf16>, vector<128x512xbf16>, vector<8x512xf32> -> vector<8x512xf32>
    %164 = arith.addf %160, %163 : vector<8x512xf32>
    %165 = vector.extract_strided_slice %164 {offsets = [0, 0], sizes = [8, 128], strides = [1, 1]} : vector<8x512xf32> to vector<8x128xf32>
    %cst_67 = arith.constant 5.000000e-01 : f32
    %166 = vector.broadcast %cst_67 : f32 to vector<8x128xf32>
    %167 = arith.mulf %166, %165 : vector<8x128xf32>
    %168 = math.tanh %167 : vector<8x128xf32>
    %cst_68 = arith.constant 5.000000e-01 : f32
    %169 = vector.broadcast %cst_68 : f32 to vector<8x128xf32>
    %170 = arith.mulf %169, %168 : vector<8x128xf32>
    %cst_69 = arith.constant 5.000000e-01 : f32
    %171 = vector.broadcast %cst_69 : f32 to vector<8x128xf32>
    %172 = arith.addf %170, %171 : vector<8x128xf32>
    %173 = vector.extract_strided_slice %164 {offsets = [0, 128], sizes = [8, 128], strides = [1, 1]} : vector<8x512xf32> to vector<8x128xf32>
    %cst_70 = arith.constant 5.000000e-01 : f32
    %174 = vector.broadcast %cst_70 : f32 to vector<8x128xf32>
    %175 = arith.mulf %174, %173 : vector<8x128xf32>
    %176 = math.tanh %175 : vector<8x128xf32>
    %cst_71 = arith.constant 5.000000e-01 : f32
    %177 = vector.broadcast %cst_71 : f32 to vector<8x128xf32>
    %178 = arith.mulf %177, %176 : vector<8x128xf32>
    %cst_72 = arith.constant 5.000000e-01 : f32
    %179 = vector.broadcast %cst_72 : f32 to vector<8x128xf32>
    %180 = arith.addf %178, %179 : vector<8x128xf32>
    %181 = vector.extract_strided_slice %164 {offsets = [0, 256], sizes = [8, 128], strides = [1, 1]} : vector<8x512xf32> to vector<8x128xf32>
    %182 = math.tanh %181 : vector<8x128xf32>
    %183 = vector.extract_strided_slice %164 {offsets = [0, 384], sizes = [8, 128], strides = [1, 1]} : vector<8x512xf32> to vector<8x128xf32>
    %cst_73 = arith.constant 5.000000e-01 : f32
    %184 = vector.broadcast %cst_73 : f32 to vector<8x128xf32>
    %185 = arith.mulf %184, %183 : vector<8x128xf32>
    %186 = math.tanh %185 : vector<8x128xf32>
    %cst_74 = arith.constant 5.000000e-01 : f32
    %187 = vector.broadcast %cst_74 : f32 to vector<8x128xf32>
    %188 = arith.mulf %187, %186 : vector<8x128xf32>
    %cst_75 = arith.constant 5.000000e-01 : f32
    %189 = vector.broadcast %cst_75 : f32 to vector<8x128xf32>
    %190 = arith.addf %188, %189 : vector<8x128xf32>
    %191 = arith.mulf %180, %119 : vector<8x128xf32>
    %192 = arith.mulf %172, %182 : vector<8x128xf32>
    %193 = arith.addf %191, %192 : vector<8x128xf32>
    %194 = math.tanh %193 : vector<8x128xf32>
    %195 = arith.mulf %190, %194 : vector<8x128xf32>
    %196 = tpu.concatenate %195, %157 in 1 : vector<8x128xf32>, vector<8x128xf32> -> vector<8x256xf32>
    %197 = arith.truncf %196 : vector<8x256xf32> to vector<8x256xbf16>
    %c0_76 = arith.constant 0 : index
    %c0_77 = arith.constant 0 : index
    %198 = vector.load %arg4[%c0_76, %c0_77] : memref<256x512xbf16, #tpu.memory_space<vmem>>, vector<256x512xbf16>
    %cst_78 = arith.constant dense<0.000000e+00> : vector<8x512xf32>
    %199 = tpu.matmul %197, %198, %cst_78 {dimension_numbers = #tpu.dot_dimension_numbers<[1], [0], [0], [1], [0, 0, 1, 1], [], []>} : vector<8x256xbf16>, vector<256x512xbf16>, vector<8x512xf32> -> vector<8x512xf32>
    %200 = arith.addf %199, %5 : vector<8x512xf32>
    %201 = vector.extract_strided_slice %200 {offsets = [0, 0], sizes = [8, 128], strides = [1, 1]} : vector<8x512xf32> to vector<8x128xf32>
    %cst_79 = arith.constant 5.000000e-01 : f32
    %202 = vector.broadcast %cst_79 : f32 to vector<8x128xf32>
    %203 = arith.mulf %202, %201 : vector<8x128xf32>
    %204 = math.tanh %203 : vector<8x128xf32>
    %cst_80 = arith.constant 5.000000e-01 : f32
    %205 = vector.broadcast %cst_80 : f32 to vector<8x128xf32>
    %206 = arith.mulf %205, %204 : vector<8x128xf32>
    %cst_81 = arith.constant 5.000000e-01 : f32
    %207 = vector.broadcast %cst_81 : f32 to vector<8x128xf32>
    %208 = arith.addf %206, %207 : vector<8x128xf32>
    %209 = vector.extract_strided_slice %200 {offsets = [0, 128], sizes = [8, 128], strides = [1, 1]} : vector<8x512xf32> to vector<8x128xf32>
    %cst_82 = arith.constant 5.000000e-01 : f32
    %210 = vector.broadcast %cst_82 : f32 to vector<8x128xf32>
    %211 = arith.mulf %210, %209 : vector<8x128xf32>
    %212 = math.tanh %211 : vector<8x128xf32>
    %cst_83 = arith.constant 5.000000e-01 : f32
    %213 = vector.broadcast %cst_83 : f32 to vector<8x128xf32>
    %214 = arith.mulf %213, %212 : vector<8x128xf32>
    %cst_84 = arith.constant 5.000000e-01 : f32
    %215 = vector.broadcast %cst_84 : f32 to vector<8x128xf32>
    %216 = arith.addf %214, %215 : vector<8x128xf32>
    %217 = vector.extract_strided_slice %200 {offsets = [0, 256], sizes = [8, 128], strides = [1, 1]} : vector<8x512xf32> to vector<8x128xf32>
    %218 = math.tanh %217 : vector<8x128xf32>
    %219 = vector.extract_strided_slice %200 {offsets = [0, 384], sizes = [8, 128], strides = [1, 1]} : vector<8x512xf32> to vector<8x128xf32>
    %cst_85 = arith.constant 5.000000e-01 : f32
    %220 = vector.broadcast %cst_85 : f32 to vector<8x128xf32>
    %221 = arith.mulf %220, %219 : vector<8x128xf32>
    %222 = math.tanh %221 : vector<8x128xf32>
    %cst_86 = arith.constant 5.000000e-01 : f32
    %223 = vector.broadcast %cst_86 : f32 to vector<8x128xf32>
    %224 = arith.mulf %223, %222 : vector<8x128xf32>
    %cst_87 = arith.constant 5.000000e-01 : f32
    %225 = vector.broadcast %cst_87 : f32 to vector<8x128xf32>
    %226 = arith.addf %224, %225 : vector<8x128xf32>
    %227 = arith.mulf %216, %155 : vector<8x128xf32>
    %228 = arith.mulf %208, %218 : vector<8x128xf32>
    %229 = arith.addf %227, %228 : vector<8x128xf32>
    %230 = math.tanh %229 : vector<8x128xf32>
    %231 = arith.mulf %226, %230 : vector<8x128xf32>
    %c3_i32 = arith.constant 3 : i32
    %232 = arith.index_cast %c3_i32 : i32 to index
    %c0_88 = arith.constant 0 : index
    %c0_89 = arith.constant 0 : index
    %233 = vector.load %arg2[%232, %c0_88, %c0_89] : memref<8x8x512xf32, #tpu.memory_space<vmem>>, vector<1x8x512xf32>
    %234 = vector.shape_cast %233 : vector<1x8x512xf32> to vector<8x512xf32>
    %235 = arith.truncf %195 : vector<8x128xf32> to vector<8x128xbf16>
    %c0_90 = arith.constant 0 : index
    %c0_91 = arith.constant 0 : index
    %236 = vector.load %arg3[%c0_90, %c0_91] : memref<128x512xbf16, #tpu.memory_space<vmem>>, vector<128x512xbf16>
    %cst_92 = arith.constant dense<0.000000e+00> : vector<8x512xf32>
    %237 = tpu.matmul %235, %236, %cst_92 {dimension_numbers = #tpu.dot_dimension_numbers<[1], [0], [0], [1], [0, 0, 1, 1], [], []>} : vector<8x128xbf16>, vector<128x512xbf16>, vector<8x512xf32> -> vector<8x512xf32>
    %238 = arith.addf %234, %237 : vector<8x512xf32>
    %239 = vector.extract_strided_slice %238 {offsets = [0, 0], sizes = [8, 128], strides = [1, 1]} : vector<8x512xf32> to vector<8x128xf32>
    %cst_93 = arith.constant 5.000000e-01 : f32
    %240 = vector.broadcast %cst_93 : f32 to vector<8x128xf32>
    %241 = arith.mulf %240, %239 : vector<8x128xf32>
    %242 = math.tanh %241 : vector<8x128xf32>
    %cst_94 = arith.constant 5.000000e-01 : f32
    %243 = vector.broadcast %cst_94 : f32 to vector<8x128xf32>
    %244 = arith.mulf %243, %242 : vector<8x128xf32>
    %cst_95 = arith.constant 5.000000e-01 : f32
    %245 = vector.broadcast %cst_95 : f32 to vector<8x128xf32>
    %246 = arith.addf %244, %245 : vector<8x128xf32>
    %247 = vector.extract_strided_slice %238 {offsets = [0, 128], sizes = [8, 128], strides = [1, 1]} : vector<8x512xf32> to vector<8x128xf32>
    %cst_96 = arith.constant 5.000000e-01 : f32
    %248 = vector.broadcast %cst_96 : f32 to vector<8x128xf32>
    %249 = arith.mulf %248, %247 : vector<8x128xf32>
    %250 = math.tanh %249 : vector<8x128xf32>
    %cst_97 = arith.constant 5.000000e-01 : f32
    %251 = vector.broadcast %cst_97 : f32 to vector<8x128xf32>
    %252 = arith.mulf %251, %250 : vector<8x128xf32>
    %cst_98 = arith.constant 5.000000e-01 : f32
    %253 = vector.broadcast %cst_98 : f32 to vector<8x128xf32>
    %254 = arith.addf %252, %253 : vector<8x128xf32>
    %255 = vector.extract_strided_slice %238 {offsets = [0, 256], sizes = [8, 128], strides = [1, 1]} : vector<8x512xf32> to vector<8x128xf32>
    %256 = math.tanh %255 : vector<8x128xf32>
    %257 = vector.extract_strided_slice %238 {offsets = [0, 384], sizes = [8, 128], strides = [1, 1]} : vector<8x512xf32> to vector<8x128xf32>
    %cst_99 = arith.constant 5.000000e-01 : f32
    %258 = vector.broadcast %cst_99 : f32 to vector<8x128xf32>
    %259 = arith.mulf %258, %257 : vector<8x128xf32>
    %260 = math.tanh %259 : vector<8x128xf32>
    %cst_100 = arith.constant 5.000000e-01 : f32
    %261 = vector.broadcast %cst_100 : f32 to vector<8x128xf32>
    %262 = arith.mulf %261, %260 : vector<8x128xf32>
    %cst_101 = arith.constant 5.000000e-01 : f32
    %263 = vector.broadcast %cst_101 : f32 to vector<8x128xf32>
    %264 = arith.addf %262, %263 : vector<8x128xf32>
    %265 = arith.mulf %254, %193 : vector<8x128xf32>
    %266 = arith.mulf %246, %256 : vector<8x128xf32>
    %267 = arith.addf %265, %266 : vector<8x128xf32>
    %268 = math.tanh %267 : vector<8x128xf32>
    %269 = arith.mulf %264, %268 : vector<8x128xf32>
    %270 = tpu.concatenate %269, %231 in 1 : vector<8x128xf32>, vector<8x128xf32> -> vector<8x256xf32>
    %271 = arith.truncf %270 : vector<8x256xf32> to vector<8x256xbf16>
    %c0_102 = arith.constant 0 : index
    %c0_103 = arith.constant 0 : index
    %272 = vector.load %arg4[%c0_102, %c0_103] : memref<256x512xbf16, #tpu.memory_space<vmem>>, vector<256x512xbf16>
    %cst_104 = arith.constant dense<0.000000e+00> : vector<8x512xf32>
    %273 = tpu.matmul %271, %272, %cst_104 {dimension_numbers = #tpu.dot_dimension_numbers<[1], [0], [0], [1], [0, 0, 1, 1], [], []>} : vector<8x256xbf16>, vector<256x512xbf16>, vector<8x512xf32> -> vector<8x512xf32>
    %274 = arith.addf %273, %5 : vector<8x512xf32>
    %275 = vector.extract_strided_slice %274 {offsets = [0, 0], sizes = [8, 128], strides = [1, 1]} : vector<8x512xf32> to vector<8x128xf32>
    %cst_105 = arith.constant 5.000000e-01 : f32
    %276 = vector.broadcast %cst_105 : f32 to vector<8x128xf32>
    %277 = arith.mulf %276, %275 : vector<8x128xf32>
    %278 = math.tanh %277 : vector<8x128xf32>
    %cst_106 = arith.constant 5.000000e-01 : f32
    %279 = vector.broadcast %cst_106 : f32 to vector<8x128xf32>
    %280 = arith.mulf %279, %278 : vector<8x128xf32>
    %cst_107 = arith.constant 5.000000e-01 : f32
    %281 = vector.broadcast %cst_107 : f32 to vector<8x128xf32>
    %282 = arith.addf %280, %281 : vector<8x128xf32>
    %283 = vector.extract_strided_slice %274 {offsets = [0, 128], sizes = [8, 128], strides = [1, 1]} : vector<8x512xf32> to vector<8x128xf32>
    %cst_108 = arith.constant 5.000000e-01 : f32
    %284 = vector.broadcast %cst_108 : f32 to vector<8x128xf32>
    %285 = arith.mulf %284, %283 : vector<8x128xf32>
    %286 = math.tanh %285 : vector<8x128xf32>
    %cst_109 = arith.constant 5.000000e-01 : f32
    %287 = vector.broadcast %cst_109 : f32 to vector<8x128xf32>
    %288 = arith.mulf %287, %286 : vector<8x128xf32>
    %cst_110 = arith.constant 5.000000e-01 : f32
    %289 = vector.broadcast %cst_110 : f32 to vector<8x128xf32>
    %290 = arith.addf %288, %289 : vector<8x128xf32>
    %291 = vector.extract_strided_slice %274 {offsets = [0, 256], sizes = [8, 128], strides = [1, 1]} : vector<8x512xf32> to vector<8x128xf32>
    %292 = math.tanh %291 : vector<8x128xf32>
    %293 = vector.extract_strided_slice %274 {offsets = [0, 384], sizes = [8, 128], strides = [1, 1]} : vector<8x512xf32> to vector<8x128xf32>
    %cst_111 = arith.constant 5.000000e-01 : f32
    %294 = vector.broadcast %cst_111 : f32 to vector<8x128xf32>
    %295 = arith.mulf %294, %293 : vector<8x128xf32>
    %296 = math.tanh %295 : vector<8x128xf32>
    %cst_112 = arith.constant 5.000000e-01 : f32
    %297 = vector.broadcast %cst_112 : f32 to vector<8x128xf32>
    %298 = arith.mulf %297, %296 : vector<8x128xf32>
    %cst_113 = arith.constant 5.000000e-01 : f32
    %299 = vector.broadcast %cst_113 : f32 to vector<8x128xf32>
    %300 = arith.addf %298, %299 : vector<8x128xf32>
    %301 = arith.mulf %290, %229 : vector<8x128xf32>
    %302 = arith.mulf %282, %292 : vector<8x128xf32>
    %303 = arith.addf %301, %302 : vector<8x128xf32>
    %304 = math.tanh %303 : vector<8x128xf32>
    %305 = arith.mulf %300, %304 : vector<8x128xf32>
    %c4_i32 = arith.constant 4 : i32
    %306 = arith.index_cast %c4_i32 : i32 to index
    %c0_114 = arith.constant 0 : index
    %c0_115 = arith.constant 0 : index
    %307 = vector.load %arg2[%306, %c0_114, %c0_115] : memref<8x8x512xf32, #tpu.memory_space<vmem>>, vector<1x8x512xf32>
    %308 = vector.shape_cast %307 : vector<1x8x512xf32> to vector<8x512xf32>
    %309 = arith.truncf %269 : vector<8x128xf32> to vector<8x128xbf16>
    %c0_116 = arith.constant 0 : index
    %c0_117 = arith.constant 0 : index
    %310 = vector.load %arg3[%c0_116, %c0_117] : memref<128x512xbf16, #tpu.memory_space<vmem>>, vector<128x512xbf16>
    %cst_118 = arith.constant dense<0.000000e+00> : vector<8x512xf32>
    %311 = tpu.matmul %309, %310, %cst_118 {dimension_numbers = #tpu.dot_dimension_numbers<[1], [0], [0], [1], [0, 0, 1, 1], [], []>} : vector<8x128xbf16>, vector<128x512xbf16>, vector<8x512xf32> -> vector<8x512xf32>
    %312 = arith.addf %308, %311 : vector<8x512xf32>
    %313 = vector.extract_strided_slice %312 {offsets = [0, 0], sizes = [8, 128], strides = [1, 1]} : vector<8x512xf32> to vector<8x128xf32>
    %cst_119 = arith.constant 5.000000e-01 : f32
    %314 = vector.broadcast %cst_119 : f32 to vector<8x128xf32>
    %315 = arith.mulf %314, %313 : vector<8x128xf32>
    %316 = math.tanh %315 : vector<8x128xf32>
    %cst_120 = arith.constant 5.000000e-01 : f32
    %317 = vector.broadcast %cst_120 : f32 to vector<8x128xf32>
    %318 = arith.mulf %317, %316 : vector<8x128xf32>
    %cst_121 = arith.constant 5.000000e-01 : f32
    %319 = vector.broadcast %cst_121 : f32 to vector<8x128xf32>
    %320 = arith.addf %318, %319 : vector<8x128xf32>
    %321 = vector.extract_strided_slice %312 {offsets = [0, 128], sizes = [8, 128], strides = [1, 1]} : vector<8x512xf32> to vector<8x128xf32>
    %cst_122 = arith.constant 5.000000e-01 : f32
    %322 = vector.broadcast %cst_122 : f32 to vector<8x128xf32>
    %323 = arith.mulf %322, %321 : vector<8x128xf32>
    %324 = math.tanh %323 : vector<8x128xf32>
    %cst_123 = arith.constant 5.000000e-01 : f32
    %325 = vector.broadcast %cst_123 : f32 to vector<8x128xf32>
    %326 = arith.mulf %325, %324 : vector<8x128xf32>
    %cst_124 = arith.constant 5.000000e-01 : f32
    %327 = vector.broadcast %cst_124 : f32 to vector<8x128xf32>
    %328 = arith.addf %326, %327 : vector<8x128xf32>
    %329 = vector.extract_strided_slice %312 {offsets = [0, 256], sizes = [8, 128], strides = [1, 1]} : vector<8x512xf32> to vector<8x128xf32>
    %330 = math.tanh %329 : vector<8x128xf32>
    %331 = vector.extract_strided_slice %312 {offsets = [0, 384], sizes = [8, 128], strides = [1, 1]} : vector<8x512xf32> to vector<8x128xf32>
    %cst_125 = arith.constant 5.000000e-01 : f32
    %332 = vector.broadcast %cst_125 : f32 to vector<8x128xf32>
    %333 = arith.mulf %332, %331 : vector<8x128xf32>
    %334 = math.tanh %333 : vector<8x128xf32>
    %cst_126 = arith.constant 5.000000e-01 : f32
    %335 = vector.broadcast %cst_126 : f32 to vector<8x128xf32>
    %336 = arith.mulf %335, %334 : vector<8x128xf32>
    %cst_127 = arith.constant 5.000000e-01 : f32
    %337 = vector.broadcast %cst_127 : f32 to vector<8x128xf32>
    %338 = arith.addf %336, %337 : vector<8x128xf32>
    %339 = arith.mulf %328, %267 : vector<8x128xf32>
    %340 = arith.mulf %320, %330 : vector<8x128xf32>
    %341 = arith.addf %339, %340 : vector<8x128xf32>
    %342 = math.tanh %341 : vector<8x128xf32>
    %343 = arith.mulf %338, %342 : vector<8x128xf32>
    %344 = tpu.concatenate %343, %305 in 1 : vector<8x128xf32>, vector<8x128xf32> -> vector<8x256xf32>
    %345 = arith.truncf %344 : vector<8x256xf32> to vector<8x256xbf16>
    %c0_128 = arith.constant 0 : index
    %c0_129 = arith.constant 0 : index
    %346 = vector.load %arg4[%c0_128, %c0_129] : memref<256x512xbf16, #tpu.memory_space<vmem>>, vector<256x512xbf16>
    %cst_130 = arith.constant dense<0.000000e+00> : vector<8x512xf32>
    %347 = tpu.matmul %345, %346, %cst_130 {dimension_numbers = #tpu.dot_dimension_numbers<[1], [0], [0], [1], [0, 0, 1, 1], [], []>} : vector<8x256xbf16>, vector<256x512xbf16>, vector<8x512xf32> -> vector<8x512xf32>
    %348 = arith.addf %347, %5 : vector<8x512xf32>
    %349 = vector.extract_strided_slice %348 {offsets = [0, 0], sizes = [8, 128], strides = [1, 1]} : vector<8x512xf32> to vector<8x128xf32>
    %cst_131 = arith.constant 5.000000e-01 : f32
    %350 = vector.broadcast %cst_131 : f32 to vector<8x128xf32>
    %351 = arith.mulf %350, %349 : vector<8x128xf32>
    %352 = math.tanh %351 : vector<8x128xf32>
    %cst_132 = arith.constant 5.000000e-01 : f32
    %353 = vector.broadcast %cst_132 : f32 to vector<8x128xf32>
    %354 = arith.mulf %353, %352 : vector<8x128xf32>
    %cst_133 = arith.constant 5.000000e-01 : f32
    %355 = vector.broadcast %cst_133 : f32 to vector<8x128xf32>
    %356 = arith.addf %354, %355 : vector<8x128xf32>
    %357 = vector.extract_strided_slice %348 {offsets = [0, 128], sizes = [8, 128], strides = [1, 1]} : vector<8x512xf32> to vector<8x128xf32>
    %cst_134 = arith.constant 5.000000e-01 : f32
    %358 = vector.broadcast %cst_134 : f32 to vector<8x128xf32>
    %359 = arith.mulf %358, %357 : vector<8x128xf32>
    %360 = math.tanh %359 : vector<8x128xf32>
    %cst_135 = arith.constant 5.000000e-01 : f32
    %361 = vector.broadcast %cst_135 : f32 to vector<8x128xf32>
    %362 = arith.mulf %361, %360 : vector<8x128xf32>
    %cst_136 = arith.constant 5.000000e-01 : f32
    %363 = vector.broadcast %cst_136 : f32 to vector<8x128xf32>
    %364 = arith.addf %362, %363 : vector<8x128xf32>
    %365 = vector.extract_strided_slice %348 {offsets = [0, 256], sizes = [8, 128], strides = [1, 1]} : vector<8x512xf32> to vector<8x128xf32>
    %366 = math.tanh %365 : vector<8x128xf32>
    %367 = vector.extract_strided_slice %348 {offsets = [0, 384], sizes = [8, 128], strides = [1, 1]} : vector<8x512xf32> to vector<8x128xf32>
    %cst_137 = arith.constant 5.000000e-01 : f32
    %368 = vector.broadcast %cst_137 : f32 to vector<8x128xf32>
    %369 = arith.mulf %368, %367 : vector<8x128xf32>
    %370 = math.tanh %369 : vector<8x128xf32>
    %cst_138 = arith.constant 5.000000e-01 : f32
    %371 = vector.broadcast %cst_138 : f32 to vector<8x128xf32>
    %372 = arith.mulf %371, %370 : vector<8x128xf32>
    %cst_139 = arith.constant 5.000000e-01 : f32
    %373 = vector.broadcast %cst_139 : f32 to vector<8x128xf32>
    %374 = arith.addf %372, %373 : vector<8x128xf32>
    %375 = arith.mulf %364, %303 : vector<8x128xf32>
    %376 = arith.mulf %356, %366 : vector<8x128xf32>
    %377 = arith.addf %375, %376 : vector<8x128xf32>
    %378 = math.tanh %377 : vector<8x128xf32>
    %379 = arith.mulf %374, %378 : vector<8x128xf32>
    %c5_i32 = arith.constant 5 : i32
    %380 = arith.index_cast %c5_i32 : i32 to index
    %c0_140 = arith.constant 0 : index
    %c0_141 = arith.constant 0 : index
    %381 = vector.load %arg2[%380, %c0_140, %c0_141] : memref<8x8x512xf32, #tpu.memory_space<vmem>>, vector<1x8x512xf32>
    %382 = vector.shape_cast %381 : vector<1x8x512xf32> to vector<8x512xf32>
    %383 = arith.truncf %343 : vector<8x128xf32> to vector<8x128xbf16>
    %c0_142 = arith.constant 0 : index
    %c0_143 = arith.constant 0 : index
    %384 = vector.load %arg3[%c0_142, %c0_143] : memref<128x512xbf16, #tpu.memory_space<vmem>>, vector<128x512xbf16>
    %cst_144 = arith.constant dense<0.000000e+00> : vector<8x512xf32>
    %385 = tpu.matmul %383, %384, %cst_144 {dimension_numbers = #tpu.dot_dimension_numbers<[1], [0], [0], [1], [0, 0, 1, 1], [], []>} : vector<8x128xbf16>, vector<128x512xbf16>, vector<8x512xf32> -> vector<8x512xf32>
    %386 = arith.addf %382, %385 : vector<8x512xf32>
    %387 = vector.extract_strided_slice %386 {offsets = [0, 0], sizes = [8, 128], strides = [1, 1]} : vector<8x512xf32> to vector<8x128xf32>
    %cst_145 = arith.constant 5.000000e-01 : f32
    %388 = vector.broadcast %cst_145 : f32 to vector<8x128xf32>
    %389 = arith.mulf %388, %387 : vector<8x128xf32>
    %390 = math.tanh %389 : vector<8x128xf32>
    %cst_146 = arith.constant 5.000000e-01 : f32
    %391 = vector.broadcast %cst_146 : f32 to vector<8x128xf32>
    %392 = arith.mulf %391, %390 : vector<8x128xf32>
    %cst_147 = arith.constant 5.000000e-01 : f32
    %393 = vector.broadcast %cst_147 : f32 to vector<8x128xf32>
    %394 = arith.addf %392, %393 : vector<8x128xf32>
    %395 = vector.extract_strided_slice %386 {offsets = [0, 128], sizes = [8, 128], strides = [1, 1]} : vector<8x512xf32> to vector<8x128xf32>
    %cst_148 = arith.constant 5.000000e-01 : f32
    %396 = vector.broadcast %cst_148 : f32 to vector<8x128xf32>
    %397 = arith.mulf %396, %395 : vector<8x128xf32>
    %398 = math.tanh %397 : vector<8x128xf32>
    %cst_149 = arith.constant 5.000000e-01 : f32
    %399 = vector.broadcast %cst_149 : f32 to vector<8x128xf32>
    %400 = arith.mulf %399, %398 : vector<8x128xf32>
    %cst_150 = arith.constant 5.000000e-01 : f32
    %401 = vector.broadcast %cst_150 : f32 to vector<8x128xf32>
    %402 = arith.addf %400, %401 : vector<8x128xf32>
    %403 = vector.extract_strided_slice %386 {offsets = [0, 256], sizes = [8, 128], strides = [1, 1]} : vector<8x512xf32> to vector<8x128xf32>
    %404 = math.tanh %403 : vector<8x128xf32>
    %405 = vector.extract_strided_slice %386 {offsets = [0, 384], sizes = [8, 128], strides = [1, 1]} : vector<8x512xf32> to vector<8x128xf32>
    %cst_151 = arith.constant 5.000000e-01 : f32
    %406 = vector.broadcast %cst_151 : f32 to vector<8x128xf32>
    %407 = arith.mulf %406, %405 : vector<8x128xf32>
    %408 = math.tanh %407 : vector<8x128xf32>
    %cst_152 = arith.constant 5.000000e-01 : f32
    %409 = vector.broadcast %cst_152 : f32 to vector<8x128xf32>
    %410 = arith.mulf %409, %408 : vector<8x128xf32>
    %cst_153 = arith.constant 5.000000e-01 : f32
    %411 = vector.broadcast %cst_153 : f32 to vector<8x128xf32>
    %412 = arith.addf %410, %411 : vector<8x128xf32>
    %413 = arith.mulf %402, %341 : vector<8x128xf32>
    %414 = arith.mulf %394, %404 : vector<8x128xf32>
    %415 = arith.addf %413, %414 : vector<8x128xf32>
    %416 = math.tanh %415 : vector<8x128xf32>
    %417 = arith.mulf %412, %416 : vector<8x128xf32>
    %418 = tpu.concatenate %417, %379 in 1 : vector<8x128xf32>, vector<8x128xf32> -> vector<8x256xf32>
    %419 = arith.truncf %418 : vector<8x256xf32> to vector<8x256xbf16>
    %c0_154 = arith.constant 0 : index
    %c0_155 = arith.constant 0 : index
    %420 = vector.load %arg4[%c0_154, %c0_155] : memref<256x512xbf16, #tpu.memory_space<vmem>>, vector<256x512xbf16>
    %cst_156 = arith.constant dense<0.000000e+00> : vector<8x512xf32>
    %421 = tpu.matmul %419, %420, %cst_156 {dimension_numbers = #tpu.dot_dimension_numbers<[1], [0], [0], [1], [0, 0, 1, 1], [], []>} : vector<8x256xbf16>, vector<256x512xbf16>, vector<8x512xf32> -> vector<8x512xf32>
    %422 = arith.addf %421, %5 : vector<8x512xf32>
    %423 = vector.extract_strided_slice %422 {offsets = [0, 0], sizes = [8, 128], strides = [1, 1]} : vector<8x512xf32> to vector<8x128xf32>
    %cst_157 = arith.constant 5.000000e-01 : f32
    %424 = vector.broadcast %cst_157 : f32 to vector<8x128xf32>
    %425 = arith.mulf %424, %423 : vector<8x128xf32>
    %426 = math.tanh %425 : vector<8x128xf32>
    %cst_158 = arith.constant 5.000000e-01 : f32
    %427 = vector.broadcast %cst_158 : f32 to vector<8x128xf32>
    %428 = arith.mulf %427, %426 : vector<8x128xf32>
    %cst_159 = arith.constant 5.000000e-01 : f32
    %429 = vector.broadcast %cst_159 : f32 to vector<8x128xf32>
    %430 = arith.addf %428, %429 : vector<8x128xf32>
    %431 = vector.extract_strided_slice %422 {offsets = [0, 128], sizes = [8, 128], strides = [1, 1]} : vector<8x512xf32> to vector<8x128xf32>
    %cst_160 = arith.constant 5.000000e-01 : f32
    %432 = vector.broadcast %cst_160 : f32 to vector<8x128xf32>
    %433 = arith.mulf %432, %431 : vector<8x128xf32>
    %434 = math.tanh %433 : vector<8x128xf32>
    %cst_161 = arith.constant 5.000000e-01 : f32
    %435 = vector.broadcast %cst_161 : f32 to vector<8x128xf32>
    %436 = arith.mulf %435, %434 : vector<8x128xf32>
    %cst_162 = arith.constant 5.000000e-01 : f32
    %437 = vector.broadcast %cst_162 : f32 to vector<8x128xf32>
    %438 = arith.addf %436, %437 : vector<8x128xf32>
    %439 = vector.extract_strided_slice %422 {offsets = [0, 256], sizes = [8, 128], strides = [1, 1]} : vector<8x512xf32> to vector<8x128xf32>
    %440 = math.tanh %439 : vector<8x128xf32>
    %441 = vector.extract_strided_slice %422 {offsets = [0, 384], sizes = [8, 128], strides = [1, 1]} : vector<8x512xf32> to vector<8x128xf32>
    %cst_163 = arith.constant 5.000000e-01 : f32
    %442 = vector.broadcast %cst_163 : f32 to vector<8x128xf32>
    %443 = arith.mulf %442, %441 : vector<8x128xf32>
    %444 = math.tanh %443 : vector<8x128xf32>
    %cst_164 = arith.constant 5.000000e-01 : f32
    %445 = vector.broadcast %cst_164 : f32 to vector<8x128xf32>
    %446 = arith.mulf %445, %444 : vector<8x128xf32>
    %cst_165 = arith.constant 5.000000e-01 : f32
    %447 = vector.broadcast %cst_165 : f32 to vector<8x128xf32>
    %448 = arith.addf %446, %447 : vector<8x128xf32>
    %449 = arith.mulf %438, %377 : vector<8x128xf32>
    %450 = arith.mulf %430, %440 : vector<8x128xf32>
    %451 = arith.addf %449, %450 : vector<8x128xf32>
    %452 = math.tanh %451 : vector<8x128xf32>
    %453 = arith.mulf %448, %452 : vector<8x128xf32>
    %c6_i32 = arith.constant 6 : i32
    %454 = arith.index_cast %c6_i32 : i32 to index
    %c0_166 = arith.constant 0 : index
    %c0_167 = arith.constant 0 : index
    %455 = vector.load %arg2[%454, %c0_166, %c0_167] : memref<8x8x512xf32, #tpu.memory_space<vmem>>, vector<1x8x512xf32>
    %456 = vector.shape_cast %455 : vector<1x8x512xf32> to vector<8x512xf32>
    %457 = arith.truncf %417 : vector<8x128xf32> to vector<8x128xbf16>
    %c0_168 = arith.constant 0 : index
    %c0_169 = arith.constant 0 : index
    %458 = vector.load %arg3[%c0_168, %c0_169] : memref<128x512xbf16, #tpu.memory_space<vmem>>, vector<128x512xbf16>
    %cst_170 = arith.constant dense<0.000000e+00> : vector<8x512xf32>
    %459 = tpu.matmul %457, %458, %cst_170 {dimension_numbers = #tpu.dot_dimension_numbers<[1], [0], [0], [1], [0, 0, 1, 1], [], []>} : vector<8x128xbf16>, vector<128x512xbf16>, vector<8x512xf32> -> vector<8x512xf32>
    %460 = arith.addf %456, %459 : vector<8x512xf32>
    %461 = vector.extract_strided_slice %460 {offsets = [0, 0], sizes = [8, 128], strides = [1, 1]} : vector<8x512xf32> to vector<8x128xf32>
    %cst_171 = arith.constant 5.000000e-01 : f32
    %462 = vector.broadcast %cst_171 : f32 to vector<8x128xf32>
    %463 = arith.mulf %462, %461 : vector<8x128xf32>
    %464 = math.tanh %463 : vector<8x128xf32>
    %cst_172 = arith.constant 5.000000e-01 : f32
    %465 = vector.broadcast %cst_172 : f32 to vector<8x128xf32>
    %466 = arith.mulf %465, %464 : vector<8x128xf32>
    %cst_173 = arith.constant 5.000000e-01 : f32
    %467 = vector.broadcast %cst_173 : f32 to vector<8x128xf32>
    %468 = arith.addf %466, %467 : vector<8x128xf32>
    %469 = vector.extract_strided_slice %460 {offsets = [0, 128], sizes = [8, 128], strides = [1, 1]} : vector<8x512xf32> to vector<8x128xf32>
    %cst_174 = arith.constant 5.000000e-01 : f32
    %470 = vector.broadcast %cst_174 : f32 to vector<8x128xf32>
    %471 = arith.mulf %470, %469 : vector<8x128xf32>
    %472 = math.tanh %471 : vector<8x128xf32>
    %cst_175 = arith.constant 5.000000e-01 : f32
    %473 = vector.broadcast %cst_175 : f32 to vector<8x128xf32>
    %474 = arith.mulf %473, %472 : vector<8x128xf32>
    %cst_176 = arith.constant 5.000000e-01 : f32
    %475 = vector.broadcast %cst_176 : f32 to vector<8x128xf32>
    %476 = arith.addf %474, %475 : vector<8x128xf32>
    %477 = vector.extract_strided_slice %460 {offsets = [0, 256], sizes = [8, 128], strides = [1, 1]} : vector<8x512xf32> to vector<8x128xf32>
    %478 = math.tanh %477 : vector<8x128xf32>
    %479 = vector.extract_strided_slice %460 {offsets = [0, 384], sizes = [8, 128], strides = [1, 1]} : vector<8x512xf32> to vector<8x128xf32>
    %cst_177 = arith.constant 5.000000e-01 : f32
    %480 = vector.broadcast %cst_177 : f32 to vector<8x128xf32>
    %481 = arith.mulf %480, %479 : vector<8x128xf32>
    %482 = math.tanh %481 : vector<8x128xf32>
    %cst_178 = arith.constant 5.000000e-01 : f32
    %483 = vector.broadcast %cst_178 : f32 to vector<8x128xf32>
    %484 = arith.mulf %483, %482 : vector<8x128xf32>
    %cst_179 = arith.constant 5.000000e-01 : f32
    %485 = vector.broadcast %cst_179 : f32 to vector<8x128xf32>
    %486 = arith.addf %484, %485 : vector<8x128xf32>
    %487 = arith.mulf %476, %415 : vector<8x128xf32>
    %488 = arith.mulf %468, %478 : vector<8x128xf32>
    %489 = arith.addf %487, %488 : vector<8x128xf32>
    %490 = math.tanh %489 : vector<8x128xf32>
    %491 = arith.mulf %486, %490 : vector<8x128xf32>
    %492 = tpu.concatenate %491, %453 in 1 : vector<8x128xf32>, vector<8x128xf32> -> vector<8x256xf32>
    %493 = arith.truncf %492 : vector<8x256xf32> to vector<8x256xbf16>
    %c0_180 = arith.constant 0 : index
    %c0_181 = arith.constant 0 : index
    %494 = vector.load %arg4[%c0_180, %c0_181] : memref<256x512xbf16, #tpu.memory_space<vmem>>, vector<256x512xbf16>
    %cst_182 = arith.constant dense<0.000000e+00> : vector<8x512xf32>
    %495 = tpu.matmul %493, %494, %cst_182 {dimension_numbers = #tpu.dot_dimension_numbers<[1], [0], [0], [1], [0, 0, 1, 1], [], []>} : vector<8x256xbf16>, vector<256x512xbf16>, vector<8x512xf32> -> vector<8x512xf32>
    %496 = arith.addf %495, %5 : vector<8x512xf32>
    %497 = vector.extract_strided_slice %496 {offsets = [0, 0], sizes = [8, 128], strides = [1, 1]} : vector<8x512xf32> to vector<8x128xf32>
    %cst_183 = arith.constant 5.000000e-01 : f32
    %498 = vector.broadcast %cst_183 : f32 to vector<8x128xf32>
    %499 = arith.mulf %498, %497 : vector<8x128xf32>
    %500 = math.tanh %499 : vector<8x128xf32>
    %cst_184 = arith.constant 5.000000e-01 : f32
    %501 = vector.broadcast %cst_184 : f32 to vector<8x128xf32>
    %502 = arith.mulf %501, %500 : vector<8x128xf32>
    %cst_185 = arith.constant 5.000000e-01 : f32
    %503 = vector.broadcast %cst_185 : f32 to vector<8x128xf32>
    %504 = arith.addf %502, %503 : vector<8x128xf32>
    %505 = vector.extract_strided_slice %496 {offsets = [0, 128], sizes = [8, 128], strides = [1, 1]} : vector<8x512xf32> to vector<8x128xf32>
    %cst_186 = arith.constant 5.000000e-01 : f32
    %506 = vector.broadcast %cst_186 : f32 to vector<8x128xf32>
    %507 = arith.mulf %506, %505 : vector<8x128xf32>
    %508 = math.tanh %507 : vector<8x128xf32>
    %cst_187 = arith.constant 5.000000e-01 : f32
    %509 = vector.broadcast %cst_187 : f32 to vector<8x128xf32>
    %510 = arith.mulf %509, %508 : vector<8x128xf32>
    %cst_188 = arith.constant 5.000000e-01 : f32
    %511 = vector.broadcast %cst_188 : f32 to vector<8x128xf32>
    %512 = arith.addf %510, %511 : vector<8x128xf32>
    %513 = vector.extract_strided_slice %496 {offsets = [0, 256], sizes = [8, 128], strides = [1, 1]} : vector<8x512xf32> to vector<8x128xf32>
    %514 = math.tanh %513 : vector<8x128xf32>
    %515 = vector.extract_strided_slice %496 {offsets = [0, 384], sizes = [8, 128], strides = [1, 1]} : vector<8x512xf32> to vector<8x128xf32>
    %cst_189 = arith.constant 5.000000e-01 : f32
    %516 = vector.broadcast %cst_189 : f32 to vector<8x128xf32>
    %517 = arith.mulf %516, %515 : vector<8x128xf32>
    %518 = math.tanh %517 : vector<8x128xf32>
    %cst_190 = arith.constant 5.000000e-01 : f32
    %519 = vector.broadcast %cst_190 : f32 to vector<8x128xf32>
    %520 = arith.mulf %519, %518 : vector<8x128xf32>
    %cst_191 = arith.constant 5.000000e-01 : f32
    %521 = vector.broadcast %cst_191 : f32 to vector<8x128xf32>
    %522 = arith.addf %520, %521 : vector<8x128xf32>
    %523 = arith.mulf %512, %451 : vector<8x128xf32>
    %524 = arith.mulf %504, %514 : vector<8x128xf32>
    %525 = arith.addf %523, %524 : vector<8x128xf32>
    %526 = math.tanh %525 : vector<8x128xf32>
    %527 = arith.mulf %522, %526 : vector<8x128xf32>
    %c7_i32 = arith.constant 7 : i32
    %528 = arith.index_cast %c7_i32 : i32 to index
    %c0_192 = arith.constant 0 : index
    %c0_193 = arith.constant 0 : index
    %529 = vector.load %arg2[%528, %c0_192, %c0_193] : memref<8x8x512xf32, #tpu.memory_space<vmem>>, vector<1x8x512xf32>
    %530 = vector.shape_cast %529 : vector<1x8x512xf32> to vector<8x512xf32>
    %531 = arith.truncf %491 : vector<8x128xf32> to vector<8x128xbf16>
    %c0_194 = arith.constant 0 : index
    %c0_195 = arith.constant 0 : index
    %532 = vector.load %arg3[%c0_194, %c0_195] : memref<128x512xbf16, #tpu.memory_space<vmem>>, vector<128x512xbf16>
    %cst_196 = arith.constant dense<0.000000e+00> : vector<8x512xf32>
    %533 = tpu.matmul %531, %532, %cst_196 {dimension_numbers = #tpu.dot_dimension_numbers<[1], [0], [0], [1], [0, 0, 1, 1], [], []>} : vector<8x128xbf16>, vector<128x512xbf16>, vector<8x512xf32> -> vector<8x512xf32>
    %534 = arith.addf %530, %533 : vector<8x512xf32>
    %535 = vector.extract_strided_slice %534 {offsets = [0, 0], sizes = [8, 128], strides = [1, 1]} : vector<8x512xf32> to vector<8x128xf32>
    %cst_197 = arith.constant 5.000000e-01 : f32
    %536 = vector.broadcast %cst_197 : f32 to vector<8x128xf32>
    %537 = arith.mulf %536, %535 : vector<8x128xf32>
    %538 = math.tanh %537 : vector<8x128xf32>
    %cst_198 = arith.constant 5.000000e-01 : f32
    %539 = vector.broadcast %cst_198 : f32 to vector<8x128xf32>
    %540 = arith.mulf %539, %538 : vector<8x128xf32>
    %cst_199 = arith.constant 5.000000e-01 : f32
    %541 = vector.broadcast %cst_199 : f32 to vector<8x128xf32>
    %542 = arith.addf %540, %541 : vector<8x128xf32>
    %543 = vector.extract_strided_slice %534 {offsets = [0, 128], sizes = [8, 128], strides = [1, 1]} : vector<8x512xf32> to vector<8x128xf32>
    %cst_200 = arith.constant 5.000000e-01 : f32
    %544 = vector.broadcast %cst_200 : f32 to vector<8x128xf32>
    %545 = arith.mulf %544, %543 : vector<8x128xf32>
    %546 = math.tanh %545 : vector<8x128xf32>
    %cst_201 = arith.constant 5.000000e-01 : f32
    %547 = vector.broadcast %cst_201 : f32 to vector<8x128xf32>
    %548 = arith.mulf %547, %546 : vector<8x128xf32>
    %cst_202 = arith.constant 5.000000e-01 : f32
    %549 = vector.broadcast %cst_202 : f32 to vector<8x128xf32>
    %550 = arith.addf %548, %549 : vector<8x128xf32>
    %551 = vector.extract_strided_slice %534 {offsets = [0, 256], sizes = [8, 128], strides = [1, 1]} : vector<8x512xf32> to vector<8x128xf32>
    %552 = math.tanh %551 : vector<8x128xf32>
    %553 = vector.extract_strided_slice %534 {offsets = [0, 384], sizes = [8, 128], strides = [1, 1]} : vector<8x512xf32> to vector<8x128xf32>
    %cst_203 = arith.constant 5.000000e-01 : f32
    %554 = vector.broadcast %cst_203 : f32 to vector<8x128xf32>
    %555 = arith.mulf %554, %553 : vector<8x128xf32>
    %556 = math.tanh %555 : vector<8x128xf32>
    %cst_204 = arith.constant 5.000000e-01 : f32
    %557 = vector.broadcast %cst_204 : f32 to vector<8x128xf32>
    %558 = arith.mulf %557, %556 : vector<8x128xf32>
    %cst_205 = arith.constant 5.000000e-01 : f32
    %559 = vector.broadcast %cst_205 : f32 to vector<8x128xf32>
    %560 = arith.addf %558, %559 : vector<8x128xf32>
    %561 = arith.mulf %550, %489 : vector<8x128xf32>
    %562 = arith.mulf %542, %552 : vector<8x128xf32>
    %563 = arith.addf %561, %562 : vector<8x128xf32>
    %564 = math.tanh %563 : vector<8x128xf32>
    %565 = arith.mulf %560, %564 : vector<8x128xf32>
    %566 = tpu.concatenate %565, %527 in 1 : vector<8x128xf32>, vector<8x128xf32> -> vector<8x256xf32>
    %567 = arith.truncf %566 : vector<8x256xf32> to vector<8x256xbf16>
    %c0_206 = arith.constant 0 : index
    %c0_207 = arith.constant 0 : index
    %568 = vector.load %arg4[%c0_206, %c0_207] : memref<256x512xbf16, #tpu.memory_space<vmem>>, vector<256x512xbf16>
    %cst_208 = arith.constant dense<0.000000e+00> : vector<8x512xf32>
    %569 = tpu.matmul %567, %568, %cst_208 {dimension_numbers = #tpu.dot_dimension_numbers<[1], [0], [0], [1], [0, 0, 1, 1], [], []>} : vector<8x256xbf16>, vector<256x512xbf16>, vector<8x512xf32> -> vector<8x512xf32>
    %570 = arith.addf %569, %5 : vector<8x512xf32>
    %571 = vector.extract_strided_slice %570 {offsets = [0, 0], sizes = [8, 128], strides = [1, 1]} : vector<8x512xf32> to vector<8x128xf32>
    %cst_209 = arith.constant 5.000000e-01 : f32
    %572 = vector.broadcast %cst_209 : f32 to vector<8x128xf32>
    %573 = arith.mulf %572, %571 : vector<8x128xf32>
    %574 = math.tanh %573 : vector<8x128xf32>
    %cst_210 = arith.constant 5.000000e-01 : f32
    %575 = vector.broadcast %cst_210 : f32 to vector<8x128xf32>
    %576 = arith.mulf %575, %574 : vector<8x128xf32>
    %cst_211 = arith.constant 5.000000e-01 : f32
    %577 = vector.broadcast %cst_211 : f32 to vector<8x128xf32>
    %578 = arith.addf %576, %577 : vector<8x128xf32>
    %579 = vector.extract_strided_slice %570 {offsets = [0, 128], sizes = [8, 128], strides = [1, 1]} : vector<8x512xf32> to vector<8x128xf32>
    %cst_212 = arith.constant 5.000000e-01 : f32
    %580 = vector.broadcast %cst_212 : f32 to vector<8x128xf32>
    %581 = arith.mulf %580, %579 : vector<8x128xf32>
    %582 = math.tanh %581 : vector<8x128xf32>
    %cst_213 = arith.constant 5.000000e-01 : f32
    %583 = vector.broadcast %cst_213 : f32 to vector<8x128xf32>
    %584 = arith.mulf %583, %582 : vector<8x128xf32>
    %cst_214 = arith.constant 5.000000e-01 : f32
    %585 = vector.broadcast %cst_214 : f32 to vector<8x128xf32>
    %586 = arith.addf %584, %585 : vector<8x128xf32>
    %587 = vector.extract_strided_slice %570 {offsets = [0, 256], sizes = [8, 128], strides = [1, 1]} : vector<8x512xf32> to vector<8x128xf32>
    %588 = math.tanh %587 : vector<8x128xf32>
    %589 = vector.extract_strided_slice %570 {offsets = [0, 384], sizes = [8, 128], strides = [1, 1]} : vector<8x512xf32> to vector<8x128xf32>
    %cst_215 = arith.constant 5.000000e-01 : f32
    %590 = vector.broadcast %cst_215 : f32 to vector<8x128xf32>
    %591 = arith.mulf %590, %589 : vector<8x128xf32>
    %592 = math.tanh %591 : vector<8x128xf32>
    %cst_216 = arith.constant 5.000000e-01 : f32
    %593 = vector.broadcast %cst_216 : f32 to vector<8x128xf32>
    %594 = arith.mulf %593, %592 : vector<8x128xf32>
    %cst_217 = arith.constant 5.000000e-01 : f32
    %595 = vector.broadcast %cst_217 : f32 to vector<8x128xf32>
    %596 = arith.addf %594, %595 : vector<8x128xf32>
    %597 = arith.mulf %586, %525 : vector<8x128xf32>
    %598 = arith.mulf %578, %588 : vector<8x128xf32>
    %599 = arith.addf %597, %598 : vector<8x128xf32>
    %600 = math.tanh %599 : vector<8x128xf32>
    %601 = arith.mulf %596, %600 : vector<8x128xf32>
    %c8_i32 = arith.constant 8 : i32
    %c0_218 = arith.constant 0 : index
    %c0_219 = arith.constant 0 : index
    %602 = vector.load %arg9[%c0_218, %c0_219] : memref<8x128xf32, #tpu.memory_space<vmem>>, vector<8x128xf32>
    tpu.vector_store %arg9[%c0_218, %c0_219], %565 {strides = array<i32>} : memref<8x128xf32, #tpu.memory_space<vmem>>, vector<8x128xf32>,
    %c0_220 = arith.constant 0 : index
    %c0_221 = arith.constant 0 : index
    %603 = vector.load %arg10[%c0_220, %c0_221] : memref<8x128xf32, #tpu.memory_space<vmem>>, vector<8x128xf32>
    tpu.vector_store %arg10[%c0_220, %c0_221], %563 {strides = array<i32>} : memref<8x128xf32, #tpu.memory_space<vmem>>, vector<8x128xf32>,
    %c0_222 = arith.constant 0 : index
    %c0_223 = arith.constant 0 : index
    %604 = vector.load %arg11[%c0_222, %c0_223] : memref<8x128xf32, #tpu.memory_space<vmem>>, vector<8x128xf32>
    tpu.vector_store %arg11[%c0_222, %c0_223], %601 {strides = array<i32>} : memref<8x128xf32, #tpu.memory_space<vmem>>, vector<8x128xf32>,
    %c0_224 = arith.constant 0 : index
    %c0_225 = arith.constant 0 : index
    %605 = vector.load %arg12[%c0_224, %c0_225] : memref<8x128xf32, #tpu.memory_space<vmem>>, vector<8x128xf32>
    tpu.vector_store %arg12[%c0_224, %c0_225], %599 {strides = array<i32>} : memref<8x128xf32, #tpu.memory_space<vmem>>, vector<8x128xf32>,
    %c0_i32_226 = arith.constant 0 : i32
    %606 = arith.cmpi eq, %arg1, %c0_i32_226 : i32
    %607 = arith.extui %606 : i1 to i32
    %c0_i32_227 = arith.constant 0 : i32
    %608 = arith.cmpi ne, %607, %c0_i32_227 : i32
    scf.if %608 {
      %c0_228 = arith.constant 0 : index
      %c0_229 = arith.constant 0 : index
      %609 = vector.load %arg6[%c0_228, %c0_229] : memref<128x128xf32, #tpu.memory_space<vmem>>, vector<128x128xf32>
      %cst_230 = arith.constant dense<0.000000e+00> : vector<8x128xf32>
      %610 = tpu.matmul %601, %609, %cst_230 {dimension_numbers = #tpu.dot_dimension_numbers<[1], [0], [0], [1], [0, 0, 1, 1], [], []>} : vector<8x128xf32>, vector<128x128xf32>, vector<8x128xf32> -> vector<8x128xf32>
      %c0_231 = arith.constant 0 : index
      %c0_232 = arith.constant 0 : index
      %611 = vector.load %arg7[%c0_231, %c0_232] : memref<1x128xf32, #tpu.memory_space<vmem>>, vector<1x128xf32>
      %612 = vector.broadcast %611 : vector<1x128xf32> to vector<8x128xf32>
      %613 = arith.addf %610, %612 : vector<8x128xf32>
      %c0_233 = arith.constant 0 : index
      %c0_234 = arith.constant 0 : index
      %614 = vector.load %arg8[%c0_233, %c0_234] : memref<8x128xf32, #tpu.memory_space<vmem>>, vector<8x128xf32>
      tpu.vector_store %arg8[%c0_233, %c0_234], %613 {strides = array<i32>} : memref<8x128xf32, #tpu.memory_space<vmem>>, vector<8x128xf32>,
    } else {
    }
    return
  }
  func.func @transform_0(%arg0: i32, %arg1: i32) -> (i32, i32, i32) {
    %c0_i32 = arith.constant 0 : i32
    %c0_i32_0 = arith.constant 0 : i32
    return %arg1, %arg0, %c0_i32 : i32, i32, i32
  }
  func.func @transform_1(%arg0: i32, %arg1: i32) -> (i32, i32) {
    %c0_i32 = arith.constant 0 : i32
    %c0_i32_0 = arith.constant 0 : i32
    %c0_i32_1 = arith.constant 0 : i32
    return %c0_i32, %c0_i32_0 : i32, i32
  }
  func.func @transform_2(%arg0: i32, %arg1: i32) -> (i32, i32) {
    %c0_i32 = arith.constant 0 : i32
    %c0_i32_0 = arith.constant 0 : i32
    %c0_i32_1 = arith.constant 0 : i32
    return %c0_i32, %c0_i32_0 : i32, i32
  }
  func.func @transform_3(%arg0: i32, %arg1: i32) -> (i32, i32) {
    %c0_i32 = arith.constant 0 : i32
    %c0_i32_0 = arith.constant 0 : i32
    %c0_i32_1 = arith.constant 0 : i32
    return %c0_i32, %c0_i32_0 : i32, i32
  }
  func.func @transform_4(%arg0: i32, %arg1: i32) -> (i32, i32) {
    %c0_i32 = arith.constant 0 : i32
    %c0_i32_0 = arith.constant 0 : i32
    %c0_i32_1 = arith.constant 0 : i32
    return %c0_i32, %c0_i32_0 : i32, i32
  }
  func.func @transform_5(%arg0: i32, %arg1: i32) -> (i32, i32) {
    %c0_i32 = arith.constant 0 : i32
    %c0_i32_0 = arith.constant 0 : i32
    %c0_i32_1 = arith.constant 0 : i32
    return %c0_i32, %c0_i32_0 : i32, i32
  }
  func.func @transform_6(%arg0: i32, %arg1: i32) -> (i32, i32) {
    %c0_i32 = arith.constant 0 : i32
    %c0_i32_0 = arith.constant 0 : i32
    return %arg0, %c0_i32 : i32, i32
  }
}

</mosaic_0001>

<llo_original>
// kernel: lstm_regressor_forward.1
$region0: #{lstm_regressor_forward.1}
  #allocation0 [shape = 'u32[]', space=smem, size = 0x4, offset = 0x4, fixed_abs, tag = 'smem constant byte address 0x4 - core index']
  #allocation1 [shape = 'u32[144,128]{1,0:T(1,128)}', space=vmem, size = 0x12000, scoped, tag = 'internal scratch']
  #allocation2 [shape = 'f32[8,128]{1,0:T(8,128)}', space=vmem, size = 0x1000, scoped, tag = 'scratch operand']
  #allocation3 [shape = 'f32[8,128]{1,0:T(8,128)}', space=vmem, size = 0x1000, scoped, tag = 'scratch operand']
  #allocation4 [shape = 'f32[8,128]{1,0:T(8,128)}', space=vmem, size = 0x1000, scoped, tag = 'scratch operand']
  #allocation5 [shape = 'f32[8,128]{1,0:T(8,128)}', space=vmem, size = 0x1000, scoped, tag = 'scratch operand']
  %s0 = inlined_call_operand.vmem [shape: f32[8,8,512], index: 0, kind: input, shape index: {}]
  %s1 = inlined_call_operand.vmem [shape: bf16[128,512], index: 1, kind: input, shape index: {}]
  %s2 = inlined_call_operand.vmem [shape: bf16[256,512], index: 2, kind: input, shape index: {}]
  %s3 = inlined_call_operand.vmem [shape: f32[1,512], index: 3, kind: input, shape index: {}]
  %s4 = inlined_call_operand.vmem [shape: f32[128,128], index: 4, kind: input, shape index: {}]
  %s5 = inlined_call_operand.vmem [shape: f32[1,128], index: 5, kind: input, shape index: {}]
  %s6 = inlined_call_operand.vmem [shape: f32[8,128], index: 6, kind: output, shape index: {}]
  %s7 = sld [smem:[#allocation0]]
  $region42: #{lstm_regressor_forward.1} parent=0
    _
  %s9 = ssub.s32 1, %s7
  %s10 = scalar_select 0, %s9, %s7
  // Predicated region
  $region2: #{lstm_regressor_forward.1} parent=0 // pred_check
    _
  $region3: #{lstm_regressor_forward.1} parent=0 // pred_check_branch
    %12 = sbr.rel (0) target = $region5
  $region4: #{lstm_regressor_forward.1} parent=0 // pred_region
    _
  $region5: #{lstm_regressor_forward.1} parent=0 // pred_fallthru
    _
  // Predicated region
  $region6: #{lstm_regressor_forward.1} parent=0 // pred_check
    _
  $region7: #{lstm_regressor_forward.1} parent=0 // pred_check_branch
    %14 = sbr.rel (0) target = $region9
  $region8: #{lstm_regressor_forward.1} parent=0 // pred_region
    _
  $region9: #{lstm_regressor_forward.1} parent=0 // pred_fallthru
    _
  // Predicated region
  $region10: #{lstm_regressor_forward.1} parent=0 // pred_check
    _
  $region11: #{lstm_regressor_forward.1} parent=0 // pred_check_branch
    %16 = sbr.rel (0) target = $region13
  $region12: #{lstm_regressor_forward.1} parent=0 // pred_region
    _
  $region13: #{lstm_regressor_forward.1} parent=0 // pred_fallthru
    _
  // Predicated region
  $region14: #{lstm_regressor_forward.1} parent=0 // pred_check
    _
  $region15: #{lstm_regressor_forward.1} parent=0 // pred_check_branch
    %18 = sbr.rel (0) target = $region17
  $region16: #{lstm_regressor_forward.1} parent=0 // pred_region
    _
  $region17: #{lstm_regressor_forward.1} parent=0 // pred_fallthru
    _
  // Predicated region
  $region18: #{lstm_regressor_forward.1} parent=0 // pred_check
    _
  $region19: #{lstm_regressor_forward.1} parent=0 // pred_check_branch
    %20 = sbr.rel (0) target = $region21
  $region20: #{lstm_regressor_forward.1} parent=0 // pred_region
    _
  $region21: #{lstm_regressor_forward.1} parent=0 // pred_fallthru
    _
  // Predicated region
  $region22: #{lstm_regressor_forward.1} parent=0 // pred_check
    _
  $region23: #{lstm_regressor_forward.1} parent=0 // pred_check_branch
    %22 = sbr.rel (0) target = $region25
  $region24: #{lstm_regressor_forward.1} parent=0 // pred_region
    _
  $region25: #{lstm_regressor_forward.1} parent=0 // pred_fallthru
    _
  %p24 = scmp.eq.s32.totalorder 0, 0
  // Predicated region
  $region26: #{lstm_regressor_forward.1} parent=0 // pred_check
    %p25 = pneg %p24
  $region27: #{lstm_regressor_forward.1} parent=0 // pred_check_branch
    %27 = sbr.rel (%p25) target = $region29
  $region28: #{lstm_regressor_forward.1} parent=0 // pred_region
    %28 = vst [vmem:[#allocation2] sm:$0xff] 0.0
    %29 = vst [vmem:[#allocation3] sm:$0xff] 0.0
    %30 = vst [vmem:[#allocation4] sm:$0xff] 0.0
    %31 = vst [vmem:[#allocation5] sm:$0xff] 0.0
  $region29: #{lstm_regressor_forward.1} parent=0 // pred_fallthru
    _
  %v32 = vld [vmem:[%s3] sm:$0xf]
  %v34 = vlaneseq
  %v35 = vshrl.u32 %v34, 7
  %v36 = vsub.s32 0, %v35
  %v37 = vrot.slane %v32, %v36
  %v38 = vlaneseq
  %v39 = vshrl.u32 %v38, 7
  %v40 = vsub.s32 1, %v39
  %v41 = vrot.slane %v32, %v40
  %v42 = vlaneseq
  %v43 = vshrl.u32 %v42, 7
  %v44 = vsub.s32 2, %v43
  %v45 = vrot.slane %v32, %v44
  %v46 = vlaneseq
  %v47 = vshrl.u32 %v46, 7
  %v48 = vsub.s32 3, %v47
  %v49 = vrot.slane %v32, %v48
  %v54 = vld [vmem:[#allocation2] sm:$0xff]
  %v55 = vld [vmem:[#allocation3] sm:$0xff]
  %v56 = vld [vmem:[#allocation4] sm:$0xff]
  %v57 = vld [vmem:[#allocation5] sm:$0xff]
  %v58 = vld [vmem:[%s0] sm:$0xff]
  %v59 = vld [vmem:[%s0 + $0x8] sm:$0xff]
  %v60 = vld [vmem:[%s0 + $0x10] sm:$0xff]
  %v61 = vld [vmem:[%s0 + $0x18] sm:$0xff]
  %v62 = vpack.c.bf16 %v54, %v54
  %v63 = vld [vmem:[%s1] sm:$0xff]
  %v64 = vld [vmem:[%s1 + $0x8] sm:$0xff]
  %v65 = vld [vmem:[%s1 + $0x10] sm:$0xff]
  %v66 = vld [vmem:[%s1 + $0x18] sm:$0xff]
  %v67 = vld [vmem:[%s1 + $0x20] sm:$0xff]
  %v68 = vld [vmem:[%s1 + $0x28] sm:$0xff]
  %v69 = vld [vmem:[%s1 + $0x30] sm:$0xff]
  %v70 = vld [vmem:[%s1 + $0x38] sm:$0xff]
  %v71 = vld [vmem:[%s1 + $0x40] sm:$0xff]
  %v72 = vld [vmem:[%s1 + $0x48] sm:$0xff]
  %v73 = vld [vmem:[%s1 + $0x50] sm:$0xff]
  %v74 = vld [vmem:[%s1 + $0x58] sm:$0xff]
  %v75 = vld [vmem:[%s1 + $0x60] sm:$0xff]
  %v76 = vld [vmem:[%s1 + $0x68] sm:$0xff]
  %v77 = vld [vmem:[%s1 + $0x70] sm:$0xff]
  %v78 = vld [vmem:[%s1 + $0x78] sm:$0xff]
  %v79 = vld [vmem:[%s1 + $0x80] sm:$0xff]
  %v80 = vld [vmem:[%s1 + $0x88] sm:$0xff]
  %v81 = vld [vmem:[%s1 + $0x90] sm:$0xff]
  %v82 = vld [vmem:[%s1 + $0x98] sm:$0xff]
  %v83 = vld [vmem:[%s1 + $0xa0] sm:$0xff]
  %v84 = vld [vmem:[%s1 + $0xa8] sm:$0xff]
  %v85 = vld [vmem:[%s1 + $0xb0] sm:$0xff]
  %v86 = vld [vmem:[%s1 + $0xb8] sm:$0xff]
  %v87 = vld [vmem:[%s1 + $0xc0] sm:$0xff]
  %v88 = vld [vmem:[%s1 + $0xc8] sm:$0xff]
  %v89 = vld [vmem:[%s1 + $0xd0] sm:$0xff]
  %v90 = vld [vmem:[%s1 + $0xd8] sm:$0xff]
  %v91 = vld [vmem:[%s1 + $0xe0] sm:$0xff]
  %v92 = vld [vmem:[%s1 + $0xe8] sm:$0xff]
  %v93 = vld [vmem:[%s1 + $0xf0] sm:$0xff]
  %v94 = vld [vmem:[%s1 + $0xf8] sm:$0xff]
  %v127 = vunpack.c.l.b16 %v63
  %v128 = vunpack.c.h.b16 %v63
  %v129 = vunpack.c.l.b16 %v64
  %v130 = vunpack.c.h.b16 %v64
  %v131 = vunpack.c.l.b16 %v65
  %v132 = vunpack.c.h.b16 %v65
  %v133 = vunpack.c.l.b16 %v66
  %v134 = vunpack.c.h.b16 %v66
  %v135 = vunpack.c.l.b16 %v67
  %v136 = vunpack.c.h.b16 %v67
  %v137 = vunpack.c.l.b16 %v68
  %v138 = vunpack.c.h.b16 %v68
  %v139 = vunpack.c.l.b16 %v69
  %v140 = vunpack.c.h.b16 %v69
  %v141 = vunpack.c.l.b16 %v70
  %v142 = vunpack.c.h.b16 %v70
  %v143 = vunpack.c.l.b16 %v71
  %v144 = vunpack.c.h.b16 %v71
  %v145 = vunpack.c.l.b16 %v72
  %v146 = vunpack.c.h.b16 %v72
  %v147 = vunpack.c.l.b16 %v73
  %v148 = vunpack.c.h.b16 %v73
  %v149 = vunpack.c.l.b16 %v74
  %v150 = vunpack.c.h.b16 %v74
  %v151 = vunpack.c.l.b16 %v75
  %v152 = vunpack.c.h.b16 %v75
  %v153 = vunpack.c.l.b16 %v76
  %v154 = vunpack.c.h.b16 %v76
  %v155 = vunpack.c.l.b16 %v77
  %v156 = vunpack.c.h.b16 %v77
  %v157 = vunpack.c.l.b16 %v78
  %v158 = vunpack.c.h.b16 %v78
  %v159 = vunpack.c.l.b16 %v79
  %v160 = vunpack.c.h.b16 %v79
  %v161 = vunpack.c.l.b16 %v80
  %v162 = vunpack.c.h.b16 %v80
  %v163 = vunpack.c.l.b16 %v81
  %v164 = vunpack.c.h.b16 %v81
  %v165 = vunpack.c.l.b16 %v82
  %v166 = vunpack.c.h.b16 %v82
  %v167 = vunpack.c.l.b16 %v83
  %v168 = vunpack.c.h.b16 %v83
  %v169 = vunpack.c.l.b16 %v84
  %v170 = vunpack.c.h.b16 %v84
  %v171 = vunpack.c.l.b16 %v85
  %v172 = vunpack.c.h.b16 %v85
  %v173 = vunpack.c.l.b16 %v86
  %v174 = vunpack.c.h.b16 %v86
  %v175 = vunpack.c.l.b16 %v87
  %v176 = vunpack.c.h.b16 %v87
  %v177 = vunpack.c.l.b16 %v88
  %v178 = vunpack.c.h.b16 %v88
  %v179 = vunpack.c.l.b16 %v89
  %v180 = vunpack.c.h.b16 %v89
  %v181 = vunpack.c.l.b16 %v90
  %v182 = vunpack.c.h.b16 %v90
  %v183 = vunpack.c.l.b16 %v91
  %v184 = vunpack.c.h.b16 %v91
  %v185 = vunpack.c.l.b16 %v92
  %v186 = vunpack.c.h.b16 %v92
  %v187 = vunpack.c.l.b16 %v93
  %v188 = vunpack.c.h.b16 %v93
  %v189 = vunpack.c.l.b16 %v94
  %v190 = vunpack.c.h.b16 %v94
  %v191 = vpack.c.b16 %v131, %v127
  %v192 = vpack.c.b16 %v132, %v128
  %v193 = vpack.c.b16 %v133, %v129
  %v194 = vpack.c.b16 %v134, %v130
  %v195 = vpack.c.b16 %v139, %v135
  %v196 = vpack.c.b16 %v140, %v136
  %v197 = vpack.c.b16 %v141, %v137
  %v198 = vpack.c.b16 %v142, %v138
  %v199 = vpack.c.b16 %v147, %v143
  %v200 = vpack.c.b16 %v148, %v144
  %v201 = vpack.c.b16 %v149, %v145
  %v202 = vpack.c.b16 %v150, %v146
  %v203 = vpack.c.b16 %v155, %v151
  %v204 = vpack.c.b16 %v156, %v152
  %v205 = vpack.c.b16 %v157, %v153
  %v206 = vpack.c.b16 %v158, %v154
  %v207 = vpack.c.b16 %v163, %v159
  %v208 = vpack.c.b16 %v164, %v160
  %v209 = vpack.c.b16 %v165, %v161
  %v210 = vpack.c.b16 %v166, %v162
  %v211 = vpack.c.b16 %v171, %v167
  %v212 = vpack.c.b16 %v172, %v168
  %v213 = vpack.c.b16 %v173, %v169
  %v214 = vpack.c.b16 %v174, %v170
  %v215 = vpack.c.b16 %v179, %v175
  %v216 = vpack.c.b16 %v180, %v176
  %v217 = vpack.c.b16 %v181, %v177
  %v218 = vpack.c.b16 %v182, %v178
  %v219 = vpack.c.b16 %v187, %v183
  %v220 = vpack.c.b16 %v188, %v184
  %v221 = vpack.c.b16 %v189, %v185
  %v222 = vpack.c.b16 %v190, %v186
  %255 = vmatprep.subr.bf16.mxu0 %v192
  %256 = vmatpush1.bf16.msra.mxu0 %v191
  %257 = vmatprep.subr.bf16.mxu0 %v196
  %258 = vmatpush1.bf16.msra.mxu0 %v195
  %259 = vmatprep.subr.bf16.mxu0 %v200
  %260 = vmatpush1.bf16.msra.mxu0 %v199
  %261 = vmatprep.subr.bf16.mxu0 %v204
  %262 = vmatpush1.bf16.msra.mxu0 %v203
  %263 = vmatprep.subr.bf16.mxu0 %v208
  %264 = vmatpush1.bf16.msra.mxu0 %v207
  %265 = vmatprep.subr.bf16.mxu0 %v212
  %266 = vmatpush1.bf16.msra.mxu0 %v211
  %267 = vmatprep.subr.bf16.mxu0 %v216
  %268 = vmatpush1.bf16.msra.mxu0 %v215
  %269 = vmatprep.subr.bf16.mxu0 %v220
  %270 = vmatpush1.bf16.msra.mxu0 %v219
  %271 = vmatprep.subr.bf16.mxu0 0
  %272 = vmatpush1.bf16.msra.mxu0 0
  %273 = vmatprep.subr.bf16.mxu0 0
  %274 = vmatpush1.bf16.msra.mxu0 0
  %275 = vmatprep.subr.bf16.mxu0 0
  %276 = vmatpush1.bf16.msra.mxu0 0
  %277 = vmatprep.subr.bf16.mxu0 0
  %278 = vmatpush1.bf16.msra.mxu0 0
  %279 = vmatprep.subr.bf16.mxu0 0
  %280 = vmatpush1.bf16.msra.mxu0 0
  %281 = vmatprep.subr.bf16.mxu0 0
  %282 = vmatpush1.bf16.msra.mxu0 0
  %283 = vmatprep.subr.bf16.mxu0 0
  %284 = vmatpush1.bf16.msra.mxu0 0
  %285 = vmatprep.subr.bf16.mxu0 0
  %286 = vmatpush1.bf16.msra.mxu0 0
  %287 = vmatprep.mubr.bf16.mxu0 0
  %288 = vmatmul.mubr.bf16.gmra.mrb[0].mxu0 %v62
  %v289 = vpop.f32.mrb[0].mxu0
  %v290 = vadd.f32 0.0, %v289
  %v291 = vpop.f32.mrb[0].mxu0
  %v292 = vadd.f32 0.0, %v291
  %v293 = vpop.f32.mrb[0].mxu0
  %v294 = vpop.f32.mrb[0].mxu0
  %295 = vdwg.mxu0
  %296 = vmatprep.subr.bf16.mxu0 %v194
  %297 = vmatpush1.bf16.msra.mxu0 %v193
  %298 = vmatprep.subr.bf16.mxu0 %v198
  %299 = vmatpush1.bf16.msra.mxu0 %v197
  %300 = vmatprep.subr.bf16.mxu0 %v202
  %301 = vmatpush1.bf16.msra.mxu0 %v201
  %302 = vmatprep.subr.bf16.mxu0 %v206
  %303 = vmatpush1.bf16.msra.mxu0 %v205
  %304 = vmatprep.subr.bf16.mxu0 %v210
  %305 = vmatpush1.bf16.msra.mxu0 %v209
  %306 = vmatprep.subr.bf16.mxu0 %v214
  %307 = vmatpush1.bf16.msra.mxu0 %v213
  %308 = vmatprep.subr.bf16.mxu0 %v218
  %309 = vmatpush1.bf16.msra.mxu0 %v217
  %310 = vmatprep.subr.bf16.mxu0 %v222
  %311 = vmatpush1.bf16.msra.mxu0 %v221
  %312 = vmatprep.subr.bf16.mxu0 0
  %313 = vmatpush1.bf16.msra.mxu0 0
  %314 = vmatprep.subr.bf16.mxu0 0
  %315 = vmatpush1.bf16.msra.mxu0 0
  %316 = vmatprep.subr.bf16.mxu0 0
  %317 = vmatpush1.bf16.msra.mxu0 0
  %318 = vmatprep.subr.bf16.mxu0 0
  %319 = vmatpush1.bf16.msra.mxu0 0
  %320 = vmatprep.subr.bf16.mxu0 0
  %321 = vmatpush1.bf16.msra.mxu0 0
  %322 = vmatprep.subr.bf16.mxu0 0
  %323 = vmatpush1.bf16.msra.mxu0 0
  %324 = vmatprep.subr.bf16.mxu0 0
  %325 = vmatpush1.bf16.msra.mxu0 0
  %326 = vmatprep.subr.bf16.mxu0 0
  %327 = vmatpush1.bf16.msra.mxu0 0
  %328 = vmatprep.mubr.bf16.mxu0 0
  %329 = vmatmul.mubr.bf16.gmra.mrb[0].mxu0 %v62
  %v330 = vpop.f32.mrb[0].mxu0
  %v331 = vadd.f32 0.0, %v330
  %v332 = vpop.f32.mrb[0].mxu0
  %v333 = vadd.f32 0.0, %v332
  %v334 = vpop.f32.mrb[0].mxu0
  %v335 = vpop.f32.mrb[0].mxu0
  %336 = vdwg.mxu0
  %v337 = vadd.f32 %v58, %v290
  %v338 = vadd.f32 %v59, %v292
  %v339 = vadd.f32 %v60, %v331
  %v340 = vadd.f32 %v61, %v333
  %v341 = vmul.f32 %v337, 0.5
  %v342 = vtanh.pop %v341
  %v343 = vmul.f32 %v342, 0.5
  %v344 = vadd.f32 %v343, 0.5
  %v345 = vmul.f32 %v338, 0.5
  %v346 = vtanh.pop %v345
  %v347 = vmul.f32 %v346, 0.5
  %v348 = vadd.f32 %v347, 0.5
  %v349 = vtanh.pop %v339
  %v350 = vmul.f32 %v340, 0.5
  %v351 = vtanh.pop %v350
  %v352 = vmul.f32 %v351, 0.5
  %v353 = vadd.f32 %v352, 0.5
  %v354 = vmul.f32 %v348, %v55
  %v355 = vmul.f32 %v344, %v349
  %v356 = vadd.f32 %v354, %v355
  %v357 = vtanh.pop %v356
  %v358 = vmul.f32 %v353, %v357
  %v359 = vpack.c.bf16 %v358, %v358
  %v360 = vpack.c.bf16 %v56, %v56
  %v361 = vld [vmem:[%s2] sm:$0xff]
  %v362 = vld [vmem:[%s2 + $0x8] sm:$0xff]
  %v363 = vld [vmem:[%s2 + $0x10] sm:$0xff]
  %v364 = vld [vmem:[%s2 + $0x18] sm:$0xff]
  %v365 = vld [vmem:[%s2 + $0x20] sm:$0xff]
  %v366 = vld [vmem:[%s2 + $0x28] sm:$0xff]
  %v367 = vld [vmem:[%s2 + $0x30] sm:$0xff]
  %v368 = vld [vmem:[%s2 + $0x38] sm:$0xff]
  %v369 = vld [vmem:[%s2 + $0x40] sm:$0xff]
  %v370 = vld [vmem:[%s2 + $0x48] sm:$0xff]
  %v371 = vld [vmem:[%s2 + $0x50] sm:$0xff]
  %v372 = vld [vmem:[%s2 + $0x58] sm:$0xff]
  %v373 = vld [vmem:[%s2 + $0x60] sm:$0xff]
  %v374 = vld [vmem:[%s2 + $0x68] sm:$0xff]
  %v375 = vld [vmem:[%s2 + $0x70] sm:$0xff]
  %v376 = vld [vmem:[%s2 + $0x78] sm:$0xff]
  %v377 = vld [vmem:[%s2 + $0x80] sm:$0xff]
  %v378 = vld [vmem:[%s2 + $0x88] sm:$0xff]
  %v379 = vld [vmem:[%s2 + $0x90] sm:$0xff]
  %v380 = vld [vmem:[%s2 + $0x98] sm:$0xff]
  %v381 = vld [vmem:[%s2 + $0xa0] sm:$0xff]
  %v382 = vld [vmem:[%s2 + $0xa8] sm:$0xff]
  %v383 = vld [vmem:[%s2 + $0xb0] sm:$0xff]
  %v384 = vld [vmem:[%s2 + $0xb8] sm:$0xff]
  %v385 = vld [vmem:[%s2 + $0xc0] sm:$0xff]
  %v386 = vld [vmem:[%s2 + $0xc8] sm:$0xff]
  %v387 = vld [vmem:[%s2 + $0xd0] sm:$0xff]
  %v388 = vld [vmem:[%s2 + $0xd8] sm:$0xff]
  %v389 = vld [vmem:[%s2 + $0xe0] sm:$0xff]
  %v390 = vld [vmem:[%s2 + $0xe8] sm:$0xff]
  %v391 = vld [vmem:[%s2 + $0xf0] sm:$0xff]
  %v392 = vld [vmem:[%s2 + $0xf8] sm:$0xff]
  %v393 = vld [vmem:[%s2 + $0x100] sm:$0xff]
  %v394 = vld [vmem:[%s2 + $0x108] sm:$0xff]
  %v395 = vld [vmem:[%s2 + $0x110] sm:$0xff]
  %v396 = vld [vmem:[%s2 + $0x118] sm:$0xff]
  %v397 = vld [vmem:[%s2 + $0x120] sm:$0xff]
  %v398 = vld [vmem:[%s2 + $0x128] sm:$0xff]
  %v399 = vld [vmem:[%s2 + $0x130] sm:$0xff]
  %v400 = vld [vmem:[%s2 + $0x138] sm:$0xff]
  %v401 = vld [vmem:[%s2 + $0x140] sm:$0xff]
  %v402 = vld [vmem:[%s2 + $0x148] sm:$0xff]
  %v403 = vld [vmem:[%s2 + $0x150] sm:$0xff]
  %v404 = vld [vmem:[%s2 + $0x158] sm:$0xff]
  %v405 = vld [vmem:[%s2 + $0x160] sm:$0xff]
  %v406 = vld [vmem:[%s2 + $0x168] sm:$0xff]
  %v407 = vld [vmem:[%s2 + $0x170] sm:$0xff]
  %v408 = vld [vmem:[%s2 + $0x178] sm:$0xff]
  %v409 = vld [vmem:[%s2 + $0x180] sm:$0xff]
  %v410 = vld [vmem:[%s2 + $0x188] sm:$0xff]
  %v411 = vld [vmem:[%s2 + $0x190] sm:$0xff]
  %v412 = vld [vmem:[%s2 + $0x198] sm:$0xff]
  %v413 = vld [vmem:[%s2 + $0x1a0] sm:$0xff]
  %v414 = vld [vmem:[%s2 + $0x1a8] sm:$0xff]
  %v415 = vld [vmem:[%s2 + $0x1b0] sm:$0xff]
  %v416 = vld [vmem:[%s2 + $0x1b8] sm:$0xff]
  %v417 = vld [vmem:[%s2 + $0x1c0] sm:$0xff]
  %v418 = vld [vmem:[%s2 + $0x1c8] sm:$0xff]
  %v419 = vld [vmem:[%s2 + $0x1d0] sm:$0xff]
  %v420 = vld [vmem:[%s2 + $0x1d8] sm:$0xff]
  %v421 = vld [vmem:[%s2 + $0x1e0] sm:$0xff]
  %v422 = vld [vmem:[%s2 + $0x1e8] sm:$0xff]
  %v423 = vld [vmem:[%s2 + $0x1f0] sm:$0xff]
  %v424 = vld [vmem:[%s2 + $0x1f8] sm:$0xff]
  %v489 = vunpack.c.l.b16 %v361
  %v490 = vunpack.c.h.b16 %v361
  %v491 = vunpack.c.l.b16 %v362
  %v492 = vunpack.c.h.b16 %v362
  %v493 = vunpack.c.l.b16 %v363
  %v494 = vunpack.c.h.b16 %v363
  %v495 = vunpack.c.l.b16 %v364
  %v496 = vunpack.c.h.b16 %v364
  %v497 = vunpack.c.l.b16 %v365
  %v498 = vunpack.c.h.b16 %v365
  %v499 = vunpack.c.l.b16 %v366
  %v500 = vunpack.c.h.b16 %v366
  %v501 = vunpack.c.l.b16 %v367
  %v502 = vunpack.c.h.b16 %v367
  %v503 = vunpack.c.l.b16 %v368
  %v504 = vunpack.c.h.b16 %v368
  %v505 = vunpack.c.l.b16 %v369
  %v506 = vunpack.c.h.b16 %v369
  %v507 = vunpack.c.l.b16 %v370
  %v508 = vunpack.c.h.b16 %v370
  %v509 = vunpack.c.l.b16 %v371
  %v510 = vunpack.c.h.b16 %v371
  %v511 = vunpack.c.l.b16 %v372
  %v512 = vunpack.c.h.b16 %v372
  %v513 = vunpack.c.l.b16 %v373
  %v514 = vunpack.c.h.b16 %v373
  %v515 = vunpack.c.l.b16 %v374
  %v516 = vunpack.c.h.b16 %v374
  %v517 = vunpack.c.l.b16 %v375
  %v518 = vunpack.c.h.b16 %v375
  %v519 = vunpack.c.l.b16 %v376
  %v520 = vunpack.c.h.b16 %v376
  %v521 = vunpack.c.l.b16 %v377
  %v522 = vunpack.c.h.b16 %v377
  %v523 = vunpack.c.l.b16 %v378
  %v524 = vunpack.c.h.b16 %v378
  %v525 = vunpack.c.l.b16 %v379
  %v526 = vunpack.c.h.b16 %v379
  %v527 = vunpack.c.l.b16 %v380
  %v528 = vunpack.c.h.b16 %v380
  %v529 = vunpack.c.l.b16 %v381
  %v530 = vunpack.c.h.b16 %v381
  %v531 = vunpack.c.l.b16 %v382
  %v532 = vunpack.c.h.b16 %v382
  %v533 = vunpack.c.l.b16 %v383
  %v534 = vunpack.c.h.b16 %v383
  %v535 = vunpack.c.l.b16 %v384
  %v536 = vunpack.c.h.b16 %v384
  %v537 = vunpack.c.l.b16 %v385
  %v538 = vunpack.c.h.b16 %v385
  %v539 = vunpack.c.l.b16 %v386
  %v540 = vunpack.c.h.b16 %v386
  %v541 = vunpack.c.l.b16 %v387
  %v542 = vunpack.c.h.b16 %v387
  %v543 = vunpack.c.l.b16 %v388
  %v544 = vunpack.c.h.b16 %v388
  %v545 = vunpack.c.l.b16 %v389
  %v546 = vunpack.c.h.b16 %v389
  %v547 = vunpack.c.l.b16 %v390
  %v548 = vunpack.c.h.b16 %v390
  %v549 = vunpack.c.l.b16 %v391
  %v550 = vunpack.c.h.b16 %v391
  %v551 = vunpack.c.l.b16 %v392
  %v552 = vunpack.c.h.b16 %v392
  %v553 = vunpack.c.l.b16 %v393
  %v554 = vunpack.c.h.b16 %v393
  %v555 = vunpack.c.l.b16 %v394
  %v556 = vunpack.c.h.b16 %v394
  %v557 = vunpack.c.l.b16 %v395
  %v558 = vunpack.c.h.b16 %v395
  %v559 = vunpack.c.l.b16 %v396
  %v560 = vunpack.c.h.b16 %v396
  %v561 = vunpack.c.l.b16 %v397
  %v562 = vunpack.c.h.b16 %v397
  %v563 = vunpack.c.l.b16 %v398
  %v564 = vunpack.c.h.b16 %v398
  %v565 = vunpack.c.l.b16 %v399
  %v566 = vunpack.c.h.b16 %v399
  %v567 = vunpack.c.l.b16 %v400
  %v568 = vunpack.c.h.b16 %v400
  %v569 = vunpack.c.l.b16 %v401
  %v570 = vunpack.c.h.b16 %v401
  %v571 = vunpack.c.l.b16 %v402
  %v572 = vunpack.c.h.b16 %v402
  %v573 = vunpack.c.l.b16 %v403
  %v574 = vunpack.c.h.b16 %v403
  %v575 = vunpack.c.l.b16 %v404
  %v576 = vunpack.c.h.b16 %v404
  %v577 = vunpack.c.l.b16 %v405
  %v578 = vunpack.c.h.b16 %v405
  %v579 = vunpack.c.l.b16 %v406
  %v580 = vunpack.c.h.b16 %v406
  %v581 = vunpack.c.l.b16 %v407
  %v582 = vunpack.c.h.b16 %v407
  %v583 = vunpack.c.l.b16 %v408
  %v584 = vunpack.c.h.b16 %v408
  %v585 = vunpack.c.l.b16 %v409
  %v586 = vunpack.c.h.b16 %v409
  %v587 = vunpack.c.l.b16 %v410
  %v588 = vunpack.c.h.b16 %v410
  %v589 = vunpack.c.l.b16 %v411
  %v590 = vunpack.c.h.b16 %v411
  %v591 = vunpack.c.l.b16 %v412
  %v592 = vunpack.c.h.b16 %v412
  %v593 = vunpack.c.l.b16 %v413
  %v594 = vunpack.c.h.b16 %v413
  %v595 = vunpack.c.l.b16 %v414
  %v596 = vunpack.c.h.b16 %v414
  %v597 = vunpack.c.l.b16 %v415
  %v598 = vunpack.c.h.b16 %v415
  %v599 = vunpack.c.l.b16 %v416
  %v600 = vunpack.c.h.b16 %v416
  %v601 = vunpack.c.l.b16 %v417
  %v602 = vunpack.c.h.b16 %v417
  %v603 = vunpack.c.l.b16 %v418
  %v604 = vunpack.c.h.b16 %v418
  %v605 = vunpack.c.l.b16 %v419
  %v606 = vunpack.c.h.b16 %v419
  %v607 = vunpack.c.l.b16 %v420
  %v608 = vunpack.c.h.b16 %v420
  %v609 = vunpack.c.l.b16 %v421
  %v610 = vunpack.c.h.b16 %v421
  %v611 = vunpack.c.l.b16 %v422
  %v612 = vunpack.c.h.b16 %v422
  %v613 = vunpack.c.l.b16 %v423
  %v614 = vunpack.c.h.b16 %v423
  %v615 = vunpack.c.l.b16 %v424
  %v616 = vunpack.c.h.b16 %v424
  %v617 = vpack.c.b16 %v493, %v489
  %v618 = vpack.c.b16 %v494, %v490
  %v619 = vpack.c.b16 %v495, %v491
  %v620 = vpack.c.b16 %v496, %v492
  %v621 = vpack.c.b16 %v501, %v497
  %v622 = vpack.c.b16 %v502, %v498
  %v623 = vpack.c.b16 %v503, %v499
  %v624 = vpack.c.b16 %v504, %v500
  %v625 = vpack.c.b16 %v509, %v505
  %v626 = vpack.c.b16 %v510, %v506
  %v627 = vpack.c.b16 %v511, %v507
  %v628 = vpack.c.b16 %v512, %v508
  %v629 = vpack.c.b16 %v517, %v513
  %v630 = vpack.c.b16 %v518, %v514
  %v631 = vpack.c.b16 %v519, %v515
  %v632 = vpack.c.b16 %v520, %v516
  %v633 = vpack.c.b16 %v525, %v521
  %v634 = vpack.c.b16 %v526, %v522
  %v635 = vpack.c.b16 %v527, %v523
  %v636 = vpack.c.b16 %v528, %v524
  %v637 = vpack.c.b16 %v533, %v529
  %v638 = vpack.c.b16 %v534, %v530
  %v639 = vpack.c.b16 %v535, %v531
  %v640 = vpack.c.b16 %v536, %v532
  %v641 = vpack.c.b16 %v541, %v537
  %v642 = vpack.c.b16 %v542, %v538
  %v643 = vpack.c.b16 %v543, %v539
  %v644 = vpack.c.b16 %v544, %v540
  %v645 = vpack.c.b16 %v549, %v545
  %v646 = vpack.c.b16 %v550, %v546
  %v647 = vpack.c.b16 %v551, %v547
  %v648 = vpack.c.b16 %v552, %v548
  %v649 = vpack.c.b16 %v557, %v553
  %v650 = vpack.c.b16 %v558, %v554
  %v651 = vpack.c.b16 %v559, %v555
  %v652 = vpack.c.b16 %v560, %v556
  %v653 = vpack.c.b16 %v565, %v561
  %v654 = vpack.c.b16 %v566, %v562
  %v655 = vpack.c.b16 %v567, %v563
  %v656 = vpack.c.b16 %v568, %v564
  %v657 = vpack.c.b16 %v573, %v569
  %v658 = vpack.c.b16 %v574, %v570
  %v659 = vpack.c.b16 %v575, %v571
  %v660 = vpack.c.b16 %v576, %v572
  %v661 = vpack.c.b16 %v581, %v577
  %v662 = vpack.c.b16 %v582, %v578
  %v663 = vpack.c.b16 %v583, %v579
  %v664 = vpack.c.b16 %v584, %v580
  %v665 = vpack.c.b16 %v589, %v585
  %v666 = vpack.c.b16 %v590, %v586
  %v667 = vpack.c.b16 %v591, %v587
  %v668 = vpack.c.b16 %v592, %v588
  %v669 = vpack.c.b16 %v597, %v593
  %v670 = vpack.c.b16 %v598, %v594
  %v671 = vpack.c.b16 %v599, %v595
  %v672 = vpack.c.b16 %v600, %v596
  %v673 = vpack.c.b16 %v605, %v601
  %v674 = vpack.c.b16 %v606, %v602
  %v675 = vpack.c.b16 %v607, %v603
  %v676 = vpack.c.b16 %v608, %v604
  %v677 = vpack.c.b16 %v613, %v609
  %v678 = vpack.c.b16 %v614, %v610
  %v679 = vpack.c.b16 %v615, %v611
  %v680 = vpack.c.b16 %v616, %v612
  %745 = vmatprep.subr.bf16.mxu0 %v618
  %746 = vmatpush1.bf16.msra.mxu0 %v617
  %747 = vmatprep.subr.bf16.mxu0 %v622
  %748 = vmatpush1.bf16.msra.mxu0 %v621
  %749 = vmatprep.subr.bf16.mxu0 %v626
  %750 = vmatpush1.bf16.msra.mxu0 %v625
  %751 = vmatprep.subr.bf16.mxu0 %v630
  %752 = vmatpush1.bf16.msra.mxu0 %v629
  %753 = vmatprep.subr.bf16.mxu0 %v634
  %754 = vmatpush1.bf16.msra.mxu0 %v633
  %755 = vmatprep.subr.bf16.mxu0 %v638
  %756 = vmatpush1.bf16.msra.mxu0 %v637
  %757 = vmatprep.subr.bf16.mxu0 %v642
  %758 = vmatpush1.bf16.msra.mxu0 %v641
  %759 = vmatprep.subr.bf16.mxu0 %v646
  %760 = vmatpush1.bf16.msra.mxu0 %v645
  %761 = vmatprep.subr.bf16.mxu0 %v650
  %762 = vmatpush1.bf16.msra.mxu0 %v649
  %763 = vmatprep.subr.bf16.mxu0 %v654
  %764 = vmatpush1.bf16.msra.mxu0 %v653
  %765 = vmatprep.subr.bf16.mxu0 %v658
  %766 = vmatpush1.bf16.msra.mxu0 %v657
  %767 = vmatprep.subr.bf16.mxu0 %v662
  %768 = vmatpush1.bf16.msra.mxu0 %v661
  %769 = vmatprep.subr.bf16.mxu0 %v666
  %770 = vmatpush1.bf16.msra.mxu0 %v665
  %771 = vmatprep.subr.bf16.mxu0 %v670
  %772 = vmatpush1.bf16.msra.mxu0 %v669
  %773 = vmatprep.subr.bf16.mxu0 %v674
  %774 = vmatpush1.bf16.msra.mxu0 %v673
  %775 = vmatprep.subr.bf16.mxu0 %v678
  %776 = vmatpush1.bf16.msra.mxu0 %v677
  %777 = vmatprep.mubr.bf16.mxu0 %v360
  %778 = vmatmul.mubr.bf16.gmra.mrb[0].mxu0 %v359
  %v779 = vpop.f32.mrb[0].mxu0
  %v780 = vadd.f32 %v37, %v779
  %v781 = vpop.f32.mrb[0].mxu0
  %v782 = vadd.f32 %v41, %v781
  %v783 = vpop.f32.mrb[0].mxu0
  %v784 = vpop.f32.mrb[0].mxu0
  %785 = vdwg.mxu0
  %786 = vmatprep.subr.bf16.mxu0 %v620
  %787 = vmatpush1.bf16.msra.mxu0 %v619
  %788 = vmatprep.subr.bf16.mxu0 %v624
  %789 = vmatpush1.bf16.msra.mxu0 %v623
  %790 = vmatprep.subr.bf16.mxu0 %v628
  %791 = vmatpush1.bf16.msra.mxu0 %v627
  %792 = vmatprep.subr.bf16.mxu0 %v632
  %793 = vmatpush1.bf16.msra.mxu0 %v631
  %794 = vmatprep.subr.bf16.mxu0 %v636
  %795 = vmatpush1.bf16.msra.mxu0 %v635
  %796 = vmatprep.subr.bf16.mxu0 %v640
  %797 = vmatpush1.bf16.msra.mxu0 %v639
  %798 = vmatprep.subr.bf16.mxu0 %v644
  %799 = vmatpush1.bf16.msra.mxu0 %v643
  %800 = vmatprep.subr.bf16.mxu0 %v648
  %801 = vmatpush1.bf16.msra.mxu0 %v647
  %802 = vmatprep.subr.bf16.mxu0 %v652
  %803 = vmatpush1.bf16.msra.mxu0 %v651
  %804 = vmatprep.subr.bf16.mxu0 %v656
  %805 = vmatpush1.bf16.msra.mxu0 %v655
  %806 = vmatprep.subr.bf16.mxu0 %v660
  %807 = vmatpush1.bf16.msra.mxu0 %v659
  %808 = vmatprep.subr.bf16.mxu0 %v664
  %809 = vmatpush1.bf16.msra.mxu0 %v663
  %810 = vmatprep.subr.bf16.mxu0 %v668
  %811 = vmatpush1.bf16.msra.mxu0 %v667
  %812 = vmatprep.subr.bf16.mxu0 %v672
  %813 = vmatpush1.bf16.msra.mxu0 %v671
  %814 = vmatprep.subr.bf16.mxu0 %v676
  %815 = vmatpush1.bf16.msra.mxu0 %v675
  %816 = vmatprep.subr.bf16.mxu0 %v680
  %817 = vmatpush1.bf16.msra.mxu0 %v679
  %818 = vmatprep.mubr.bf16.mxu0 %v360
  %819 = vmatmul.mubr.bf16.gmra.mrb[0].mxu0 %v359
  %v820 = vpop.f32.mrb[0].mxu0
  %v821 = vadd.f32 %v45, %v820
  %v822 = vpop.f32.mrb[0].mxu0
  %v823 = vadd.f32 %v49, %v822
  %v824 = vpop.f32.mrb[0].mxu0
  %v825 = vpop.f32.mrb[0].mxu0
  %826 = vdwg.mxu0
  %v827 = vmul.f32 %v780, 0.5
  %v828 = vtanh.pop %v827
  %v829 = vmul.f32 %v828, 0.5
  %v830 = vadd.f32 %v829, 0.5
  %v831 = vmul.f32 %v782, 0.5
  %v832 = vtanh.pop %v831
  %v833 = vmul.f32 %v832, 0.5
  %v834 = vadd.f32 %v833, 0.5
  %v835 = vtanh.pop %v821
  %v836 = vmul.f32 %v823, 0.5
  %v837 = vtanh.pop %v836
  %v838 = vmul.f32 %v837, 0.5
  %v839 = vadd.f32 %v838, 0.5
  %v840 = vmul.f32 %v834, %v57
  %v841 = vmul.f32 %v830, %v835
  %v842 = vadd.f32 %v840, %v841
  %v843 = vtanh.pop %v842
  %v844 = vmul.f32 %v839, %v843
  %s845 = scalar_lea.vmem %s0, 32
  %v846 = vld [vmem:[%s845] sm:$0xff]
  %v847 = vld [vmem:[%s845 + $0x8] sm:$0xff]
  %v848 = vld [vmem:[%s845 + $0x10] sm:$0xff]
  %v849 = vld [vmem:[%s845 + $0x18] sm:$0xff]
  %850 = vmatprep.subr.bf16.mxu0 %v192
  %851 = vmatpush1.bf16.msra.mxu0 %v191
  %852 = vmatprep.subr.bf16.mxu0 %v196
  %853 = vmatpush1.bf16.msra.mxu0 %v195
  %854 = vmatprep.subr.bf16.mxu0 %v200
  %855 = vmatpush1.bf16.msra.mxu0 %v199
  %856 = vmatprep.subr.bf16.mxu0 %v204
  %857 = vmatpush1.bf16.msra.mxu0 %v203
  %858 = vmatprep.subr.bf16.mxu0 %v208
  %859 = vmatpush1.bf16.msra.mxu0 %v207
  %860 = vmatprep.subr.bf16.mxu0 %v212
  %861 = vmatpush1.bf16.msra.mxu0 %v211
  %862 = vmatprep.subr.bf16.mxu0 %v216
  %863 = vmatpush1.bf16.msra.mxu0 %v215
  %864 = vmatprep.subr.bf16.mxu0 %v220
  %865 = vmatpush1.bf16.msra.mxu0 %v219
  %866 = vmatprep.subr.bf16.mxu0 0
  %867 = vmatpush1.bf16.msra.mxu0 0
  %868 = vmatprep.subr.bf16.mxu0 0
  %869 = vmatpush1.bf16.msra.mxu0 0
  %870 = vmatprep.subr.bf16.mxu0 0
  %871 = vmatpush1.bf16.msra.mxu0 0
  %872 = vmatprep.subr.bf16.mxu0 0
  %873 = vmatpush1.bf16.msra.mxu0 0
  %874 = vmatprep.subr.bf16.mxu0 0
  %875 = vmatpush1.bf16.msra.mxu0 0
  %876 = vmatprep.subr.bf16.mxu0 0
  %877 = vmatpush1.bf16.msra.mxu0 0
  %878 = vmatprep.subr.bf16.mxu0 0
  %879 = vmatpush1.bf16.msra.mxu0 0
  %880 = vmatprep.subr.bf16.mxu0 0
  %881 = vmatpush1.bf16.msra.mxu0 0
  %882 = vmatprep.mubr.bf16.mxu0 0
  %883 = vmatmul.mubr.bf16.gmra.mrb[0].mxu0 %v359
  %v884 = vpop.f32.mrb[0].mxu0
  %v885 = vadd.f32 0.0, %v884
  %v886 = vpop.f32.mrb[0].mxu0
  %v887 = vadd.f32 0.0, %v886
  %v888 = vpop.f32.mrb[0].mxu0
  %v889 = vpop.f32.mrb[0].mxu0
  %890 = vdwg.mxu0
  %891 = vmatprep.subr.bf16.mxu0 %v194
  %892 = vmatpush1.bf16.msra.mxu0 %v193
  %893 = vmatprep.subr.bf16.mxu0 %v198
  %894 = vmatpush1.bf16.msra.mxu0 %v197
  %895 = vmatprep.subr.bf16.mxu0 %v202
  %896 = vmatpush1.bf16.msra.mxu0 %v201
  %897 = vmatprep.subr.bf16.mxu0 %v206
  %898 = vmatpush1.bf16.msra.mxu0 %v205
  %899 = vmatprep.subr.bf16.mxu0 %v210
  %900 = vmatpush1.bf16.msra.mxu0 %v209
  %901 = vmatprep.subr.bf16.mxu0 %v214
  %902 = vmatpush1.bf16.msra.mxu0 %v213
  %903 = vmatprep.subr.bf16.mxu0 %v218
  %904 = vmatpush1.bf16.msra.mxu0 %v217
  %905 = vmatprep.subr.bf16.mxu0 %v222
  %906 = vmatpush1.bf16.msra.mxu0 %v221
  %907 = vmatprep.subr.bf16.mxu0 0
  %908 = vmatpush1.bf16.msra.mxu0 0
  %909 = vmatprep.subr.bf16.mxu0 0
  %910 = vmatpush1.bf16.msra.mxu0 0
  %911 = vmatprep.subr.bf16.mxu0 0
  %912 = vmatpush1.bf16.msra.mxu0 0
  %913 = vmatprep.subr.bf16.mxu0 0
  %914 = vmatpush1.bf16.msra.mxu0 0
  %915 = vmatprep.subr.bf16.mxu0 0
  %916 = vmatpush1.bf16.msra.mxu0 0
  %917 = vmatprep.subr.bf16.mxu0 0
  %918 = vmatpush1.bf16.msra.mxu0 0
  %919 = vmatprep.subr.bf16.mxu0 0
  %920 = vmatpush1.bf16.msra.mxu0 0
  %921 = vmatprep.subr.bf16.mxu0 0
  %922 = vmatpush1.bf16.msra.mxu0 0
  %923 = vmatprep.mubr.bf16.mxu0 0
  %924 = vmatmul.mubr.bf16.gmra.mrb[0].mxu0 %v359
  %v925 = vpop.f32.mrb[0].mxu0
  %v926 = vadd.f32 0.0, %v925
  %v927 = vpop.f32.mrb[0].mxu0
  %v928 = vadd.f32 0.0, %v927
  %v929 = vpop.f32.mrb[0].mxu0
  %v930 = vpop.f32.mrb[0].mxu0
  %931 = vdwg.mxu0
  %v932 = vadd.f32 %v846, %v885
  %v933 = vadd.f32 %v847, %v887
  %v934 = vadd.f32 %v848, %v926
  %v935 = vadd.f32 %v849, %v928
  %v936 = vmul.f32 %v932, 0.5
  %v937 = vtanh.pop %v936
  %v938 = vmul.f32 %v937, 0.5
  %v939 = vadd.f32 %v938, 0.5
  %v940 = vmul.f32 %v933, 0.5
  %v941 = vtanh.pop %v940
  %v942 = vmul.f32 %v941, 0.5
  %v943 = vadd.f32 %v942, 0.5
  %v944 = vtanh.pop %v934
  %v945 = vmul.f32 %v935, 0.5
  %v946 = vtanh.pop %v945
  %v947 = vmul.f32 %v946, 0.5
  %v948 = vadd.f32 %v947, 0.5
  %v949 = vmul.f32 %v943, %v356
  %v950 = vmul.f32 %v939, %v944
  %v951 = vadd.f32 %v949, %v950
  %v952 = vtanh.pop %v951
  %v953 = vmul.f32 %v948, %v952
  %v954 = vpack.c.bf16 %v953, %v953
  %v955 = vpack.c.bf16 %v844, %v844
  %956 = vmatprep.subr.bf16.mxu0 %v618
  %957 = vmatpush1.bf16.msra.mxu0 %v617
  %958 = vmatprep.subr.bf16.mxu0 %v622
  %959 = vmatpush1.bf16.msra.mxu0 %v621
  %960 = vmatprep.subr.bf16.mxu0 %v626
  %961 = vmatpush1.bf16.msra.mxu0 %v625
  %962 = vmatprep.subr.bf16.mxu0 %v630
  %963 = vmatpush1.bf16.msra.mxu0 %v629
  %964 = vmatprep.subr.bf16.mxu0 %v634
  %965 = vmatpush1.bf16.msra.mxu0 %v633
  %966 = vmatprep.subr.bf16.mxu0 %v638
  %967 = vmatpush1.bf16.msra.mxu0 %v637
  %968 = vmatprep.subr.bf16.mxu0 %v642
  %969 = vmatpush1.bf16.msra.mxu0 %v641
  %970 = vmatprep.subr.bf16.mxu0 %v646
  %971 = vmatpush1.bf16.msra.mxu0 %v645
  %972 = vmatprep.subr.bf16.mxu0 %v650
  %973 = vmatpush1.bf16.msra.mxu0 %v649
  %974 = vmatprep.subr.bf16.mxu0 %v654
  %975 = vmatpush1.bf16.msra.mxu0 %v653
  %976 = vmatprep.subr.bf16.mxu0 %v658
  %977 = vmatpush1.bf16.msra.mxu0 %v657
  %978 = vmatprep.subr.bf16.mxu0 %v662
  %979 = vmatpush1.bf16.msra.mxu0 %v661
  %980 = vmatprep.subr.bf16.mxu0 %v666
  %981 = vmatpush1.bf16.msra.mxu0 %v665
  %982 = vmatprep.subr.bf16.mxu0 %v670
  %983 = vmatpush1.bf16.msra.mxu0 %v669
  %984 = vmatprep.subr.bf16.mxu0 %v674
  %985 = vmatpush1.bf16.msra.mxu0 %v673
  %986 = vmatprep.subr.bf16.mxu0 %v678
  %987 = vmatpush1.bf16.msra.mxu0 %v677
  %988 = vmatprep.mubr.bf16.mxu0 %v955
  %989 = vmatmul.mubr.bf16.gmra.mrb[0].mxu0 %v954
  %v990 = vpop.f32.mrb[0].mxu0
  %v991 = vadd.f32 %v37, %v990
  %v992 = vpop.f32.mrb[0].mxu0
  %v993 = vadd.f32 %v41, %v992
  %v994 = vpop.f32.mrb[0].mxu0
  %v995 = vpop.f32.mrb[0].mxu0
  %996 = vdwg.mxu0
  %997 = vmatprep.subr.bf16.mxu0 %v620
  %998 = vmatpush1.bf16.msra.mxu0 %v619
  %999 = vmatprep.subr.bf16.mxu0 %v624
  %1000 = vmatpush1.bf16.msra.mxu0 %v623
  %1001 = vmatprep.subr.bf16.mxu0 %v628
  %1002 = vmatpush1.bf16.msra.mxu0 %v627
  %1003 = vmatprep.subr.bf16.mxu0 %v632
  %1004 = vmatpush1.bf16.msra.mxu0 %v631
  %1005 = vmatprep.subr.bf16.mxu0 %v636
  %1006 = vmatpush1.bf16.msra.mxu0 %v635
  %1007 = vmatprep.subr.bf16.mxu0 %v640
  %1008 = vmatpush1.bf16.msra.mxu0 %v639
  %1009 = vmatprep.subr.bf16.mxu0 %v644
  %1010 = vmatpush1.bf16.msra.mxu0 %v643
  %1011 = vmatprep.subr.bf16.mxu0 %v648
  %1012 = vmatpush1.bf16.msra.mxu0 %v647
  %1013 = vmatprep.subr.bf16.mxu0 %v652
  %1014 = vmatpush1.bf16.msra.mxu0 %v651
  %1015 = vmatprep.subr.bf16.mxu0 %v656
  %1016 = vmatpush1.bf16.msra.mxu0 %v655
  %1017 = vmatprep.subr.bf16.mxu0 %v660
  %1018 = vmatpush1.bf16.msra.mxu0 %v659
  %1019 = vmatprep.subr.bf16.mxu0 %v664
  %1020 = vmatpush1.bf16.msra.mxu0 %v663
  %1021 = vmatprep.subr.bf16.mxu0 %v668
  %1022 = vmatpush1.bf16.msra.mxu0 %v667
  %1023 = vmatprep.subr.bf16.mxu0 %v672
  %1024 = vmatpush1.bf16.msra.mxu0 %v671
  %1025 = vmatprep.subr.bf16.mxu0 %v676
  %1026 = vmatpush1.bf16.msra.mxu0 %v675
  %1027 = vmatprep.subr.bf16.mxu0 %v680
  %1028 = vmatpush1.bf16.msra.mxu0 %v679
  %1029 = vmatprep.mubr.bf16.mxu0 %v955
  %1030 = vmatmul.mubr.bf16.gmra.mrb[0].mxu0 %v954
  %v1031 = vpop.f32.mrb[0].mxu0
  %v1032 = vadd.f32 %v45, %v1031
  %v1033 = vpop.f32.mrb[0].mxu0
  %v1034 = vadd.f32 %v49, %v1033
  %v1035 = vpop.f32.mrb[0].mxu0
  %v1036 = vpop.f32.mrb[0].mxu0
  %1037 = vdwg.mxu0
  %v1038 = vmul.f32 %v991, 0.5
  %v1039 = vtanh.pop %v1038
  %v1040 = vmul.f32 %v1039, 0.5
  %v1041 = vadd.f32 %v1040, 0.5
  %v1042 = vmul.f32 %v993, 0.5
  %v1043 = vtanh.pop %v1042
  %v1044 = vmul.f32 %v1043, 0.5
  %v1045 = vadd.f32 %v1044, 0.5
  %v1046 = vtanh.pop %v1032
  %v1047 = vmul.f32 %v1034, 0.5
  %v1048 = vtanh.pop %v1047
  %v1049 = vmul.f32 %v1048, 0.5
  %v1050 = vadd.f32 %v1049, 0.5
  %v1051 = vmul.f32 %v1045, %v842
  %v1052 = vmul.f32 %v1041, %v1046
  %v1053 = vadd.f32 %v1051, %v1052
  %v1054 = vtanh.pop %v1053
  %v1055 = vmul.f32 %v1050, %v1054
  %s1056 = scalar_lea.vmem %s0, 64
  %v1057 = vld [vmem:[%s1056] sm:$0xff]
  %v1058 = vld [vmem:[%s1056 + $0x8] sm:$0xff]
  %v1059 = vld [vmem:[%s1056 + $0x10] sm:$0xff]
  %v1060 = vld [vmem:[%s1056 + $0x18] sm:$0xff]
  %1061 = vmatprep.subr.bf16.mxu0 %v192
  %1062 = vmatpush1.bf16.msra.mxu0 %v191
  %1063 = vmatprep.subr.bf16.mxu0 %v196
  %1064 = vmatpush1.bf16.msra.mxu0 %v195
  %1065 = vmatprep.subr.bf16.mxu0 %v200
  %1066 = vmatpush1.bf16.msra.mxu0 %v199
  %1067 = vmatprep.subr.bf16.mxu0 %v204
  %1068 = vmatpush1.bf16.msra.mxu0 %v203
  %1069 = vmatprep.subr.bf16.mxu0 %v208
  %1070 = vmatpush1.bf16.msra.mxu0 %v207
  %1071 = vmatprep.subr.bf16.mxu0 %v212
  %1072 = vmatpush1.bf16.msra.mxu0 %v211
  %1073 = vmatprep.subr.bf16.mxu0 %v216
  %1074 = vmatpush1.bf16.msra.mxu0 %v215
  %1075 = vmatprep.subr.bf16.mxu0 %v220
  %1076 = vmatpush1.bf16.msra.mxu0 %v219
  %1077 = vmatprep.subr.bf16.mxu0 0
  %1078 = vmatpush1.bf16.msra.mxu0 0
  %1079 = vmatprep.subr.bf16.mxu0 0
  %1080 = vmatpush1.bf16.msra.mxu0 0
  %1081 = vmatprep.subr.bf16.mxu0 0
  %1082 = vmatpush1.bf16.msra.mxu0 0
  %1083 = vmatprep.subr.bf16.mxu0 0
  %1084 = vmatpush1.bf16.msra.mxu0 0
  %1085 = vmatprep.subr.bf16.mxu0 0
  %1086 = vmatpush1.bf16.msra.mxu0 0
  %1087 = vmatprep.subr.bf16.mxu0 0
  %1088 = vmatpush1.bf16.msra.mxu0 0
  %1089 = vmatprep.subr.bf16.mxu0 0
  %1090 = vmatpush1.bf16.msra.mxu0 0
  %1091 = vmatprep.subr.bf16.mxu0 0
  %1092 = vmatpush1.bf16.msra.mxu0 0
  %1093 = vmatprep.mubr.bf16.mxu0 0
  %1094 = vmatmul.mubr.bf16.gmra.mrb[0].mxu0 %v954
  %v1095 = vpop.f32.mrb[0].mxu0
  %v1096 = vadd.f32 0.0, %v1095
  %v1097 = vpop.f32.mrb[0].mxu0
  %v1098 = vadd.f32 0.0, %v1097
  %v1099 = vpop.f32.mrb[0].mxu0
  %v1100 = vpop.f32.mrb[0].mxu0
  %1101 = vdwg.mxu0
  %1102 = vmatprep.subr.bf16.mxu0 %v194
  %1103 = vmatpush1.bf16.msra.mxu0 %v193
  %1104 = vmatprep.subr.bf16.mxu0 %v198
  %1105 = vmatpush1.bf16.msra.mxu0 %v197
  %1106 = vmatprep.subr.bf16.mxu0 %v202
  %1107 = vmatpush1.bf16.msra.mxu0 %v201
  %1108 = vmatprep.subr.bf16.mxu0 %v206
  %1109 = vmatpush1.bf16.msra.mxu0 %v205
  %1110 = vmatprep.subr.bf16.mxu0 %v210
  %1111 = vmatpush1.bf16.msra.mxu0 %v209
  %1112 = vmatprep.subr.bf16.mxu0 %v214
  %1113 = vmatpush1.bf16.msra.mxu0 %v213
  %1114 = vmatprep.subr.bf16.mxu0 %v218
  %1115 = vmatpush1.bf16.msra.mxu0 %v217
  %1116 = vmatprep.subr.bf16.mxu0 %v222
  %1117 = vmatpush1.bf16.msra.mxu0 %v221
  %1118 = vmatprep.subr.bf16.mxu0 0
  %1119 = vmatpush1.bf16.msra.mxu0 0
  %1120 = vmatprep.subr.bf16.mxu0 0
  %1121 = vmatpush1.bf16.msra.mxu0 0
  %1122 = vmatprep.subr.bf16.mxu0 0
  %1123 = vmatpush1.bf16.msra.mxu0 0
  %1124 = vmatprep.subr.bf16.mxu0 0
  %1125 = vmatpush1.bf16.msra.mxu0 0
  %1126 = vmatprep.subr.bf16.mxu0 0
  %1127 = vmatpush1.bf16.msra.mxu0 0
  %1128 = vmatprep.subr.bf16.mxu0 0
  %1129 = vmatpush1.bf16.msra.mxu0 0
  %1130 = vmatprep.subr.bf16.mxu0 0
  %1131 = vmatpush1.bf16.msra.mxu0 0
  %1132 = vmatprep.subr.bf16.mxu0 0
  %1133 = vmatpush1.bf16.msra.mxu0 0
  %1134 = vmatprep.mubr.bf16.mxu0 0
  %1135 = vmatmul.mubr.bf16.gmra.mrb[0].mxu0 %v954
  %v1136 = vpop.f32.mrb[0].mxu0
  %v1137 = vadd.f32 0.0, %v1136
  %v1138 = vpop.f32.mrb[0].mxu0
  %v1139 = vadd.f32 0.0, %v1138
  %v1140 = vpop.f32.mrb[0].mxu0
  %v1141 = vpop.f32.mrb[0].mxu0
  %1142 = vdwg.mxu0
  %v1143 = vadd.f32 %v1057, %v1096
  %v1144 = vadd.f32 %v1058, %v1098
  %v1145 = vadd.f32 %v1059, %v1137
  %v1146 = vadd.f32 %v1060, %v1139
  %v1147 = vmul.f32 %v1143, 0.5
  %v1148 = vtanh.pop %v1147
  %v1149 = vmul.f32 %v1148, 0.5
  %v1150 = vadd.f32 %v1149, 0.5
  %v1151 = vmul.f32 %v1144, 0.5
  %v1152 = vtanh.pop %v1151
  %v1153 = vmul.f32 %v1152, 0.5
  %v1154 = vadd.f32 %v1153, 0.5
  %v1155 = vtanh.pop %v1145
  %v1156 = vmul.f32 %v1146, 0.5
  %v1157 = vtanh.pop %v1156
  %v1158 = vmul.f32 %v1157, 0.5
  %v1159 = vadd.f32 %v1158, 0.5
  %v1160 = vmul.f32 %v1154, %v951
  %v1161 = vmul.f32 %v1150, %v1155
  %v1162 = vadd.f32 %v1160, %v1161
  %v1163 = vtanh.pop %v1162
  %v1164 = vmul.f32 %v1159, %v1163
  %v1165 = vpack.c.bf16 %v1164, %v1164
  %v1166 = vpack.c.bf16 %v1055, %v1055
  %1167 = vmatprep.subr.bf16.mxu0 %v618
  %1168 = vmatpush1.bf16.msra.mxu0 %v617
  %1169 = vmatprep.subr.bf16.mxu0 %v622
  %1170 = vmatpush1.bf16.msra.mxu0 %v621
  %1171 = vmatprep.subr.bf16.mxu0 %v626
  %1172 = vmatpush1.bf16.msra.mxu0 %v625
  %1173 = vmatprep.subr.bf16.mxu0 %v630
  %1174 = vmatpush1.bf16.msra.mxu0 %v629
  %1175 = vmatprep.subr.bf16.mxu0 %v634
  %1176 = vmatpush1.bf16.msra.mxu0 %v633
  %1177 = vmatprep.subr.bf16.mxu0 %v638
  %1178 = vmatpush1.bf16.msra.mxu0 %v637
  %1179 = vmatprep.subr.bf16.mxu0 %v642
  %1180 = vmatpush1.bf16.msra.mxu0 %v641
  %1181 = vmatprep.subr.bf16.mxu0 %v646
  %1182 = vmatpush1.bf16.msra.mxu0 %v645
  %1183 = vmatprep.subr.bf16.mxu0 %v650
  %1184 = vmatpush1.bf16.msra.mxu0 %v649
  %1185 = vmatprep.subr.bf16.mxu0 %v654
  %1186 = vmatpush1.bf16.msra.mxu0 %v653
  %1187 = vmatprep.subr.bf16.mxu0 %v658
  %1188 = vmatpush1.bf16.msra.mxu0 %v657
  %1189 = vmatprep.subr.bf16.mxu0 %v662
  %1190 = vmatpush1.bf16.msra.mxu0 %v661
  %1191 = vmatprep.subr.bf16.mxu0 %v666
  %1192 = vmatpush1.bf16.msra.mxu0 %v665
  %1193 = vmatprep.subr.bf16.mxu0 %v670
  %1194 = vmatpush1.bf16.msra.mxu0 %v669
  %1195 = vmatprep.subr.bf16.mxu0 %v674
  %1196 = vmatpush1.bf16.msra.mxu0 %v673
  %1197 = vmatprep.subr.bf16.mxu0 %v678
  %1198 = vmatpush1.bf16.msra.mxu0 %v677
  %1199 = vmatprep.mubr.bf16.mxu0 %v1166
  %1200 = vmatmul.mubr.bf16.gmra.mrb[0].mxu0 %v1165
  %v1201 = vpop.f32.mrb[0].mxu0
  %v1202 = vadd.f32 %v37, %v1201
  %v1203 = vpop.f32.mrb[0].mxu0
  %v1204 = vadd.f32 %v41, %v1203
  %v1205 = vpop.f32.mrb[0].mxu0
  %v1206 = vpop.f32.mrb[0].mxu0
  %1207 = vdwg.mxu0
  %1208 = vmatprep.subr.bf16.mxu0 %v620
  %1209 = vmatpush1.bf16.msra.mxu0 %v619
  %1210 = vmatprep.subr.bf16.mxu0 %v624
  %1211 = vmatpush1.bf16.msra.mxu0 %v623
  %1212 = vmatprep.subr.bf16.mxu0 %v628
  %1213 = vmatpush1.bf16.msra.mxu0 %v627
  %1214 = vmatprep.subr.bf16.mxu0 %v632
  %1215 = vmatpush1.bf16.msra.mxu0 %v631
  %1216 = vmatprep.subr.bf16.mxu0 %v636
  %1217 = vmatpush1.bf16.msra.mxu0 %v635
  %1218 = vmatprep.subr.bf16.mxu0 %v640
  %1219 = vmatpush1.bf16.msra.mxu0 %v639
  %1220 = vmatprep.subr.bf16.mxu0 %v644
  %1221 = vmatpush1.bf16.msra.mxu0 %v643
  %1222 = vmatprep.subr.bf16.mxu0 %v648
  %1223 = vmatpush1.bf16.msra.mxu0 %v647
  %1224 = vmatprep.subr.bf16.mxu0 %v652
  %1225 = vmatpush1.bf16.msra.mxu0 %v651
  %1226 = vmatprep.subr.bf16.mxu0 %v656
  %1227 = vmatpush1.bf16.msra.mxu0 %v655
  %1228 = vmatprep.subr.bf16.mxu0 %v660
  %1229 = vmatpush1.bf16.msra.mxu0 %v659
  %1230 = vmatprep.subr.bf16.mxu0 %v664
  %1231 = vmatpush1.bf16.msra.mxu0 %v663
  %1232 = vmatprep.subr.bf16.mxu0 %v668
  %1233 = vmatpush1.bf16.msra.mxu0 %v667
  %1234 = vmatprep.subr.bf16.mxu0 %v672
  %1235 = vmatpush1.bf16.msra.mxu0 %v671
  %1236 = vmatprep.subr.bf16.mxu0 %v676
  %1237 = vmatpush1.bf16.msra.mxu0 %v675
  %1238 = vmatprep.subr.bf16.mxu0 %v680
  %1239 = vmatpush1.bf16.msra.mxu0 %v679
  %1240 = vmatprep.mubr.bf16.mxu0 %v1166
  %1241 = vmatmul.mubr.bf16.gmra.mrb[0].mxu0 %v1165
  %v1242 = vpop.f32.mrb[0].mxu0
  %v1243 = vadd.f32 %v45, %v1242
  %v1244 = vpop.f32.mrb[0].mxu0
  %v1245 = vadd.f32 %v49, %v1244
  %v1246 = vpop.f32.mrb[0].mxu0
  %v1247 = vpop.f32.mrb[0].mxu0
  %1248 = vdwg.mxu0
  %v1249 = vmul.f32 %v1202, 0.5
  %v1250 = vtanh.pop %v1249
  %v1251 = vmul.f32 %v1250, 0.5
  %v1252 = vadd.f32 %v1251, 0.5
  %v1253 = vmul.f32 %v1204, 0.5
  %v1254 = vtanh.pop %v1253
  %v1255 = vmul.f32 %v1254, 0.5
  %v1256 = vadd.f32 %v1255, 0.5
  %v1257 = vtanh.pop %v1243
  %v1258 = vmul.f32 %v1245, 0.5
  %v1259 = vtanh.pop %v1258
  %v1260 = vmul.f32 %v1259, 0.5
  %v1261 = vadd.f32 %v1260, 0.5
  %v1262 = vmul.f32 %v1256, %v1053
  %v1263 = vmul.f32 %v1252, %v1257
  %v1264 = vadd.f32 %v1262, %v1263
  %v1265 = vtanh.pop %v1264
  %v1266 = vmul.f32 %v1261, %v1265
  %s1267 = scalar_lea.vmem %s0, 96
  %v1268 = vld [vmem:[%s1267] sm:$0xff]
  %v1269 = vld [vmem:[%s1267 + $0x8] sm:$0xff]
  %v1270 = vld [vmem:[%s1267 + $0x10] sm:$0xff]
  %v1271 = vld [vmem:[%s1267 + $0x18] sm:$0xff]
  %1272 = vmatprep.subr.bf16.mxu0 %v192
  %1273 = vmatpush1.bf16.msra.mxu0 %v191
  %1274 = vmatprep.subr.bf16.mxu0 %v196
  %1275 = vmatpush1.bf16.msra.mxu0 %v195
  %1276 = vmatprep.subr.bf16.mxu0 %v200
  %1277 = vmatpush1.bf16.msra.mxu0 %v199
  %1278 = vmatprep.subr.bf16.mxu0 %v204
  %1279 = vmatpush1.bf16.msra.mxu0 %v203
  %1280 = vmatprep.subr.bf16.mxu0 %v208
  %1281 = vmatpush1.bf16.msra.mxu0 %v207
  %1282 = vmatprep.subr.bf16.mxu0 %v212
  %1283 = vmatpush1.bf16.msra.mxu0 %v211
  %1284 = vmatprep.subr.bf16.mxu0 %v216
  %1285 = vmatpush1.bf16.msra.mxu0 %v215
  %1286 = vmatprep.subr.bf16.mxu0 %v220
  %1287 = vmatpush1.bf16.msra.mxu0 %v219
  %1288 = vmatprep.subr.bf16.mxu0 0
  %1289 = vmatpush1.bf16.msra.mxu0 0
  %1290 = vmatprep.subr.bf16.mxu0 0
  %1291 = vmatpush1.bf16.msra.mxu0 0
  %1292 = vmatprep.subr.bf16.mxu0 0
  %1293 = vmatpush1.bf16.msra.mxu0 0
  %1294 = vmatprep.subr.bf16.mxu0 0
  %1295 = vmatpush1.bf16.msra.mxu0 0
  %1296 = vmatprep.subr.bf16.mxu0 0
  %1297 = vmatpush1.bf16.msra.mxu0 0
  %1298 = vmatprep.subr.bf16.mxu0 0
  %1299 = vmatpush1.bf16.msra.mxu0 0
  %1300 = vmatprep.subr.bf16.mxu0 0
  %1301 = vmatpush1.bf16.msra.mxu0 0
  %1302 = vmatprep.subr.bf16.mxu0 0
  %1303 = vmatpush1.bf16.msra.mxu0 0
  %1304 = vmatprep.mubr.bf16.mxu0 0
  %1305 = vmatmul.mubr.bf16.gmra.mrb[0].mxu0 %v1165
  %v1306 = vpop.f32.mrb[0].mxu0
  %v1307 = vadd.f32 0.0, %v1306
  %v1308 = vpop.f32.mrb[0].mxu0
  %v1309 = vadd.f32 0.0, %v1308
  %v1310 = vpop.f32.mrb[0].mxu0
  %v1311 = vpop.f32.mrb[0].mxu0
  %1312 = vdwg.mxu0
  %1313 = vmatprep.subr.bf16.mxu0 %v194
  %1314 = vmatpush1.bf16.msra.mxu0 %v193
  %1315 = vmatprep.subr.bf16.mxu0 %v198
  %1316 = vmatpush1.bf16.msra.mxu0 %v197
  %1317 = vmatprep.subr.bf16.mxu0 %v202
  %1318 = vmatpush1.bf16.msra.mxu0 %v201
  %1319 = vmatprep.subr.bf16.mxu0 %v206
  %1320 = vmatpush1.bf16.msra.mxu0 %v205
  %1321 = vmatprep.subr.bf16.mxu0 %v210
  %1322 = vmatpush1.bf16.msra.mxu0 %v209
  %1323 = vmatprep.subr.bf16.mxu0 %v214
  %1324 = vmatpush1.bf16.msra.mxu0 %v213
  %1325 = vmatprep.subr.bf16.mxu0 %v218
  %1326 = vmatpush1.bf16.msra.mxu0 %v217
  %1327 = vmatprep.subr.bf16.mxu0 %v222
  %1328 = vmatpush1.bf16.msra.mxu0 %v221
  %1329 = vmatprep.subr.bf16.mxu0 0
  %1330 = vmatpush1.bf16.msra.mxu0 0
  %1331 = vmatprep.subr.bf16.mxu0 0
  %1332 = vmatpush1.bf16.msra.mxu0 0
  %1333 = vmatprep.subr.bf16.mxu0 0
  %1334 = vmatpush1.bf16.msra.mxu0 0
  %1335 = vmatprep.subr.bf16.mxu0 0
  %1336 = vmatpush1.bf16.msra.mxu0 0
  %1337 = vmatprep.subr.bf16.mxu0 0
  %1338 = vmatpush1.bf16.msra.mxu0 0
  %1339 = vmatprep.subr.bf16.mxu0 0
  %1340 = vmatpush1.bf16.msra.mxu0 0
  %1341 = vmatprep.subr.bf16.mxu0 0
  %1342 = vmatpush1.bf16.msra.mxu0 0
  %1343 = vmatprep.subr.bf16.mxu0 0
  %1344 = vmatpush1.bf16.msra.mxu0 0
  %1345 = vmatprep.mubr.bf16.mxu0 0
  %1346 = vmatmul.mubr.bf16.gmra.mrb[0].mxu0 %v1165
  %v1347 = vpop.f32.mrb[0].mxu0
  %v1348 = vadd.f32 0.0, %v1347
  %v1349 = vpop.f32.mrb[0].mxu0
  %v1350 = vadd.f32 0.0, %v1349
  %v1351 = vpop.f32.mrb[0].mxu0
  %v1352 = vpop.f32.mrb[0].mxu0
  %1353 = vdwg.mxu0
  %v1354 = vadd.f32 %v1268, %v1307
  %v1355 = vadd.f32 %v1269, %v1309
  %v1356 = vadd.f32 %v1270, %v1348
  %v1357 = vadd.f32 %v1271, %v1350
  %v1358 = vmul.f32 %v1354, 0.5
  %v1359 = vtanh.pop %v1358
  %v1360 = vmul.f32 %v1359, 0.5
  %v1361 = vadd.f32 %v1360, 0.5
  %v1362 = vmul.f32 %v1355, 0.5
  %v1363 = vtanh.pop %v1362
  %v1364 = vmul.f32 %v1363, 0.5
  %v1365 = vadd.f32 %v1364, 0.5
  %v1366 = vtanh.pop %v1356
  %v1367 = vmul.f32 %v1357, 0.5
  %v1368 = vtanh.pop %v1367
  %v1369 = vmul.f32 %v1368, 0.5
  %v1370 = vadd.f32 %v1369, 0.5
  %v1371 = vmul.f32 %v1365, %v1162
  %v1372 = vmul.f32 %v1361, %v1366
  %v1373 = vadd.f32 %v1371, %v1372
  %v1374 = vtanh.pop %v1373
  %v1375 = vmul.f32 %v1370, %v1374
  %v1376 = vpack.c.bf16 %v1375, %v1375
  %v1377 = vpack.c.bf16 %v1266, %v1266
  %1378 = vmatprep.subr.bf16.mxu0 %v618
  %1379 = vmatpush1.bf16.msra.mxu0 %v617
  %1380 = vmatprep.subr.bf16.mxu0 %v622
  %1381 = vmatpush1.bf16.msra.mxu0 %v621
  %1382 = vmatprep.subr.bf16.mxu0 %v626
  %1383 = vmatpush1.bf16.msra.mxu0 %v625
  %1384 = vmatprep.subr.bf16.mxu0 %v630
  %1385 = vmatpush1.bf16.msra.mxu0 %v629
  %1386 = vmatprep.subr.bf16.mxu0 %v634
  %1387 = vmatpush1.bf16.msra.mxu0 %v633
  %1388 = vmatprep.subr.bf16.mxu0 %v638
  %1389 = vmatpush1.bf16.msra.mxu0 %v637
  %1390 = vmatprep.subr.bf16.mxu0 %v642
  %1391 = vmatpush1.bf16.msra.mxu0 %v641
  %1392 = vmatprep.subr.bf16.mxu0 %v646
  %1393 = vmatpush1.bf16.msra.mxu0 %v645
  %1394 = vmatprep.subr.bf16.mxu0 %v650
  %1395 = vmatpush1.bf16.msra.mxu0 %v649
  %1396 = vmatprep.subr.bf16.mxu0 %v654
  %1397 = vmatpush1.bf16.msra.mxu0 %v653
  %1398 = vmatprep.subr.bf16.mxu0 %v658
  %1399 = vmatpush1.bf16.msra.mxu0 %v657
  %1400 = vmatprep.subr.bf16.mxu0 %v662
  %1401 = vmatpush1.bf16.msra.mxu0 %v661
  %1402 = vmatprep.subr.bf16.mxu0 %v666
  %1403 = vmatpush1.bf16.msra.mxu0 %v665
  %1404 = vmatprep.subr.bf16.mxu0 %v670
  %1405 = vmatpush1.bf16.msra.mxu0 %v669
  %1406 = vmatprep.subr.bf16.mxu0 %v674
  %1407 = vmatpush1.bf16.msra.mxu0 %v673
  %1408 = vmatprep.subr.bf16.mxu0 %v678
  %1409 = vmatpush1.bf16.msra.mxu0 %v677
  %1410 = vmatprep.mubr.bf16.mxu0 %v1377
  %1411 = vmatmul.mubr.bf16.gmra.mrb[0].mxu0 %v1376
  %v1412 = vpop.f32.mrb[0].mxu0
  %v1413 = vadd.f32 %v37, %v1412
  %v1414 = vpop.f32.mrb[0].mxu0
  %v1415 = vadd.f32 %v41, %v1414
  %v1416 = vpop.f32.mrb[0].mxu0
  %v1417 = vpop.f32.mrb[0].mxu0
  %1418 = vdwg.mxu0
  %1419 = vmatprep.subr.bf16.mxu0 %v620
  %1420 = vmatpush1.bf16.msra.mxu0 %v619
  %1421 = vmatprep.subr.bf16.mxu0 %v624
  %1422 = vmatpush1.bf16.msra.mxu0 %v623
  %1423 = vmatprep.subr.bf16.mxu0 %v628
  %1424 = vmatpush1.bf16.msra.mxu0 %v627
  %1425 = vmatprep.subr.bf16.mxu0 %v632
  %1426 = vmatpush1.bf16.msra.mxu0 %v631
  %1427 = vmatprep.subr.bf16.mxu0 %v636
  %1428 = vmatpush1.bf16.msra.mxu0 %v635
  %1429 = vmatprep.subr.bf16.mxu0 %v640
  %1430 = vmatpush1.bf16.msra.mxu0 %v639
  %1431 = vmatprep.subr.bf16.mxu0 %v644
  %1432 = vmatpush1.bf16.msra.mxu0 %v643
  %1433 = vmatprep.subr.bf16.mxu0 %v648
  %1434 = vmatpush1.bf16.msra.mxu0 %v647
  %1435 = vmatprep.subr.bf16.mxu0 %v652
  %1436 = vmatpush1.bf16.msra.mxu0 %v651
  %1437 = vmatprep.subr.bf16.mxu0 %v656
  %1438 = vmatpush1.bf16.msra.mxu0 %v655
  %1439 = vmatprep.subr.bf16.mxu0 %v660
  %1440 = vmatpush1.bf16.msra.mxu0 %v659
  %1441 = vmatprep.subr.bf16.mxu0 %v664
  %1442 = vmatpush1.bf16.msra.mxu0 %v663
  %1443 = vmatprep.subr.bf16.mxu0 %v668
  %1444 = vmatpush1.bf16.msra.mxu0 %v667
  %1445 = vmatprep.subr.bf16.mxu0 %v672
  %1446 = vmatpush1.bf16.msra.mxu0 %v671
  %1447 = vmatprep.subr.bf16.mxu0 %v676
  %1448 = vmatpush1.bf16.msra.mxu0 %v675
  %1449 = vmatprep.subr.bf16.mxu0 %v680
  %1450 = vmatpush1.bf16.msra.mxu0 %v679
  %1451 = vmatprep.mubr.bf16.mxu0 %v1377
  %1452 = vmatmul.mubr.bf16.gmra.mrb[0].mxu0 %v1376
  %v1453 = vpop.f32.mrb[0].mxu0
  %v1454 = vadd.f32 %v45, %v1453
  %v1455 = vpop.f32.mrb[0].mxu0
  %v1456 = vadd.f32 %v49, %v1455
  %v1457 = vpop.f32.mrb[0].mxu0
  %v1458 = vpop.f32.mrb[0].mxu0
  %1459 = vdwg.mxu0
  %v1460 = vmul.f32 %v1413, 0.5
  %v1461 = vtanh.pop %v1460
  %v1462 = vmul.f32 %v1461, 0.5
  %v1463 = vadd.f32 %v1462, 0.5
  %v1464 = vmul.f32 %v1415, 0.5
  %v1465 = vtanh.pop %v1464
  %v1466 = vmul.f32 %v1465, 0.5
  %v1467 = vadd.f32 %v1466, 0.5
  %v1468 = vtanh.pop %v1454
  %v1469 = vmul.f32 %v1456, 0.5
  %v1470 = vtanh.pop %v1469
  %v1471 = vmul.f32 %v1470, 0.5
  %v1472 = vadd.f32 %v1471, 0.5
  %v1473 = vmul.f32 %v1467, %v1264
  %v1474 = vmul.f32 %v1463, %v1468
  %v1475 = vadd.f32 %v1473, %v1474
  %v1476 = vtanh.pop %v1475
  %v1477 = vmul.f32 %v1472, %v1476
  %s1478 = scalar_lea.vmem %s0, 128
  %v1479 = vld [vmem:[%s1478] sm:$0xff]
  %v1480 = vld [vmem:[%s1478 + $0x8] sm:$0xff]
  %v1481 = vld [vmem:[%s1478 + $0x10] sm:$0xff]
  %v1482 = vld [vmem:[%s1478 + $0x18] sm:$0xff]
  %1483 = vmatprep.subr.bf16.mxu0 %v192
  %1484 = vmatpush1.bf16.msra.mxu0 %v191
  %1485 = vmatprep.subr.bf16.mxu0 %v196
  %1486 = vmatpush1.bf16.msra.mxu0 %v195
  %1487 = vmatprep.subr.bf16.mxu0 %v200
  %1488 = vmatpush1.bf16.msra.mxu0 %v199
  %1489 = vmatprep.subr.bf16.mxu0 %v204
  %1490 = vmatpush1.bf16.msra.mxu0 %v203
  %1491 = vmatprep.subr.bf16.mxu0 %v208
  %1492 = vmatpush1.bf16.msra.mxu0 %v207
  %1493 = vmatprep.subr.bf16.mxu0 %v212
  %1494 = vmatpush1.bf16.msra.mxu0 %v211
  %1495 = vmatprep.subr.bf16.mxu0 %v216
  %1496 = vmatpush1.bf16.msra.mxu0 %v215
  %1497 = vmatprep.subr.bf16.mxu0 %v220
  %1498 = vmatpush1.bf16.msra.mxu0 %v219
  %1499 = vmatprep.subr.bf16.mxu0 0
  %1500 = vmatpush1.bf16.msra.mxu0 0
  %1501 = vmatprep.subr.bf16.mxu0 0
  %1502 = vmatpush1.bf16.msra.mxu0 0
  %1503 = vmatprep.subr.bf16.mxu0 0
  %1504 = vmatpush1.bf16.msra.mxu0 0
  %1505 = vmatprep.subr.bf16.mxu0 0
  %1506 = vmatpush1.bf16.msra.mxu0 0
  %1507 = vmatprep.subr.bf16.mxu0 0
  %1508 = vmatpush1.bf16.msra.mxu0 0
  %1509 = vmatprep.subr.bf16.mxu0 0
  %1510 = vmatpush1.bf16.msra.mxu0 0
  %1511 = vmatprep.subr.bf16.mxu0 0
  %1512 = vmatpush1.bf16.msra.mxu0 0
  %1513 = vmatprep.subr.bf16.mxu0 0
  %1514 = vmatpush1.bf16.msra.mxu0 0
  %1515 = vmatprep.mubr.bf16.mxu0 0
  %1516 = vmatmul.mubr.bf16.gmra.mrb[0].mxu0 %v1376
  %v1517 = vpop.f32.mrb[0].mxu0
  %v1518 = vadd.f32 0.0, %v1517
  %v1519 = vpop.f32.mrb[0].mxu0
  %v1520 = vadd.f32 0.0, %v1519
  %v1521 = vpop.f32.mrb[0].mxu0
  %v1522 = vpop.f32.mrb[0].mxu0
  %1523 = vdwg.mxu0
  %1524 = vmatprep.subr.bf16.mxu0 %v194
  %1525 = vmatpush1.bf16.msra.mxu0 %v193
  %1526 = vmatprep.subr.bf16.mxu0 %v198
  %1527 = vmatpush1.bf16.msra.mxu0 %v197
  %1528 = vmatprep.subr.bf16.mxu0 %v202
  %1529 = vmatpush1.bf16.msra.mxu0 %v201
  %1530 = vmatprep.subr.bf16.mxu0 %v206
  %1531 = vmatpush1.bf16.msra.mxu0 %v205
  %1532 = vmatprep.subr.bf16.mxu0 %v210
  %1533 = vmatpush1.bf16.msra.mxu0 %v209
  %1534 = vmatprep.subr.bf16.mxu0 %v214
  %1535 = vmatpush1.bf16.msra.mxu0 %v213
  %1536 = vmatprep.subr.bf16.mxu0 %v218
  %1537 = vmatpush1.bf16.msra.mxu0 %v217
  %1538 = vmatprep.subr.bf16.mxu0 %v222
  %1539 = vmatpush1.bf16.msra.mxu0 %v221
  %1540 = vmatprep.subr.bf16.mxu0 0
  %1541 = vmatpush1.bf16.msra.mxu0 0
  %1542 = vmatprep.subr.bf16.mxu0 0
  %1543 = vmatpush1.bf16.msra.mxu0 0
  %1544 = vmatprep.subr.bf16.mxu0 0
  %1545 = vmatpush1.bf16.msra.mxu0 0
  %1546 = vmatprep.subr.bf16.mxu0 0
  %1547 = vmatpush1.bf16.msra.mxu0 0
  %1548 = vmatprep.subr.bf16.mxu0 0
  %1549 = vmatpush1.bf16.msra.mxu0 0
  %1550 = vmatprep.subr.bf16.mxu0 0
  %1551 = vmatpush1.bf16.msra.mxu0 0
  %1552 = vmatprep.subr.bf16.mxu0 0
  %1553 = vmatpush1.bf16.msra.mxu0 0
  %1554 = vmatprep.subr.bf16.mxu0 0
  %1555 = vmatpush1.bf16.msra.mxu0 0
  %1556 = vmatprep.mubr.bf16.mxu0 0
  %1557 = vmatmul.mubr.bf16.gmra.mrb[0].mxu0 %v1376
  %v1558 = vpop.f32.mrb[0].mxu0
  %v1559 = vadd.f32 0.0, %v1558
  %v1560 = vpop.f32.mrb[0].mxu0
  %v1561 = vadd.f32 0.0, %v1560
  %v1562 = vpop.f32.mrb[0].mxu0
  %v1563 = vpop.f32.mrb[0].mxu0
  %1564 = vdwg.mxu0
  %v1565 = vadd.f32 %v1479, %v1518
  %v1566 = vadd.f32 %v1480, %v1520
  %v1567 = vadd.f32 %v1481, %v1559
  %v1568 = vadd.f32 %v1482, %v1561
  %v1569 = vmul.f32 %v1565, 0.5
  %v1570 = vtanh.pop %v1569
  %v1571 = vmul.f32 %v1570, 0.5
  %v1572 = vadd.f32 %v1571, 0.5
  %v1573 = vmul.f32 %v1566, 0.5
  %v1574 = vtanh.pop %v1573
  %v1575 = vmul.f32 %v1574, 0.5
  %v1576 = vadd.f32 %v1575, 0.5
  %v1577 = vtanh.pop %v1567
  %v1578 = vmul.f32 %v1568, 0.5
  %v1579 = vtanh.pop %v1578
  %v1580 = vmul.f32 %v1579, 0.5
  %v1581 = vadd.f32 %v1580, 0.5
  %v1582 = vmul.f32 %v1576, %v1373
  %v1583 = vmul.f32 %v1572, %v1577
  %v1584 = vadd.f32 %v1582, %v1583
  %v1585 = vtanh.pop %v1584
  %v1586 = vmul.f32 %v1581, %v1585
  %v1587 = vpack.c.bf16 %v1586, %v1586
  %v1588 = vpack.c.bf16 %v1477, %v1477
  %1589 = vmatprep.subr.bf16.mxu0 %v618
  %1590 = vmatpush1.bf16.msra.mxu0 %v617
  %1591 = vmatprep.subr.bf16.mxu0 %v622
  %1592 = vmatpush1.bf16.msra.mxu0 %v621
  %1593 = vmatprep.subr.bf16.mxu0 %v626
  %1594 = vmatpush1.bf16.msra.mxu0 %v625
  %1595 = vmatprep.subr.bf16.mxu0 %v630
  %1596 = vmatpush1.bf16.msra.mxu0 %v629
  %1597 = vmatprep.subr.bf16.mxu0 %v634
  %1598 = vmatpush1.bf16.msra.mxu0 %v633
  %1599 = vmatprep.subr.bf16.mxu0 %v638
  %1600 = vmatpush1.bf16.msra.mxu0 %v637
  %1601 = vmatprep.subr.bf16.mxu0 %v642
  %1602 = vmatpush1.bf16.msra.mxu0 %v641
  %1603 = vmatprep.subr.bf16.mxu0 %v646
  %1604 = vmatpush1.bf16.msra.mxu0 %v645
  %1605 = vmatprep.subr.bf16.mxu0 %v650
  %1606 = vmatpush1.bf16.msra.mxu0 %v649
  %1607 = vmatprep.subr.bf16.mxu0 %v654
  %1608 = vmatpush1.bf16.msra.mxu0 %v653
  %1609 = vmatprep.subr.bf16.mxu0 %v658
  %1610 = vmatpush1.bf16.msra.mxu0 %v657
  %1611 = vmatprep.subr.bf16.mxu0 %v662
  %1612 = vmatpush1.bf16.msra.mxu0 %v661
  %1613 = vmatprep.subr.bf16.mxu0 %v666
  %1614 = vmatpush1.bf16.msra.mxu0 %v665
  %1615 = vmatprep.subr.bf16.mxu0 %v670
  %1616 = vmatpush1.bf16.msra.mxu0 %v669
  %1617 = vmatprep.subr.bf16.mxu0 %v674
  %1618 = vmatpush1.bf16.msra.mxu0 %v673
  %1619 = vmatprep.subr.bf16.mxu0 %v678
  %1620 = vmatpush1.bf16.msra.mxu0 %v677
  %1621 = vmatprep.mubr.bf16.mxu0 %v1588
  %1622 = vmatmul.mubr.bf16.gmra.mrb[0].mxu0 %v1587
  %v1623 = vpop.f32.mrb[0].mxu0
  %v1624 = vadd.f32 %v37, %v1623
  %v1625 = vpop.f32.mrb[0].mxu0
  %v1626 = vadd.f32 %v41, %v1625
  %v1627 = vpop.f32.mrb[0].mxu0
  %v1628 = vpop.f32.mrb[0].mxu0
  %1629 = vdwg.mxu0
  %1630 = vmatprep.subr.bf16.mxu0 %v620
  %1631 = vmatpush1.bf16.msra.mxu0 %v619
  %1632 = vmatprep.subr.bf16.mxu0 %v624
  %1633 = vmatpush1.bf16.msra.mxu0 %v623
  %1634 = vmatprep.subr.bf16.mxu0 %v628
  %1635 = vmatpush1.bf16.msra.mxu0 %v627
  %1636 = vmatprep.subr.bf16.mxu0 %v632
  %1637 = vmatpush1.bf16.msra.mxu0 %v631
  %1638 = vmatprep.subr.bf16.mxu0 %v636
  %1639 = vmatpush1.bf16.msra.mxu0 %v635
  %1640 = vmatprep.subr.bf16.mxu0 %v640
  %1641 = vmatpush1.bf16.msra.mxu0 %v639
  %1642 = vmatprep.subr.bf16.mxu0 %v644
  %1643 = vmatpush1.bf16.msra.mxu0 %v643
  %1644 = vmatprep.subr.bf16.mxu0 %v648
  %1645 = vmatpush1.bf16.msra.mxu0 %v647
  %1646 = vmatprep.subr.bf16.mxu0 %v652
  %1647 = vmatpush1.bf16.msra.mxu0 %v651
  %1648 = vmatprep.subr.bf16.mxu0 %v656
  %1649 = vmatpush1.bf16.msra.mxu0 %v655
  %1650 = vmatprep.subr.bf16.mxu0 %v660
  %1651 = vmatpush1.bf16.msra.mxu0 %v659
  %1652 = vmatprep.subr.bf16.mxu0 %v664
  %1653 = vmatpush1.bf16.msra.mxu0 %v663
  %1654 = vmatprep.subr.bf16.mxu0 %v668
  %1655 = vmatpush1.bf16.msra.mxu0 %v667
  %1656 = vmatprep.subr.bf16.mxu0 %v672
  %1657 = vmatpush1.bf16.msra.mxu0 %v671
  %1658 = vmatprep.subr.bf16.mxu0 %v676
  %1659 = vmatpush1.bf16.msra.mxu0 %v675
  %1660 = vmatprep.subr.bf16.mxu0 %v680
  %1661 = vmatpush1.bf16.msra.mxu0 %v679
  %1662 = vmatprep.mubr.bf16.mxu0 %v1588
  %1663 = vmatmul.mubr.bf16.gmra.mrb[0].mxu0 %v1587
  %v1664 = vpop.f32.mrb[0].mxu0
  %v1665 = vadd.f32 %v45, %v1664
  %v1666 = vpop.f32.mrb[0].mxu0
  %v1667 = vadd.f32 %v49, %v1666
  %v1668 = vpop.f32.mrb[0].mxu0
  %v1669 = vpop.f32.mrb[0].mxu0
  %1670 = vdwg.mxu0
  %v1671 = vmul.f32 %v1624, 0.5
  %v1672 = vtanh.pop %v1671
  %v1673 = vmul.f32 %v1672, 0.5
  %v1674 = vadd.f32 %v1673, 0.5
  %v1675 = vmul.f32 %v1626, 0.5
  %v1676 = vtanh.pop %v1675
  %v1677 = vmul.f32 %v1676, 0.5
  %v1678 = vadd.f32 %v1677, 0.5
  %v1679 = vtanh.pop %v1665
  %v1680 = vmul.f32 %v1667, 0.5
  %v1681 = vtanh.pop %v1680
  %v1682 = vmul.f32 %v1681, 0.5
  %v1683 = vadd.f32 %v1682, 0.5
  %v1684 = vmul.f32 %v1678, %v1475
  %v1685 = vmul.f32 %v1674, %v1679
  %v1686 = vadd.f32 %v1684, %v1685
  %v1687 = vtanh.pop %v1686
  %v1688 = vmul.f32 %v1683, %v1687
  %s1689 = scalar_lea.vmem %s0, 160
  %v1690 = vld [vmem:[%s1689] sm:$0xff]
  %v1691 = vld [vmem:[%s1689 + $0x8] sm:$0xff]
  %v1692 = vld [vmem:[%s1689 + $0x10] sm:$0xff]
  %v1693 = vld [vmem:[%s1689 + $0x18] sm:$0xff]
  %1694 = vmatprep.subr.bf16.mxu0 %v192
  %1695 = vmatpush1.bf16.msra.mxu0 %v191
  %1696 = vmatprep.subr.bf16.mxu0 %v196
  %1697 = vmatpush1.bf16.msra.mxu0 %v195
  %1698 = vmatprep.subr.bf16.mxu0 %v200
  %1699 = vmatpush1.bf16.msra.mxu0 %v199
  %1700 = vmatprep.subr.bf16.mxu0 %v204
  %1701 = vmatpush1.bf16.msra.mxu0 %v203
  %1702 = vmatprep.subr.bf16.mxu0 %v208
  %1703 = vmatpush1.bf16.msra.mxu0 %v207
  %1704 = vmatprep.subr.bf16.mxu0 %v212
  %1705 = vmatpush1.bf16.msra.mxu0 %v211
  %1706 = vmatprep.subr.bf16.mxu0 %v216
  %1707 = vmatpush1.bf16.msra.mxu0 %v215
  %1708 = vmatprep.subr.bf16.mxu0 %v220
  %1709 = vmatpush1.bf16.msra.mxu0 %v219
  %1710 = vmatprep.subr.bf16.mxu0 0
  %1711 = vmatpush1.bf16.msra.mxu0 0
  %1712 = vmatprep.subr.bf16.mxu0 0
  %1713 = vmatpush1.bf16.msra.mxu0 0
  %1714 = vmatprep.subr.bf16.mxu0 0
  %1715 = vmatpush1.bf16.msra.mxu0 0
  %1716 = vmatprep.subr.bf16.mxu0 0
  %1717 = vmatpush1.bf16.msra.mxu0 0
  %1718 = vmatprep.subr.bf16.mxu0 0
  %1719 = vmatpush1.bf16.msra.mxu0 0
  %1720 = vmatprep.subr.bf16.mxu0 0
  %1721 = vmatpush1.bf16.msra.mxu0 0
  %1722 = vmatprep.subr.bf16.mxu0 0
  %1723 = vmatpush1.bf16.msra.mxu0 0
  %1724 = vmatprep.subr.bf16.mxu0 0
  %1725 = vmatpush1.bf16.msra.mxu0 0
  %1726 = vmatprep.mubr.bf16.mxu0 0
  %1727 = vmatmul.mubr.bf16.gmra.mrb[0].mxu0 %v1587
  %v1728 = vpop.f32.mrb[0].mxu0
  %v1729 = vadd.f32 0.0, %v1728
  %v1730 = vpop.f32.mrb[0].mxu0
  %v1731 = vadd.f32 0.0, %v1730
  %v1732 = vpop.f32.mrb[0].mxu0
  %v1733 = vpop.f32.mrb[0].mxu0
  %1734 = vdwg.mxu0
  %1735 = vmatprep.subr.bf16.mxu0 %v194
  %1736 = vmatpush1.bf16.msra.mxu0 %v193
  %1737 = vmatprep.subr.bf16.mxu0 %v198
  %1738 = vmatpush1.bf16.msra.mxu0 %v197
  %1739 = vmatprep.subr.bf16.mxu0 %v202
  %1740 = vmatpush1.bf16.msra.mxu0 %v201
  %1741 = vmatprep.subr.bf16.mxu0 %v206
  %1742 = vmatpush1.bf16.msra.mxu0 %v205
  %1743 = vmatprep.subr.bf16.mxu0 %v210
  %1744 = vmatpush1.bf16.msra.mxu0 %v209
  %1745 = vmatprep.subr.bf16.mxu0 %v214
  %1746 = vmatpush1.bf16.msra.mxu0 %v213
  %1747 = vmatprep.subr.bf16.mxu0 %v218
  %1748 = vmatpush1.bf16.msra.mxu0 %v217
  %1749 = vmatprep.subr.bf16.mxu0 %v222
  %1750 = vmatpush1.bf16.msra.mxu0 %v221
  %1751 = vmatprep.subr.bf16.mxu0 0
  %1752 = vmatpush1.bf16.msra.mxu0 0
  %1753 = vmatprep.subr.bf16.mxu0 0
  %1754 = vmatpush1.bf16.msra.mxu0 0
  %1755 = vmatprep.subr.bf16.mxu0 0
  %1756 = vmatpush1.bf16.msra.mxu0 0
  %1757 = vmatprep.subr.bf16.mxu0 0
  %1758 = vmatpush1.bf16.msra.mxu0 0
  %1759 = vmatprep.subr.bf16.mxu0 0
  %1760 = vmatpush1.bf16.msra.mxu0 0
  %1761 = vmatprep.subr.bf16.mxu0 0
  %1762 = vmatpush1.bf16.msra.mxu0 0
  %1763 = vmatprep.subr.bf16.mxu0 0
  %1764 = vmatpush1.bf16.msra.mxu0 0
  %1765 = vmatprep.subr.bf16.mxu0 0
  %1766 = vmatpush1.bf16.msra.mxu0 0
  %1767 = vmatprep.mubr.bf16.mxu0 0
  %1768 = vmatmul.mubr.bf16.gmra.mrb[0].mxu0 %v1587
  %v1769 = vpop.f32.mrb[0].mxu0
  %v1770 = vadd.f32 0.0, %v1769
  %v1771 = vpop.f32.mrb[0].mxu0
  %v1772 = vadd.f32 0.0, %v1771
  %v1773 = vpop.f32.mrb[0].mxu0
  %v1774 = vpop.f32.mrb[0].mxu0
  %1775 = vdwg.mxu0
  %v1776 = vadd.f32 %v1690, %v1729
  %v1777 = vadd.f32 %v1691, %v1731
  %v1778 = vadd.f32 %v1692, %v1770
  %v1779 = vadd.f32 %v1693, %v1772
  %v1780 = vmul.f32 %v1776, 0.5
  %v1781 = vtanh.pop %v1780
  %v1782 = vmul.f32 %v1781, 0.5
  %v1783 = vadd.f32 %v1782, 0.5
  %v1784 = vmul.f32 %v1777, 0.5
  %v1785 = vtanh.pop %v1784
  %v1786 = vmul.f32 %v1785, 0.5
  %v1787 = vadd.f32 %v1786, 0.5
  %v1788 = vtanh.pop %v1778
  %v1789 = vmul.f32 %v1779, 0.5
  %v1790 = vtanh.pop %v1789
  %v1791 = vmul.f32 %v1790, 0.5
  %v1792 = vadd.f32 %v1791, 0.5
  %v1793 = vmul.f32 %v1787, %v1584
  %v1794 = vmul.f32 %v1783, %v1788
  %v1795 = vadd.f32 %v1793, %v1794
  %v1796 = vtanh.pop %v1795
  %v1797 = vmul.f32 %v1792, %v1796
  %v1798 = vpack.c.bf16 %v1797, %v1797
  %v1799 = vpack.c.bf16 %v1688, %v1688
  %1800 = vmatprep.subr.bf16.mxu0 %v618
  %1801 = vmatpush1.bf16.msra.mxu0 %v617
  %1802 = vmatprep.subr.bf16.mxu0 %v622
  %1803 = vmatpush1.bf16.msra.mxu0 %v621
  %1804 = vmatprep.subr.bf16.mxu0 %v626
  %1805 = vmatpush1.bf16.msra.mxu0 %v625
  %1806 = vmatprep.subr.bf16.mxu0 %v630
  %1807 = vmatpush1.bf16.msra.mxu0 %v629
  %1808 = vmatprep.subr.bf16.mxu0 %v634
  %1809 = vmatpush1.bf16.msra.mxu0 %v633
  %1810 = vmatprep.subr.bf16.mxu0 %v638
  %1811 = vmatpush1.bf16.msra.mxu0 %v637
  %1812 = vmatprep.subr.bf16.mxu0 %v642
  %1813 = vmatpush1.bf16.msra.mxu0 %v641
  %1814 = vmatprep.subr.bf16.mxu0 %v646
  %1815 = vmatpush1.bf16.msra.mxu0 %v645
  %1816 = vmatprep.subr.bf16.mxu0 %v650
  %1817 = vmatpush1.bf16.msra.mxu0 %v649
  %1818 = vmatprep.subr.bf16.mxu0 %v654
  %1819 = vmatpush1.bf16.msra.mxu0 %v653
  %1820 = vmatprep.subr.bf16.mxu0 %v658
  %1821 = vmatpush1.bf16.msra.mxu0 %v657
  %1822 = vmatprep.subr.bf16.mxu0 %v662
  %1823 = vmatpush1.bf16.msra.mxu0 %v661
  %1824 = vmatprep.subr.bf16.mxu0 %v666
  %1825 = vmatpush1.bf16.msra.mxu0 %v665
  %1826 = vmatprep.subr.bf16.mxu0 %v670
  %1827 = vmatpush1.bf16.msra.mxu0 %v669
  %1828 = vmatprep.subr.bf16.mxu0 %v674
  %1829 = vmatpush1.bf16.msra.mxu0 %v673
  %1830 = vmatprep.subr.bf16.mxu0 %v678
  %1831 = vmatpush1.bf16.msra.mxu0 %v677
  %1832 = vmatprep.mubr.bf16.mxu0 %v1799
  %1833 = vmatmul.mubr.bf16.gmra.mrb[0].mxu0 %v1798
  %v1834 = vpop.f32.mrb[0].mxu0
  %v1835 = vadd.f32 %v37, %v1834
  %v1836 = vpop.f32.mrb[0].mxu0
  %v1837 = vadd.f32 %v41, %v1836
  %v1838 = vpop.f32.mrb[0].mxu0
  %v1839 = vpop.f32.mrb[0].mxu0
  %1840 = vdwg.mxu0
  %1841 = vmatprep.subr.bf16.mxu0 %v620
  %1842 = vmatpush1.bf16.msra.mxu0 %v619
  %1843 = vmatprep.subr.bf16.mxu0 %v624
  %1844 = vmatpush1.bf16.msra.mxu0 %v623
  %1845 = vmatprep.subr.bf16.mxu0 %v628
  %1846 = vmatpush1.bf16.msra.mxu0 %v627
  %1847 = vmatprep.subr.bf16.mxu0 %v632
  %1848 = vmatpush1.bf16.msra.mxu0 %v631
  %1849 = vmatprep.subr.bf16.mxu0 %v636
  %1850 = vmatpush1.bf16.msra.mxu0 %v635
  %1851 = vmatprep.subr.bf16.mxu0 %v640
  %1852 = vmatpush1.bf16.msra.mxu0 %v639
  %1853 = vmatprep.subr.bf16.mxu0 %v644
  %1854 = vmatpush1.bf16.msra.mxu0 %v643
  %1855 = vmatprep.subr.bf16.mxu0 %v648
  %1856 = vmatpush1.bf16.msra.mxu0 %v647
  %1857 = vmatprep.subr.bf16.mxu0 %v652
  %1858 = vmatpush1.bf16.msra.mxu0 %v651
  %1859 = vmatprep.subr.bf16.mxu0 %v656
  %1860 = vmatpush1.bf16.msra.mxu0 %v655
  %1861 = vmatprep.subr.bf16.mxu0 %v660
  %1862 = vmatpush1.bf16.msra.mxu0 %v659
  %1863 = vmatprep.subr.bf16.mxu0 %v664
  %1864 = vmatpush1.bf16.msra.mxu0 %v663
  %1865 = vmatprep.subr.bf16.mxu0 %v668
  %1866 = vmatpush1.bf16.msra.mxu0 %v667
  %1867 = vmatprep.subr.bf16.mxu0 %v672
  %1868 = vmatpush1.bf16.msra.mxu0 %v671
  %1869 = vmatprep.subr.bf16.mxu0 %v676
  %1870 = vmatpush1.bf16.msra.mxu0 %v675
  %1871 = vmatprep.subr.bf16.mxu0 %v680
  %1872 = vmatpush1.bf16.msra.mxu0 %v679
  %1873 = vmatprep.mubr.bf16.mxu0 %v1799
  %1874 = vmatmul.mubr.bf16.gmra.mrb[0].mxu0 %v1798
  %v1875 = vpop.f32.mrb[0].mxu0
  %v1876 = vadd.f32 %v45, %v1875
  %v1877 = vpop.f32.mrb[0].mxu0
  %v1878 = vadd.f32 %v49, %v1877
  %v1879 = vpop.f32.mrb[0].mxu0
  %v1880 = vpop.f32.mrb[0].mxu0
  %1881 = vdwg.mxu0
  %v1882 = vmul.f32 %v1835, 0.5
  %v1883 = vtanh.pop %v1882
  %v1884 = vmul.f32 %v1883, 0.5
  %v1885 = vadd.f32 %v1884, 0.5
  %v1886 = vmul.f32 %v1837, 0.5
  %v1887 = vtanh.pop %v1886
  %v1888 = vmul.f32 %v1887, 0.5
  %v1889 = vadd.f32 %v1888, 0.5
  %v1890 = vtanh.pop %v1876
  %v1891 = vmul.f32 %v1878, 0.5
  %v1892 = vtanh.pop %v1891
  %v1893 = vmul.f32 %v1892, 0.5
  %v1894 = vadd.f32 %v1893, 0.5
  %v1895 = vmul.f32 %v1889, %v1686
  %v1896 = vmul.f32 %v1885, %v1890
  %v1897 = vadd.f32 %v1895, %v1896
  %v1898 = vtanh.pop %v1897
  %v1899 = vmul.f32 %v1894, %v1898
  %s1900 = scalar_lea.vmem %s0, 192
  %v1901 = vld [vmem:[%s1900] sm:$0xff]
  %v1902 = vld [vmem:[%s1900 + $0x8] sm:$0xff]
  %v1903 = vld [vmem:[%s1900 + $0x10] sm:$0xff]
  %v1904 = vld [vmem:[%s1900 + $0x18] sm:$0xff]
  %1905 = vmatprep.subr.bf16.mxu0 %v192
  %1906 = vmatpush1.bf16.msra.mxu0 %v191
  %1907 = vmatprep.subr.bf16.mxu0 %v196
  %1908 = vmatpush1.bf16.msra.mxu0 %v195
  %1909 = vmatprep.subr.bf16.mxu0 %v200
  %1910 = vmatpush1.bf16.msra.mxu0 %v199
  %1911 = vmatprep.subr.bf16.mxu0 %v204
  %1912 = vmatpush1.bf16.msra.mxu0 %v203
  %1913 = vmatprep.subr.bf16.mxu0 %v208
  %1914 = vmatpush1.bf16.msra.mxu0 %v207
  %1915 = vmatprep.subr.bf16.mxu0 %v212
  %1916 = vmatpush1.bf16.msra.mxu0 %v211
  %1917 = vmatprep.subr.bf16.mxu0 %v216
  %1918 = vmatpush1.bf16.msra.mxu0 %v215
  %1919 = vmatprep.subr.bf16.mxu0 %v220
  %1920 = vmatpush1.bf16.msra.mxu0 %v219
  %1921 = vmatprep.subr.bf16.mxu0 0
  %1922 = vmatpush1.bf16.msra.mxu0 0
  %1923 = vmatprep.subr.bf16.mxu0 0
  %1924 = vmatpush1.bf16.msra.mxu0 0
  %1925 = vmatprep.subr.bf16.mxu0 0
  %1926 = vmatpush1.bf16.msra.mxu0 0
  %1927 = vmatprep.subr.bf16.mxu0 0
  %1928 = vmatpush1.bf16.msra.mxu0 0
  %1929 = vmatprep.subr.bf16.mxu0 0
  %1930 = vmatpush1.bf16.msra.mxu0 0
  %1931 = vmatprep.subr.bf16.mxu0 0
  %1932 = vmatpush1.bf16.msra.mxu0 0
  %1933 = vmatprep.subr.bf16.mxu0 0
  %1934 = vmatpush1.bf16.msra.mxu0 0
  %1935 = vmatprep.subr.bf16.mxu0 0
  %1936 = vmatpush1.bf16.msra.mxu0 0
  %1937 = vmatprep.mubr.bf16.mxu0 0
  %1938 = vmatmul.mubr.bf16.gmra.mrb[0].mxu0 %v1798
  %v1939 = vpop.f32.mrb[0].mxu0
  %v1940 = vadd.f32 0.0, %v1939
  %v1941 = vpop.f32.mrb[0].mxu0
  %v1942 = vadd.f32 0.0, %v1941
  %v1943 = vpop.f32.mrb[0].mxu0
  %v1944 = vpop.f32.mrb[0].mxu0
  %1945 = vdwg.mxu0
  %1946 = vmatprep.subr.bf16.mxu0 %v194
  %1947 = vmatpush1.bf16.msra.mxu0 %v193
  %1948 = vmatprep.subr.bf16.mxu0 %v198
  %1949 = vmatpush1.bf16.msra.mxu0 %v197
  %1950 = vmatprep.subr.bf16.mxu0 %v202
  %1951 = vmatpush1.bf16.msra.mxu0 %v201
  %1952 = vmatprep.subr.bf16.mxu0 %v206
  %1953 = vmatpush1.bf16.msra.mxu0 %v205
  %1954 = vmatprep.subr.bf16.mxu0 %v210
  %1955 = vmatpush1.bf16.msra.mxu0 %v209
  %1956 = vmatprep.subr.bf16.mxu0 %v214
  %1957 = vmatpush1.bf16.msra.mxu0 %v213
  %1958 = vmatprep.subr.bf16.mxu0 %v218
  %1959 = vmatpush1.bf16.msra.mxu0 %v217
  %1960 = vmatprep.subr.bf16.mxu0 %v222
  %1961 = vmatpush1.bf16.msra.mxu0 %v221
  %1962 = vmatprep.subr.bf16.mxu0 0
  %1963 = vmatpush1.bf16.msra.mxu0 0
  %1964 = vmatprep.subr.bf16.mxu0 0
  %1965 = vmatpush1.bf16.msra.mxu0 0
  %1966 = vmatprep.subr.bf16.mxu0 0
  %1967 = vmatpush1.bf16.msra.mxu0 0
  %1968 = vmatprep.subr.bf16.mxu0 0
  %1969 = vmatpush1.bf16.msra.mxu0 0
  %1970 = vmatprep.subr.bf16.mxu0 0
  %1971 = vmatpush1.bf16.msra.mxu0 0
  %1972 = vmatprep.subr.bf16.mxu0 0
  %1973 = vmatpush1.bf16.msra.mxu0 0
  %1974 = vmatprep.subr.bf16.mxu0 0
  %1975 = vmatpush1.bf16.msra.mxu0 0
  %1976 = vmatprep.subr.bf16.mxu0 0
  %1977 = vmatpush1.bf16.msra.mxu0 0
  %1978 = vmatprep.mubr.bf16.mxu0 0
  %1979 = vmatmul.mubr.bf16.gmra.mrb[0].mxu0 %v1798
  %v1980 = vpop.f32.mrb[0].mxu0
  %v1981 = vadd.f32 0.0, %v1980
  %v1982 = vpop.f32.mrb[0].mxu0
  %v1983 = vadd.f32 0.0, %v1982
  %v1984 = vpop.f32.mrb[0].mxu0
  %v1985 = vpop.f32.mrb[0].mxu0
  %1986 = vdwg.mxu0
  %v1987 = vadd.f32 %v1901, %v1940
  %v1988 = vadd.f32 %v1902, %v1942
  %v1989 = vadd.f32 %v1903, %v1981
  %v1990 = vadd.f32 %v1904, %v1983
  %v1991 = vmul.f32 %v1987, 0.5
  %v1992 = vtanh.pop %v1991
  %v1993 = vmul.f32 %v1992, 0.5
  %v1994 = vadd.f32 %v1993, 0.5
  %v1995 = vmul.f32 %v1988, 0.5
  %v1996 = vtanh.pop %v1995
  %v1997 = vmul.f32 %v1996, 0.5
  %v1998 = vadd.f32 %v1997, 0.5
  %v1999 = vtanh.pop %v1989
  %v2000 = vmul.f32 %v1990, 0.5
  %v2001 = vtanh.pop %v2000
  %v2002 = vmul.f32 %v2001, 0.5
  %v2003 = vadd.f32 %v2002, 0.5
  %v2004 = vmul.f32 %v1998, %v1795
  %v2005 = vmul.f32 %v1994, %v1999
  %v2006 = vadd.f32 %v2004, %v2005
  %v2007 = vtanh.pop %v2006
  %v2008 = vmul.f32 %v2003, %v2007
  %v2009 = vpack.c.bf16 %v2008, %v2008
  %v2010 = vpack.c.bf16 %v1899, %v1899
  %2011 = vmatprep.subr.bf16.mxu0 %v618
  %2012 = vmatpush1.bf16.msra.mxu0 %v617
  %2013 = vmatprep.subr.bf16.mxu0 %v622
  %2014 = vmatpush1.bf16.msra.mxu0 %v621
  %2015 = vmatprep.subr.bf16.mxu0 %v626
  %2016 = vmatpush1.bf16.msra.mxu0 %v625
  %2017 = vmatprep.subr.bf16.mxu0 %v630
  %2018 = vmatpush1.bf16.msra.mxu0 %v629
  %2019 = vmatprep.subr.bf16.mxu0 %v634
  %2020 = vmatpush1.bf16.msra.mxu0 %v633
  %2021 = vmatprep.subr.bf16.mxu0 %v638
  %2022 = vmatpush1.bf16.msra.mxu0 %v637
  %2023 = vmatprep.subr.bf16.mxu0 %v642
  %2024 = vmatpush1.bf16.msra.mxu0 %v641
  %2025 = vmatprep.subr.bf16.mxu0 %v646
  %2026 = vmatpush1.bf16.msra.mxu0 %v645
  %2027 = vmatprep.subr.bf16.mxu0 %v650
  %2028 = vmatpush1.bf16.msra.mxu0 %v649
  %2029 = vmatprep.subr.bf16.mxu0 %v654
  %2030 = vmatpush1.bf16.msra.mxu0 %v653
  %2031 = vmatprep.subr.bf16.mxu0 %v658
  %2032 = vmatpush1.bf16.msra.mxu0 %v657
  %2033 = vmatprep.subr.bf16.mxu0 %v662
  %2034 = vmatpush1.bf16.msra.mxu0 %v661
  %2035 = vmatprep.subr.bf16.mxu0 %v666
  %2036 = vmatpush1.bf16.msra.mxu0 %v665
  %2037 = vmatprep.subr.bf16.mxu0 %v670
  %2038 = vmatpush1.bf16.msra.mxu0 %v669
  %2039 = vmatprep.subr.bf16.mxu0 %v674
  %2040 = vmatpush1.bf16.msra.mxu0 %v673
  %2041 = vmatprep.subr.bf16.mxu0 %v678
  %2042 = vmatpush1.bf16.msra.mxu0 %v677
  %2043 = vmatprep.mubr.bf16.mxu0 %v2010
  %2044 = vmatmul.mubr.bf16.gmra.mrb[0].mxu0 %v2009
  %v2045 = vpop.f32.mrb[0].mxu0
  %v2046 = vadd.f32 %v37, %v2045
  %v2047 = vpop.f32.mrb[0].mxu0
  %v2048 = vadd.f32 %v41, %v2047
  %v2049 = vpop.f32.mrb[0].mxu0
  %v2050 = vpop.f32.mrb[0].mxu0
  %2051 = vdwg.mxu0
  %2052 = vmatprep.subr.bf16.mxu0 %v620
  %2053 = vmatpush1.bf16.msra.mxu0 %v619
  %2054 = vmatprep.subr.bf16.mxu0 %v624
  %2055 = vmatpush1.bf16.msra.mxu0 %v623
  %2056 = vmatprep.subr.bf16.mxu0 %v628
  %2057 = vmatpush1.bf16.msra.mxu0 %v627
  %2058 = vmatprep.subr.bf16.mxu0 %v632
  %2059 = vmatpush1.bf16.msra.mxu0 %v631
  %2060 = vmatprep.subr.bf16.mxu0 %v636
  %2061 = vmatpush1.bf16.msra.mxu0 %v635
  %2062 = vmatprep.subr.bf16.mxu0 %v640
  %2063 = vmatpush1.bf16.msra.mxu0 %v639
  %2064 = vmatprep.subr.bf16.mxu0 %v644
  %2065 = vmatpush1.bf16.msra.mxu0 %v643
  %2066 = vmatprep.subr.bf16.mxu0 %v648
  %2067 = vmatpush1.bf16.msra.mxu0 %v647
  %2068 = vmatprep.subr.bf16.mxu0 %v652
  %2069 = vmatpush1.bf16.msra.mxu0 %v651
  %2070 = vmatprep.subr.bf16.mxu0 %v656
  %2071 = vmatpush1.bf16.msra.mxu0 %v655
  %2072 = vmatprep.subr.bf16.mxu0 %v660
  %2073 = vmatpush1.bf16.msra.mxu0 %v659
  %2074 = vmatprep.subr.bf16.mxu0 %v664
  %2075 = vmatpush1.bf16.msra.mxu0 %v663
  %2076 = vmatprep.subr.bf16.mxu0 %v668
  %2077 = vmatpush1.bf16.msra.mxu0 %v667
  %2078 = vmatprep.subr.bf16.mxu0 %v672
  %2079 = vmatpush1.bf16.msra.mxu0 %v671
  %2080 = vmatprep.subr.bf16.mxu0 %v676
  %2081 = vmatpush1.bf16.msra.mxu0 %v675
  %2082 = vmatprep.subr.bf16.mxu0 %v680
  %2083 = vmatpush1.bf16.msra.mxu0 %v679
  %2084 = vmatprep.mubr.bf16.mxu0 %v2010
  %2085 = vmatmul.mubr.bf16.gmra.mrb[0].mxu0 %v2009
  %v2086 = vpop.f32.mrb[0].mxu0
  %v2087 = vadd.f32 %v45, %v2086
  %v2088 = vpop.f32.mrb[0].mxu0
  %v2089 = vadd.f32 %v49, %v2088
  %v2090 = vpop.f32.mrb[0].mxu0
  %v2091 = vpop.f32.mrb[0].mxu0
  %2092 = vdwg.mxu0
  %v2093 = vmul.f32 %v2046, 0.5
  %v2094 = vtanh.pop %v2093
  %v2095 = vmul.f32 %v2094, 0.5
  %v2096 = vadd.f32 %v2095, 0.5
  %v2097 = vmul.f32 %v2048, 0.5
  %v2098 = vtanh.pop %v2097
  %v2099 = vmul.f32 %v2098, 0.5
  %v2100 = vadd.f32 %v2099, 0.5
  %v2101 = vtanh.pop %v2087
  %v2102 = vmul.f32 %v2089, 0.5
  %v2103 = vtanh.pop %v2102
  %v2104 = vmul.f32 %v2103, 0.5
  %v2105 = vadd.f32 %v2104, 0.5
  %v2106 = vmul.f32 %v2100, %v1897
  %v2107 = vmul.f32 %v2096, %v2101
  %v2108 = vadd.f32 %v2106, %v2107
  %v2109 = vtanh.pop %v2108
  %v2110 = vmul.f32 %v2105, %v2109
  %s2111 = scalar_lea.vmem %s0, 224
  %v2112 = vld [vmem:[%s2111] sm:$0xff]
  %v2113 = vld [vmem:[%s2111 + $0x8] sm:$0xff]
  %v2114 = vld [vmem:[%s2111 + $0x10] sm:$0xff]
  %v2115 = vld [vmem:[%s2111 + $0x18] sm:$0xff]
  %2116 = vmatprep.subr.bf16.mxu0 %v192
  %2117 = vmatpush1.bf16.msra.mxu0 %v191
  %2118 = vmatprep.subr.bf16.mxu0 %v196
  %2119 = vmatpush1.bf16.msra.mxu0 %v195
  %2120 = vmatprep.subr.bf16.mxu0 %v200
  %2121 = vmatpush1.bf16.msra.mxu0 %v199
  %2122 = vmatprep.subr.bf16.mxu0 %v204
  %2123 = vmatpush1.bf16.msra.mxu0 %v203
  %2124 = vmatprep.subr.bf16.mxu0 %v208
  %2125 = vmatpush1.bf16.msra.mxu0 %v207
  %2126 = vmatprep.subr.bf16.mxu0 %v212
  %2127 = vmatpush1.bf16.msra.mxu0 %v211
  %2128 = vmatprep.subr.bf16.mxu0 %v216
  %2129 = vmatpush1.bf16.msra.mxu0 %v215
  %2130 = vmatprep.subr.bf16.mxu0 %v220
  %2131 = vmatpush1.bf16.msra.mxu0 %v219
  %2132 = vmatprep.subr.bf16.mxu0 0
  %2133 = vmatpush1.bf16.msra.mxu0 0
  %2134 = vmatprep.subr.bf16.mxu0 0
  %2135 = vmatpush1.bf16.msra.mxu0 0
  %2136 = vmatprep.subr.bf16.mxu0 0
  %2137 = vmatpush1.bf16.msra.mxu0 0
  %2138 = vmatprep.subr.bf16.mxu0 0
  %2139 = vmatpush1.bf16.msra.mxu0 0
  %2140 = vmatprep.subr.bf16.mxu0 0
  %2141 = vmatpush1.bf16.msra.mxu0 0
  %2142 = vmatprep.subr.bf16.mxu0 0
  %2143 = vmatpush1.bf16.msra.mxu0 0
  %2144 = vmatprep.subr.bf16.mxu0 0
  %2145 = vmatpush1.bf16.msra.mxu0 0
  %2146 = vmatprep.subr.bf16.mxu0 0
  %2147 = vmatpush1.bf16.msra.mxu0 0
  %2148 = vmatprep.mubr.bf16.mxu0 0
  %2149 = vmatmul.mubr.bf16.gmra.mrb[0].mxu0 %v2009
  %v2150 = vpop.f32.mrb[0].mxu0
  %v2151 = vadd.f32 0.0, %v2150
  %v2152 = vpop.f32.mrb[0].mxu0
  %v2153 = vadd.f32 0.0, %v2152
  %v2154 = vpop.f32.mrb[0].mxu0
  %v2155 = vpop.f32.mrb[0].mxu0
  %2156 = vdwg.mxu0
  %2157 = vmatprep.subr.bf16.mxu0 %v194
  %2158 = vmatpush1.bf16.msra.mxu0 %v193
  %2159 = vmatprep.subr.bf16.mxu0 %v198
  %2160 = vmatpush1.bf16.msra.mxu0 %v197
  %2161 = vmatprep.subr.bf16.mxu0 %v202
  %2162 = vmatpush1.bf16.msra.mxu0 %v201
  %2163 = vmatprep.subr.bf16.mxu0 %v206
  %2164 = vmatpush1.bf16.msra.mxu0 %v205
  %2165 = vmatprep.subr.bf16.mxu0 %v210
  %2166 = vmatpush1.bf16.msra.mxu0 %v209
  %2167 = vmatprep.subr.bf16.mxu0 %v214
  %2168 = vmatpush1.bf16.msra.mxu0 %v213
  %2169 = vmatprep.subr.bf16.mxu0 %v218
  %2170 = vmatpush1.bf16.msra.mxu0 %v217
  %2171 = vmatprep.subr.bf16.mxu0 %v222
  %2172 = vmatpush1.bf16.msra.mxu0 %v221
  %2173 = vmatprep.subr.bf16.mxu0 0
  %2174 = vmatpush1.bf16.msra.mxu0 0
  %2175 = vmatprep.subr.bf16.mxu0 0
  %2176 = vmatpush1.bf16.msra.mxu0 0
  %2177 = vmatprep.subr.bf16.mxu0 0
  %2178 = vmatpush1.bf16.msra.mxu0 0
  %2179 = vmatprep.subr.bf16.mxu0 0
  %2180 = vmatpush1.bf16.msra.mxu0 0
  %2181 = vmatprep.subr.bf16.mxu0 0
  %2182 = vmatpush1.bf16.msra.mxu0 0
  %2183 = vmatprep.subr.bf16.mxu0 0
  %2184 = vmatpush1.bf16.msra.mxu0 0
  %2185 = vmatprep.subr.bf16.mxu0 0
  %2186 = vmatpush1.bf16.msra.mxu0 0
  %2187 = vmatprep.subr.bf16.mxu0 0
  %2188 = vmatpush1.bf16.msra.mxu0 0
  %2189 = vmatprep.mubr.bf16.mxu0 0
  %2190 = vmatmul.mubr.bf16.gmra.mrb[0].mxu0 %v2009
  %v2191 = vpop.f32.mrb[0].mxu0
  %v2192 = vadd.f32 0.0, %v2191
  %v2193 = vpop.f32.mrb[0].mxu0
  %v2194 = vadd.f32 0.0, %v2193
  %v2195 = vpop.f32.mrb[0].mxu0
  %v2196 = vpop.f32.mrb[0].mxu0
  %2197 = vdwg.mxu0
  %v2198 = vadd.f32 %v2112, %v2151
  %v2199 = vadd.f32 %v2113, %v2153
  %v2200 = vadd.f32 %v2114, %v2192
  %v2201 = vadd.f32 %v2115, %v2194
  %v2202 = vmul.f32 %v2198, 0.5
  %v2203 = vtanh.pop %v2202
  %v2204 = vmul.f32 %v2203, 0.5
  %v2205 = vadd.f32 %v2204, 0.5
  %v2206 = vmul.f32 %v2199, 0.5
  %v2207 = vtanh.pop %v2206
  %v2208 = vmul.f32 %v2207, 0.5
  %v2209 = vadd.f32 %v2208, 0.5
  %v2210 = vtanh.pop %v2200
  %v2211 = vmul.f32 %v2201, 0.5
  %v2212 = vtanh.pop %v2211
  %v2213 = vmul.f32 %v2212, 0.5
  %v2214 = vadd.f32 %v2213, 0.5
  %v2215 = vmul.f32 %v2209, %v2006
  %v2216 = vmul.f32 %v2205, %v2210
  %v2217 = vadd.f32 %v2215, %v2216
  %v2218 = vtanh.pop %v2217
  %v2219 = vmul.f32 %v2214, %v2218
  %v2220 = vpack.c.bf16 %v2219, %v2219
  %v2221 = vpack.c.bf16 %v2110, %v2110
  %2222 = vmatprep.subr.bf16.mxu0 %v618
  %2223 = vmatpush1.bf16.msra.mxu0 %v617
  %2224 = vmatprep.subr.bf16.mxu0 %v622
  %2225 = vmatpush1.bf16.msra.mxu0 %v621
  %2226 = vmatprep.subr.bf16.mxu0 %v626
  %2227 = vmatpush1.bf16.msra.mxu0 %v625
  %2228 = vmatprep.subr.bf16.mxu0 %v630
  %2229 = vmatpush1.bf16.msra.mxu0 %v629
  %2230 = vmatprep.subr.bf16.mxu0 %v634
  %2231 = vmatpush1.bf16.msra.mxu0 %v633
  %2232 = vmatprep.subr.bf16.mxu0 %v638
  %2233 = vmatpush1.bf16.msra.mxu0 %v637
  %2234 = vmatprep.subr.bf16.mxu0 %v642
  %2235 = vmatpush1.bf16.msra.mxu0 %v641
  %2236 = vmatprep.subr.bf16.mxu0 %v646
  %2237 = vmatpush1.bf16.msra.mxu0 %v645
  %2238 = vmatprep.subr.bf16.mxu0 %v650
  %2239 = vmatpush1.bf16.msra.mxu0 %v649
  %2240 = vmatprep.subr.bf16.mxu0 %v654
  %2241 = vmatpush1.bf16.msra.mxu0 %v653
  %2242 = vmatprep.subr.bf16.mxu0 %v658
  %2243 = vmatpush1.bf16.msra.mxu0 %v657
  %2244 = vmatprep.subr.bf16.mxu0 %v662
  %2245 = vmatpush1.bf16.msra.mxu0 %v661
  %2246 = vmatprep.subr.bf16.mxu0 %v666
  %2247 = vmatpush1.bf16.msra.mxu0 %v665
  %2248 = vmatprep.subr.bf16.mxu0 %v670
  %2249 = vmatpush1.bf16.msra.mxu0 %v669
  %2250 = vmatprep.subr.bf16.mxu0 %v674
  %2251 = vmatpush1.bf16.msra.mxu0 %v673
  %2252 = vmatprep.subr.bf16.mxu0 %v678
  %2253 = vmatpush1.bf16.msra.mxu0 %v677
  %2254 = vmatprep.mubr.bf16.mxu0 %v2221
  %2255 = vmatmul.mubr.bf16.gmra.mrb[0].mxu0 %v2220
  %v2256 = vpop.f32.mrb[0].mxu0
  %v2257 = vadd.f32 %v37, %v2256
  %v2258 = vpop.f32.mrb[0].mxu0
  %v2259 = vadd.f32 %v41, %v2258
  %v2260 = vpop.f32.mrb[0].mxu0
  %v2261 = vpop.f32.mrb[0].mxu0
  %2262 = vdwg.mxu0
  %2263 = vmatprep.subr.bf16.mxu0 %v620
  %2264 = vmatpush1.bf16.msra.mxu0 %v619
  %2265 = vmatprep.subr.bf16.mxu0 %v624
  %2266 = vmatpush1.bf16.msra.mxu0 %v623
  %2267 = vmatprep.subr.bf16.mxu0 %v628
  %2268 = vmatpush1.bf16.msra.mxu0 %v627
  %2269 = vmatprep.subr.bf16.mxu0 %v632
  %2270 = vmatpush1.bf16.msra.mxu0 %v631
  %2271 = vmatprep.subr.bf16.mxu0 %v636
  %2272 = vmatpush1.bf16.msra.mxu0 %v635
  %2273 = vmatprep.subr.bf16.mxu0 %v640
  %2274 = vmatpush1.bf16.msra.mxu0 %v639
  %2275 = vmatprep.subr.bf16.mxu0 %v644
  %2276 = vmatpush1.bf16.msra.mxu0 %v643
  %2277 = vmatprep.subr.bf16.mxu0 %v648
  %2278 = vmatpush1.bf16.msra.mxu0 %v647
  %2279 = vmatprep.subr.bf16.mxu0 %v652
  %2280 = vmatpush1.bf16.msra.mxu0 %v651
  %2281 = vmatprep.subr.bf16.mxu0 %v656
  %2282 = vmatpush1.bf16.msra.mxu0 %v655
  %2283 = vmatprep.subr.bf16.mxu0 %v660
  %2284 = vmatpush1.bf16.msra.mxu0 %v659
  %2285 = vmatprep.subr.bf16.mxu0 %v664
  %2286 = vmatpush1.bf16.msra.mxu0 %v663
  %2287 = vmatprep.subr.bf16.mxu0 %v668
  %2288 = vmatpush1.bf16.msra.mxu0 %v667
  %2289 = vmatprep.subr.bf16.mxu0 %v672
  %2290 = vmatpush1.bf16.msra.mxu0 %v671
  %2291 = vmatprep.subr.bf16.mxu0 %v676
  %2292 = vmatpush1.bf16.msra.mxu0 %v675
  %2293 = vmatprep.subr.bf16.mxu0 %v680
  %2294 = vmatpush1.bf16.msra.mxu0 %v679
  %2295 = vmatprep.mubr.bf16.mxu0 %v2221
  %2296 = vmatmul.mubr.bf16.gmra.mrb[0].mxu0 %v2220
  %v2297 = vpop.f32.mrb[0].mxu0
  %v2298 = vadd.f32 %v45, %v2297
  %v2299 = vpop.f32.mrb[0].mxu0
  %v2300 = vadd.f32 %v49, %v2299
  %v2301 = vpop.f32.mrb[0].mxu0
  %v2302 = vpop.f32.mrb[0].mxu0
  %2303 = vdwg.mxu0
  %v2304 = vmul.f32 %v2257, 0.5
  %v2305 = vtanh.pop %v2304
  %v2306 = vmul.f32 %v2305, 0.5
  %v2307 = vadd.f32 %v2306, 0.5
  %v2308 = vmul.f32 %v2259, 0.5
  %v2309 = vtanh.pop %v2308
  %v2310 = vmul.f32 %v2309, 0.5
  %v2311 = vadd.f32 %v2310, 0.5
  %v2312 = vtanh.pop %v2298
  %v2313 = vmul.f32 %v2300, 0.5
  %v2314 = vtanh.pop %v2313
  %v2315 = vmul.f32 %v2314, 0.5
  %v2316 = vadd.f32 %v2315, 0.5
  %v2317 = vmul.f32 %v2311, %v2108
  %v2318 = vmul.f32 %v2307, %v2312
  %v2319 = vadd.f32 %v2317, %v2318
  %v2320 = vtanh.pop %v2319
  %v2321 = vmul.f32 %v2316, %v2320
  %2322 = vst [vmem:[#allocation2] sm:$0xff] %v2219
  %2323 = vst [vmem:[#allocation3] sm:$0xff] %v2217
  %2324 = vst [vmem:[#allocation4] sm:$0xff] %v2321
  %2325 = vst [vmem:[#allocation5] sm:$0xff] %v2319
  // Predicated region
  $region30: #{lstm_regressor_forward.1} parent=0 // pred_check
    %p2326 = pneg %p24
  $region31: #{lstm_regressor_forward.1} parent=0 // pred_check_branch
    %2328 = sbr.rel (%p2326) target = $region33
  $region32: #{lstm_regressor_forward.1} parent=0 // pred_region
    %v2329 = vld [vmem:[%s4] sm:$0xff]
    %v2330 = vld [vmem:[%s4 + $0x8] sm:$0xff]
    %v2331 = vld [vmem:[%s4 + $0x10] sm:$0xff]
    %v2332 = vld [vmem:[%s4 + $0x18] sm:$0xff]
    %v2333 = vld [vmem:[%s4 + $0x20] sm:$0xff]
    %v2334 = vld [vmem:[%s4 + $0x28] sm:$0xff]
    %v2335 = vld [vmem:[%s4 + $0x30] sm:$0xff]
    %v2336 = vld [vmem:[%s4 + $0x38] sm:$0xff]
    %v2337 = vld [vmem:[%s4 + $0x40] sm:$0xff]
    %v2338 = vld [vmem:[%s4 + $0x48] sm:$0xff]
    %v2339 = vld [vmem:[%s4 + $0x50] sm:$0xff]
    %v2340 = vld [vmem:[%s4 + $0x58] sm:$0xff]
    %v2341 = vld [vmem:[%s4 + $0x60] sm:$0xff]
    %v2342 = vld [vmem:[%s4 + $0x68] sm:$0xff]
    %v2343 = vld [vmem:[%s4 + $0x70] sm:$0xff]
    %v2344 = vld [vmem:[%s4 + $0x78] sm:$0xff]
    %v2345 = vld [vmem:[%s5] sm:$0x1]
    %v2347 = vlaneseq
    %v2348 = vshrl.u32 %v2347, 7
    %v2349 = vsub.s32 0, %v2348
    %v2350 = vrot.slane %v2345, %v2349
    %2352 = vmatprep.subr.mxu0 0.0
    %2353 = vmatpush1.msra.mxu0 %v2329
    %2354 = vmatprep.subr.mxu0 0.0
    %2355 = vmatpush1.msra.mxu0 %v2330
    %2356 = vmatprep.subr.mxu0 0.0
    %2357 = vmatpush1.msra.mxu0 %v2331
    %2358 = vmatprep.subr.mxu0 0.0
    %2359 = vmatpush1.msra.mxu0 %v2332
    %2360 = vmatprep.subr.mxu0 0.0
    %2361 = vmatpush1.msra.mxu0 %v2333
    %2362 = vmatprep.subr.mxu0 0.0
    %2363 = vmatpush1.msra.mxu0 %v2334
    %2364 = vmatprep.subr.mxu0 0.0
    %2365 = vmatpush1.msra.mxu0 %v2335
    %2366 = vmatprep.subr.mxu0 0.0
    %2367 = vmatpush1.msra.mxu0 %v2336
    %2368 = vmatprep.subr.mxu0 0.0
    %2369 = vmatpush1.msra.mxu0 %v2337
    %2370 = vmatprep.subr.mxu0 0.0
    %2371 = vmatpush1.msra.mxu0 %v2338
    %2372 = vmatprep.subr.mxu0 0.0
    %2373 = vmatpush1.msra.mxu0 %v2339
    %2374 = vmatprep.subr.mxu0 0.0
    %2375 = vmatpush1.msra.mxu0 %v2340
    %2376 = vmatprep.subr.mxu0 0.0
    %2377 = vmatpush1.msra.mxu0 %v2341
    %2378 = vmatprep.subr.mxu0 0.0
    %2379 = vmatpush1.msra.mxu0 %v2342
    %2380 = vmatprep.subr.mxu0 0.0
    %2381 = vmatpush1.msra.mxu0 %v2343
    %2382 = vmatprep.subr.mxu0 0.0
    %2383 = vmatpush1.msra.mxu0 %v2344
    %2384 = vmatprep.subr.mxu0 0.0
    %2385 = vmatpush1.msra.mxu0 0.0
    %2386 = vmatprep.subr.mxu0 0.0
    %2387 = vmatpush1.msra.mxu0 0.0
    %2388 = vmatprep.subr.mxu0 0.0
    %2389 = vmatpush1.msra.mxu0 0.0
    %2390 = vmatprep.subr.mxu0 0.0
    %2391 = vmatpush1.msra.mxu0 0.0
    %2392 = vmatprep.subr.mxu0 0.0
    %2393 = vmatpush1.msra.mxu0 0.0
    %2394 = vmatprep.subr.mxu0 0.0
    %2395 = vmatpush1.msra.mxu0 0.0
    %2396 = vmatprep.subr.mxu0 0.0
    %2397 = vmatpush1.msra.mxu0 0.0
    %2398 = vmatprep.subr.mxu0 0.0
    %2399 = vmatpush1.msra.mxu0 0.0
    %2400 = vmatprep.subr.mxu0 0.0
    %2401 = vmatpush1.msra.mxu0 0.0
    %2402 = vmatprep.subr.mxu0 0.0
    %2403 = vmatpush1.msra.mxu0 0.0
    %2404 = vmatprep.subr.mxu0 0.0
    %2405 = vmatpush1.msra.mxu0 0.0
    %2406 = vmatprep.subr.mxu0 0.0
    %2407 = vmatpush1.msra.mxu0 0.0
    %2408 = vmatprep.subr.mxu0 0.0
    %2409 = vmatpush1.msra.mxu0 0.0
    %2410 = vmatprep.subr.mxu0 0.0
    %2411 = vmatpush1.msra.mxu0 0.0
    %2412 = vmatprep.subr.mxu0 0.0
    %2413 = vmatpush1.msra.mxu0 0.0
    %2414 = vmatprep.subr.mxu0 0.0
    %2415 = vmatpush1.msra.mxu0 0.0
    %2416 = vmatprep.mubr.f32.mxu0 0.0
    %2417 = vmatmul.mubr.f32.gmra.mrb[0].mxu0 %v2321
    %v2418 = vpop.f32.mrb[0].mxu0
    %v2419 = vadd.f32 %v2350, %v2418
    %v2420 = vpop.f32.mrb[0].mxu0
    %2421 = vdwg.mxu0
    %2422 = vst [vmem:[%s6] sm:$0xff] %v2419
  $region33: #{lstm_regressor_forward.1} parent=0 // pred_fallthru
    _
  // Predicated region
  $region34: #{lstm_regressor_forward.1} parent=0 // pred_check
    _
  $region35: #{lstm_regressor_forward.1} parent=0 // pred_check_branch
    %2424 = sbr.rel (0) target = $region37
  $region36: #{lstm_regressor_forward.1} parent=0 // pred_region
    _
  $region37: #{lstm_regressor_forward.1} parent=0 // pred_fallthru
    _
  // Predicated region
  $region38: #{lstm_regressor_forward.1} parent=0 // pred_check
    _
  $region39: #{lstm_regressor_forward.1} parent=0 // pred_check_branch
    %2426 = sbr.rel (0) target = $region41
  $region40: #{lstm_regressor_forward.1} parent=0 // pred_region
    _
  $region41: #{lstm_regressor_forward.1} parent=0 // pred_fallthru
    _

</llo_original>
